<compile_context>
chip_gen: v6e
topology: v6e:2x2x1
jax: 0.10.0
libtpu: 0.0.40
codegen_flags: <defaults>
</compile_context>

<pallas_src>
import jax
import jax.numpy as jnp
from jax import lax
from jax.experimental import pallas as pl
from jax.experimental.pallas import tpu as pltpu


# ---------------------------------------------------------------------------
# Small helpers (all static / host-side).
# ---------------------------------------------------------------------------
def _round_up(x, m):
    return (x + m - 1) // m * m


def _pick_ts(T, cap=16):
    """Timesteps per grid step: prefer an exact divisor in (cap/2, cap]."""
    if T <= cap:
        return T
    for c in range(cap, cap // 2, -1):
        if T % c == 0:
            return c
    return cap   # tail block is masked inside the kernel


def _num_tensorcores():
    """2 on multi-TensorCore chips (v7x, megacore v4/v5p), else 1."""
    try:
        kind = jax.devices()[0].device_kind.lower()
    except Exception:
        return 1
    return 2 if any(s in kind for s in ("v7", "v4", "v5p")) else 1


def _vmem_limit(*nbytes):
    """~2x (double buffering) over the summed block bytes, with slack."""
    need = 2 * int(sum(nbytes)) + (4 << 20)
    return int(min(64 << 20, max(32 << 20, need)))


def _pick_row_block(rows, bp, t_pad, dp_bytes_per_row):
    """Largest Bp*d (d | T_pad) row block within a ~6 MiB block budget, <=2048."""
    cap = max(bp, min(2048, (6 << 20) // max(dp_bytes_per_row, 1)))
    best = bp
    for d in range(1, t_pad + 1):
        if t_pad % d == 0 and bp * d <= cap:
            best = bp * d
    return min(best, rows)


# ---------------------------------------------------------------------------
# Input projection: one big GEMM over all timesteps (hoisted out of recurrence)
#   x2 (rows, Dp) bf16 @ W_ih (Dp, 3Hp) bf16 + b_proj (1, 3Hp) f32 -> f32
# ---------------------------------------------------------------------------
def _proj_kernel(x_ref, w_ref, b_ref, o_ref):
    o_ref[...] = (
        jnp.dot(x_ref[...], w_ref[...], preferred_element_type=jnp.float32)
        + b_ref[...]
    ).astype(o_ref.dtype)


def input_projection(x2, w_f, b_f, row_block):
    rows, Dp = x2.shape
    G3 = w_f.shape[-1]
    limit = _vmem_limit(
        row_block * Dp * x2.dtype.itemsize,
        Dp * G3 * w_f.dtype.itemsize,
        G3 * 4,
        row_block * G3 * 4,
    )
    return pl.pallas_call(
        _proj_kernel,
        out_shape=jax.ShapeDtypeStruct((rows, G3), jnp.float32),
        grid_spec=pltpu.PrefetchScalarGridSpec(
            num_scalar_prefetch=0,
            grid=(rows // row_block,),
            in_specs=[
                pl.BlockSpec((row_block, Dp), lambda i: (i, 0)),
                pl.BlockSpec((Dp, G3), lambda i: (0, 0)),
                pl.BlockSpec((1, G3), lambda i: (0, 0)),
            ],
            out_specs=pl.BlockSpec((row_block, G3), lambda i: (i, 0)),
        ),
        compiler_params=pltpu.CompilerParams(
            dimension_semantics=("parallel",),
            vmem_limit_bytes=limit),
    )(x2, w_f, b_f)


# ---------------------------------------------------------------------------
# Recurrent kernels: one grid step == ts timesteps; hidden state in VMEM.
# Gate layout along lanes: [r | z | n], each of width Hp.
# b_ir+b_hr, b_iz+b_hz, b_in were folded into the projection bias; only b_hn
# (inside r * (...)) stays in the recurrence.
# ---------------------------------------------------------------------------
def _gru_step(gx, gh, bhn, h, Hp):
    r = jax.nn.sigmoid(gx[:, 0:Hp] + gh[:, 0:Hp])
    z = jax.nn.sigmoid(gx[:, Hp:2 * Hp] + gh[:, Hp:2 * Hp])
    n = jnp.tanh(gx[:, 2 * Hp:3 * Hp] + r * (gh[:, 2 * Hp:3 * Hp] + bhn))
    return (1.0 - z) * n + z * h


def _make_seq_kernel(ts, t_total, Hp):
    rem = t_total % ts

    def kernel(gx_ref, whh_ref, bhn_ref, hseq_ref, h_scratch):
        t = pl.program_id(1)

        @pl.when(t == 0)
        def _():
            h_scratch[...] = jnp.zeros_like(h_scratch)

        bb = h_scratch.shape[0]
        whh = whh_ref[...]                                   # (Hp, 3Hp) bf16
        bhn = jnp.broadcast_to(bhn_ref[...], (bb, Hp))       # hoisted broadcast
        if rem:
            n_valid = t_total - t * ts                       # < ts only on tail block

        def body(s, h):
            gh = jnp.dot(h.astype(jnp.bfloat16), whh,
                         preferred_element_type=jnp.float32)
            h_new = _gru_step(gx_ref[s], gh, bhn, h, Hp)
            if rem:
                h_new = jnp.where(s < n_valid, h_new, h)
            hseq_ref[s] = h_new.astype(hseq_ref.dtype)
            return h_new

        h_scratch[...] = lax.fori_loop(0, ts, body, h_scratch[...], unroll=True)

    return kernel


def _make_final_kernel(ts, t_total, Hp):
    rem = t_total % ts

    def kernel(gx_ref, whh_ref, bhn_ref, wout_ref, bout_ref, y_ref, h_scratch):
        t = pl.program_id(1)

        @pl.when(t == 0)
        def _():
            h_scratch[...] = jnp.zeros_like(h_scratch)

        bb = h_scratch.shape[0]
        whh = whh_ref[...]
        bhn = jnp.broadcast_to(bhn_ref[...], (bb, Hp))
        if rem:
            n_valid = t_total - t * ts

        def body(s, h):
            gh = jnp.dot(h.astype(jnp.bfloat16), whh,
                         preferred_element_type=jnp.float32)
            h_new = _gru_step(gx_ref[s], gh, bhn, h, Hp)
            if rem:
                h_new = jnp.where(s < n_valid, h_new, h)
            return h_new

        h_scratch[...] = lax.fori_loop(0, ts, body, h_scratch[...], unroll=True)

        # Fused Linear head on the final hidden state.
        @pl.when(t == pl.num_programs(1) - 1)
        def _():
            y_ref[...] = (
                jnp.dot(h_scratch[...], wout_ref[...],
                        preferred_element_type=jnp.float32)
                + bout_ref[...]
            ).astype(y_ref.dtype)

    return kernel


def gru_layer_seq(gx, whh_f, b_hn, t_total, ts, bb, seq_dtype):
    """Non-final layer: (T_pad, Bp, 3Hp) projections -> (T_pad, Bp, Hp) hidden seq."""
    T_pad, Bp, G3 = gx.shape
    Hp = G3 // 3
    nb = Bp // bb
    limit = _vmem_limit(
        ts * bb * G3 * 4,
        Hp * G3 * whh_f.dtype.itemsize,
        Hp * 4,
        ts * bb * Hp * jnp.dtype(seq_dtype).itemsize,
        bb * Hp * 4,
    )
    return pl.pallas_call(
        _make_seq_kernel(ts, t_total, Hp),
        out_shape=jax.ShapeDtypeStruct((T_pad, Bp, Hp), seq_dtype),
        grid_spec=pltpu.PrefetchScalarGridSpec(
            num_scalar_prefetch=0,
            grid=(nb, T_pad // ts),
            in_specs=[
                pl.BlockSpec((ts, bb, G3), lambda b, t: (t, b, 0)),
                pl.BlockSpec((Hp, G3), lambda b, t: (0, 0)),
                pl.BlockSpec((1, Hp), lambda b, t: (0, 0)),
            ],
            out_specs=pl.BlockSpec((ts, bb, Hp), lambda b, t: (t, b, 0)),
            scratch_shapes=[pltpu.VMEM((bb, Hp), jnp.float32)],
        ),
        compiler_params=pltpu.CompilerParams(
            dimension_semantics=("parallel", "arbitrary"),
            vmem_limit_bytes=limit),
    )(gx, whh_f, b_hn)


def gru_layer_final(gx, whh_f, b_hn, w_out_p, b_out_p, t_total, ts, bb):
    """Final layer: recurrence + fused Linear head -> (Bp, Cp) logits."""
    T_pad, Bp, G3 = gx.shape
    Hp = G3 // 3
    Cp = w_out_p.shape[-1]
    nb = Bp // bb
    limit = _vmem_limit(
        ts * bb * G3 * 4,
        Hp * G3 * whh_f.dtype.itemsize,
        Hp * 4,
        Hp * Cp * 4,
        Cp * 4,
        bb * Cp * 4,
        bb * Hp * 4,
    )
    return pl.pallas_call(
        _make_final_kernel(ts, t_total, Hp),
        out_shape=jax.ShapeDtypeStruct((Bp, Cp), jnp.float32),
        grid_spec=pltpu.PrefetchScalarGridSpec(
            num_scalar_prefetch=0,
            grid=(nb, T_pad // ts),
            in_specs=[
                pl.BlockSpec((ts, bb, G3), lambda b, t: (t, b, 0)),
                pl.BlockSpec((Hp, G3), lambda b, t: (0, 0)),
                pl.BlockSpec((1, Hp), lambda b, t: (0, 0)),
                pl.BlockSpec((Hp, Cp), lambda b, t: (0, 0)),
                pl.BlockSpec((1, Cp), lambda b, t: (0, 0)),
            ],
            out_specs=pl.BlockSpec((bb, Cp), lambda b, t: (b, 0)),
            scratch_shapes=[pltpu.VMEM((bb, Hp), jnp.float32)],
        ),
        compiler_params=pltpu.CompilerParams(
            dimension_semantics=("parallel", "arbitrary"),
            vmem_limit_bytes=limit),
    )(gx, whh_f, b_hn, w_out_p, b_out_p)


# ---------------------------------------------------------------------------
# One-time parameter prep (OUTSIDE the jitted forward): fuse gates along lanes,
# fold the r/z hidden biases into the projection bias, pad lane/sublane dense,
# cast the big weights to bf16 (single-pass MXU).
# ---------------------------------------------------------------------------
def prepare_params(params, weight_dtype=jnp.bfloat16):
    layers = []
    for layer in params["layers"]:
        wih, whh, bih, bhh = layer["wih"], layer["whh"], layer["bih"], layer["bhh"]
        _, Din, H = wih.shape
        Dp = _round_up(Din, 128)
        Hp = _round_up(H, 128)
        wih_p = jnp.pad(wih, ((0, 0), (0, Dp - Din), (0, Hp - H)))
        whh_p = jnp.pad(whh, ((0, 0), (0, Hp - H), (0, Hp - H)))
        bih_p = jnp.pad(bih, ((0, 0), (0, 0), (0, Hp - H)))
        bhh_p = jnp.pad(bhh, ((0, 0), (0, 0), (0, Hp - H)))
        # [ b_ir+b_hr | b_iz+b_hz | b_in ] folded into the hoisted projection GEMM.
        b_proj = jnp.concatenate(
            [bih_p[0] + bhh_p[0], bih_p[1] + bhh_p[1], bih_p[2]], axis=-1)
        layers.append(dict(
            wih_f=jnp.concatenate([wih_p[0], wih_p[1], wih_p[2]], axis=-1
                                  ).astype(weight_dtype),
            whh_f=jnp.concatenate([whh_p[0], whh_p[1], whh_p[2]], axis=-1
                                  ).astype(weight_dtype),
            b_proj=b_proj.astype(jnp.float32),
            b_hn=bhh_p[2].astype(jnp.float32),
        ))
    H, C = params["w_out"].shape
    Hp = _round_up(H, 128)
    Cp = _round_up(C, 128)
    prep = dict(
        layers=layers,
        w_out_p=jnp.pad(params["w_out"], ((0, Hp - H), (0, Cp - C))).astype(jnp.float32),
        b_out_p=jnp.pad(params["b_out"], ((0, 0), (0, Cp - C))).astype(jnp.float32),
    )
    return prep, int(C)


# ---------------------------------------------------------------------------
# Model forward.
# ---------------------------------------------------------------------------
@jax.jit
def _forward_padded(x_btd, prep):
    layers = prep["layers"]
    B, T, D = x_btd.shape
    Bp = _round_up(B, 8)

    cores = _num_tensorcores()
    nb = cores if (cores > 1 and Bp % (8 * cores) == 0) else 1
    bb = Bp // nb

    ts = _pick_ts(T)
    nt = pl.cdiv(T, ts)
    T_pad = nt * ts

    layer0 = layers[0]
    Dp0 = layer0["wih_f"].shape[0]
    # Single small transpose of the raw input to time-major; later layers
    # already produce time-major (T_pad, Bp, Hp) activations.
    x_tm = jnp.transpose(x_btd.astype(jnp.bfloat16), (1, 0, 2))
    x_tm = jnp.pad(x_tm, ((0, T_pad - T), (0, Bp - B), (0, Dp0 - D)))

    h_seq = x_tm
    y = None
    n_layers = len(layers)
    for li, layer in enumerate(layers):
        wih_f, whh_f = layer["wih_f"], layer["whh_f"]
        b_proj, b_hn = layer["b_proj"], layer["b_hn"]
        Dp, G3 = wih_f.shape
        rows = T_pad * Bp
        rb = _pick_row_block(rows, Bp, T_pad, Dp * 2 + G3 * 4)
        gx = input_projection(h_seq.reshape(rows, Dp), wih_f, b_proj, rb)
        gx = gx.reshape(T_pad, Bp, G3)
        if li < n_layers - 1:
            h_seq = gru_layer_seq(gx, whh_f, b_hn, T, ts, bb, jnp.bfloat16)
        else:
            y = gru_layer_final(gx, whh_f, b_hn, prep["w_out_p"], prep["b_out_p"],
                                T, ts, bb)
    return y


def gru_model_forward(x_btd, prep, num_classes):
    y_pad = _forward_padded(x_btd, prep)
    return y_pad[:x_btd.shape[0], :num_classes]


# ---------------------------------------------------------------------------
# Pure-JAX reference (matches PyTorch nn.GRU + nn.Linear semantics, f32).
# ---------------------------------------------------------------------------
def gru_model_ref(x_btd, params):
    x = x_btd.astype(jnp.float32)
    B = x.shape[0]
    for layer in params["layers"]:
        wih, whh, bih, bhh = layer["wih"], layer["whh"], layer["bih"], layer["bhh"]
        H = whh.shape[-1]

        def step(h, x_t):
            i = jnp.einsum("bd,gdh->gbh", x_t, wih) + bih
            g = jnp.einsum("bh,ghk->gbk", h, whh) + bhh
            r = jax.nn.sigmoid(i[0] + g[0])
            z = jax.nn.sigmoid(i[1] + g[1])
            n = jnp.tanh(i[2] + r * g[2])
            h_new = (1.0 - z) * n + z * h
            return h_new, h_new

        h0 = jnp.zeros((B, H), jnp.float32)
        _, hs = jax.lax.scan(step, h0, jnp.transpose(x, (1, 0, 2)))
        x = jnp.transpose(hs, (1, 0, 2))
    last = x[:, -1, :]
    return last @ params["w_out"] + params["b_out"][0]


def init_params(key, input_size, hidden, num_layers, num_classes):
    k = 1.0 / jnp.sqrt(jnp.float32(hidden))
    layers = []
    for l in range(num_layers):
        d_in = input_size if l == 0 else hidden
        key, k1, k2, k3, k4 = jax.random.split(key, 5)
        layers.append(dict(
            wih=jax.random.uniform(k1, (3, d_in, hidden), jnp.float32, -k, k),
            whh=jax.random.uniform(k2, (3, hidden, hidden), jnp.float32, -k, k),
            bih=jax.random.uniform(k3, (3, 1, hidden), jnp.float32, -k, k),
            bhh=jax.random.uniform(k4, (3, 1, hidden), jnp.float32, -k, k),
        ))
    key, k5, k6 = jax.random.split(key, 3)
    kl = 1.0 / jnp.sqrt(jnp.float32(hidden))
    return dict(
        layers=layers,
        w_out=jax.random.uniform(k5, (hidden, num_classes), jnp.float32, -kl, kl),
        b_out=jax.random.uniform(k6, (1, num_classes), jnp.float32, -kl, kl),
    )


if __name__ == "__main__":
    config = dict(input=16, hidden=32, dropout=0.0, num_layers=2, num_classes=5)
    B, T = 2, 8

    key = jax.random.PRNGKey(0)
    key, kx = jax.random.split(key)
    x = jax.random.normal(kx, (B, T, config["input"]), jnp.float32)
    params = init_params(key, config["input"], int(config["hidden"]),
                         int(config["num_layers"]), config["num_classes"])

    # One-time weight prep (outside the jitted forward).
    prep, num_classes = prepare_params(params)

    y = gru_model_forward(x, prep, num_classes)
    jax.block_until_ready(y)

    y_ref = gru_model_ref(x, params)
    assert y.shape == (B, config["num_classes"])
    # bf16 weights / inter-layer activations vs. f32 reference -> loosened tolerance.
    assert jnp.allclose(y, y_ref, atol=5e-2, rtol=5e-2), (y, y_ref)

    print("KERNEL_OK")
</pallas_src>

<mosaic_0001>
module attributes {stable_mosaic.version = 11 : i64} {
  func.func @_proj_kernel(%arg0: i32, %arg1: memref<64x128xbf16, #tpu.memory_space<vmem>>, %arg2: memref<128x384xbf16, #tpu.memory_space<vmem>>, %arg3: memref<1x384xf32, #tpu.memory_space<vmem>>, %arg4: memref<64x384xf32, #tpu.memory_space<vmem>>) attributes {dimension_semantics = [#tpu.dimension_semantics<parallel>], iteration_bounds = array<i64: 1>, scalar_prefetch = 0 : i64, scratch_operands = 0 : i64, tpu.core_type = #tpu.core_type<tc>, window_params = [{transform_indices = @transform_0, window_bounds = array<i64: 64, 128>}, {pipeline_mode = #tpu.pipeline_mode<synchronous>, transform_indices = @transform_1, window_bounds = array<i64: 128, 384>}, {pipeline_mode = #tpu.pipeline_mode<synchronous>, transform_indices = @transform_2, window_bounds = array<i64: 1, 384>}, {transform_indices = @transform_3, window_bounds = array<i64: 64, 384>}]} {
    %c0 = arith.constant 0 : index
    %c0_0 = arith.constant 0 : index
    %0 = vector.load %arg1[%c0, %c0_0] : memref<64x128xbf16, #tpu.memory_space<vmem>>, vector<64x128xbf16>
    %c0_1 = arith.constant 0 : index
    %c0_2 = arith.constant 0 : index
    %1 = vector.load %arg2[%c0_1, %c0_2] : memref<128x384xbf16, #tpu.memory_space<vmem>>, vector<128x384xbf16>
    %cst = arith.constant dense<0.000000e+00> : vector<64x384xf32>
    %2 = tpu.matmul %0, %1, %cst {dimension_numbers = #tpu.dot_dimension_numbers<[1], [0], [0], [1], [0, 0, 1, 1], [], []>} : vector<64x128xbf16>, vector<128x384xbf16>, vector<64x384xf32> -> vector<64x384xf32>
    %c0_3 = arith.constant 0 : index
    %c0_4 = arith.constant 0 : index
    %3 = vector.load %arg3[%c0_3, %c0_4] : memref<1x384xf32, #tpu.memory_space<vmem>>, vector<1x384xf32>
    %4 = vector.broadcast %3 : vector<1x384xf32> to vector<64x384xf32>
    %5 = arith.addf %2, %4 : vector<64x384xf32>
    %c0_5 = arith.constant 0 : index
    %c0_6 = arith.constant 0 : index
    %6 = vector.load %arg4[%c0_5, %c0_6] : memref<64x384xf32, #tpu.memory_space<vmem>>, vector<64x384xf32>
    tpu.vector_store %arg4[%c0_5, %c0_6], %5 {strides = array<i32>} : memref<64x384xf32, #tpu.memory_space<vmem>>, vector<64x384xf32>,
    return
  }
  func.func @transform_0(%arg0: i32) -> (i32, i32) {
    %c0_i32 = arith.constant 0 : i32
    %c0_i32_0 = arith.constant 0 : i32
    return %arg0, %c0_i32 : i32, i32
  }
  func.func @transform_1(%arg0: i32) -> (i32, i32) {
    %c0_i32 = arith.constant 0 : i32
    %c0_i32_0 = arith.constant 0 : i32
    %c0_i32_1 = arith.constant 0 : i32
    return %c0_i32, %c0_i32_0 : i32, i32
  }
  func.func @transform_2(%arg0: i32) -> (i32, i32) {
    %c0_i32 = arith.constant 0 : i32
    %c0_i32_0 = arith.constant 0 : i32
    %c0_i32_1 = arith.constant 0 : i32
    return %c0_i32, %c0_i32_0 : i32, i32
  }
  func.func @transform_3(%arg0: i32) -> (i32, i32) {
    %c0_i32 = arith.constant 0 : i32
    %c0_i32_0 = arith.constant 0 : i32
    return %arg0, %c0_i32 : i32, i32
  }
}

module attributes {stable_mosaic.version = 11 : i64} {
  func.func @_proj_kernel(%arg0: i32, %arg1: memref<64x128xbf16, #tpu.memory_space<vmem>>, %arg2: memref<128x384xbf16, #tpu.memory_space<vmem>>, %arg3: memref<1x384xf32, #tpu.memory_space<vmem>>, %arg4: memref<64x384xf32, #tpu.memory_space<vmem>>) attributes {dimension_semantics = [#tpu.dimension_semantics<parallel>], iteration_bounds = array<i64: 1>, scalar_prefetch = 0 : i64, scratch_operands = 0 : i64, tpu.core_type = #tpu.core_type<tc>, window_params = [{transform_indices = @transform_0, window_bounds = array<i64: 64, 128>}, {pipeline_mode = #tpu.pipeline_mode<synchronous>, transform_indices = @transform_1, window_bounds = array<i64: 128, 384>}, {pipeline_mode = #tpu.pipeline_mode<synchronous>, transform_indices = @transform_2, window_bounds = array<i64: 1, 384>}, {transform_indices = @transform_3, window_bounds = array<i64: 64, 384>}]} {
    %c0 = arith.constant 0 : index
    %c0_0 = arith.constant 0 : index
    %0 = vector.load %arg1[%c0, %c0_0] : memref<64x128xbf16, #tpu.memory_space<vmem>>, vector<64x128xbf16>
    %c0_1 = arith.constant 0 : index
    %c0_2 = arith.constant 0 : index
    %1 = vector.load %arg2[%c0_1, %c0_2] : memref<128x384xbf16, #tpu.memory_space<vmem>>, vector<128x384xbf16>
    %cst = arith.constant dense<0.000000e+00> : vector<64x384xf32>
    %2 = tpu.matmul %0, %1, %cst {dimension_numbers = #tpu.dot_dimension_numbers<[1], [0], [0], [1], [0, 0, 1, 1], [], []>} : vector<64x128xbf16>, vector<128x384xbf16>, vector<64x384xf32> -> vector<64x384xf32>
    %c0_3 = arith.constant 0 : index
    %c0_4 = arith.constant 0 : index
    %3 = vector.load %arg3[%c0_3, %c0_4] : memref<1x384xf32, #tpu.memory_space<vmem>>, vector<1x384xf32>
    %4 = vector.broadcast %3 : vector<1x384xf32> to vector<64x384xf32>
    %5 = arith.addf %2, %4 : vector<64x384xf32>
    %c0_5 = arith.constant 0 : index
    %c0_6 = arith.constant 0 : index
    %6 = vector.load %arg4[%c0_5, %c0_6] : memref<64x384xf32, #tpu.memory_space<vmem>>, vector<64x384xf32>
    tpu.vector_store %arg4[%c0_5, %c0_6], %5 {strides = array<i32>} : memref<64x384xf32, #tpu.memory_space<vmem>>, vector<64x384xf32>,
    return
  }
  func.func @transform_0(%arg0: i32) -> (i32, i32) {
    %c0_i32 = arith.constant 0 : i32
    %c0_i32_0 = arith.constant 0 : i32
    return %arg0, %c0_i32 : i32, i32
  }
  func.func @transform_1(%arg0: i32) -> (i32, i32) {
    %c0_i32 = arith.constant 0 : i32
    %c0_i32_0 = arith.constant 0 : i32
    %c0_i32_1 = arith.constant 0 : i32
    return %c0_i32, %c0_i32_0 : i32, i32
  }
  func.func @transform_2(%arg0: i32) -> (i32, i32) {
    %c0_i32 = arith.constant 0 : i32
    %c0_i32_0 = arith.constant 0 : i32
    %c0_i32_1 = arith.constant 0 : i32
    return %c0_i32, %c0_i32_0 : i32, i32
  }
  func.func @transform_3(%arg0: i32) -> (i32, i32) {
    %c0_i32 = arith.constant 0 : i32
    %c0_i32_0 = arith.constant 0 : i32
    return %arg0, %c0_i32 : i32, i32
  }
}

module attributes {stable_mosaic.version = 11 : i64} {
  func.func @kernel(%arg0: i32, %arg1: i32, %arg2: memref<8x8x384xf32, #tpu.memory_space<vmem>>, %arg3: memref<128x384xbf16, #tpu.memory_space<vmem>>, %arg4: memref<1x128xf32, #tpu.memory_space<vmem>>, %arg5: memref<8x8x128xbf16, #tpu.memory_space<vmem>>, %arg6: memref<8x128xf32, #tpu.memory_space<vmem>>) attributes {dimension_semantics = [#tpu.dimension_semantics<parallel>, #tpu.dimension_semantics<arbitrary>], iteration_bounds = array<i64: 1, 1>, scalar_prefetch = 0 : i64, scratch_operands = 1 : i64, tpu.core_type = #tpu.core_type<tc>, window_params = [{transform_indices = @transform_0, window_bounds = array<i64: 8, 8, 384>}, {pipeline_mode = #tpu.pipeline_mode<synchronous>, transform_indices = @transform_1, window_bounds = array<i64: 128, 384>}, {pipeline_mode = #tpu.pipeline_mode<synchronous>, transform_indices = @transform_2, window_bounds = array<i64: 1, 128>}, {transform_indices = @transform_3, window_bounds = array<i64: 8, 8, 128>}]} {
    %c0_i32 = arith.constant 0 : i32
    %0 = arith.cmpi eq, %arg1, %c0_i32 : i32
    %1 = arith.extui %0 : i1 to i32
    %c0_i32_0 = arith.constant 0 : i32
    %2 = arith.cmpi ne, %1, %c0_i32_0 : i32
    scf.if %2 {
      %cst_72 = arith.constant 0.000000e+00 : f32
      %305 = vector.broadcast %cst_72 : f32 to vector<8x128xf32>
      %c0_73 = arith.constant 0 : index
      %c0_74 = arith.constant 0 : index
      %306 = vector.load %arg6[%c0_73, %c0_74] : memref<8x128xf32, #tpu.memory_space<vmem>>, vector<8x128xf32>
      tpu.vector_store %arg6[%c0_73, %c0_74], %305 {strides = array<i32>} : memref<8x128xf32, #tpu.memory_space<vmem>>, vector<8x128xf32>,
    } else {
    }
    %c0 = arith.constant 0 : index
    %c0_1 = arith.constant 0 : index
    %3 = vector.load %arg3[%c0, %c0_1] : memref<128x384xbf16, #tpu.memory_space<vmem>>, vector<128x384xbf16>
    %c0_2 = arith.constant 0 : index
    %c0_3 = arith.constant 0 : index
    %4 = vector.load %arg4[%c0_2, %c0_3] : memref<1x128xf32, #tpu.memory_space<vmem>>, vector<1x128xf32>
    %5 = vector.shape_cast %4 : vector<1x128xf32> to vector<1x128xf32>
    %6 = vector.broadcast %5 : vector<1x128xf32> to vector<8x128xf32>
    %c0_4 = arith.constant 0 : index
    %c0_5 = arith.constant 0 : index
    %7 = vector.load %arg6[%c0_4, %c0_5] : memref<8x128xf32, #tpu.memory_space<vmem>>, vector<8x128xf32>
    %c0_i32_6 = arith.constant 0 : i32
    %8 = arith.truncf %7 : vector<8x128xf32> to vector<8x128xbf16>
    %cst = arith.constant dense<0.000000e+00> : vector<8x384xf32>
    %9 = tpu.matmul %8, %3, %cst {dimension_numbers = #tpu.dot_dimension_numbers<[1], [0], [0], [1], [0, 0, 1, 1], [], []>} : vector<8x128xbf16>, vector<128x384xbf16>, vector<8x384xf32> -> vector<8x384xf32>
    %10 = arith.index_cast %c0_i32_6 : i32 to index
    %c0_7 = arith.constant 0 : index
    %c0_8 = arith.constant 0 : index
    %11 = vector.load %arg2[%10, %c0_7, %c0_8] : memref<8x8x384xf32, #tpu.memory_space<vmem>>, vector<1x8x384xf32>
    %12 = vector.shape_cast %11 : vector<1x8x384xf32> to vector<8x384xf32>
    %13 = vector.extract_strided_slice %12 {offsets = [0, 0], sizes = [8, 128], strides = [1, 1]} : vector<8x384xf32> to vector<8x128xf32>
    %14 = vector.extract_strided_slice %9 {offsets = [0, 0], sizes = [8, 128], strides = [1, 1]} : vector<8x384xf32> to vector<8x128xf32>
    %15 = arith.addf %13, %14 : vector<8x128xf32>
    %16 = arith.negf %15 : vector<8x128xf32>
    %17 = math.exp %16 : vector<8x128xf32>
    %cst_9 = arith.constant 1.000000e+00 : f32
    %18 = vector.broadcast %cst_9 : f32 to vector<8x128xf32>
    %19 = arith.addf %18, %17 : vector<8x128xf32>
    %20 = arith.divf %18, %19 : vector<8x128xf32>
    %21 = vector.extract_strided_slice %12 {offsets = [0, 128], sizes = [8, 128], strides = [1, 1]} : vector<8x384xf32> to vector<8x128xf32>
    %22 = vector.extract_strided_slice %9 {offsets = [0, 128], sizes = [8, 128], strides = [1, 1]} : vector<8x384xf32> to vector<8x128xf32>
    %23 = arith.addf %21, %22 : vector<8x128xf32>
    %24 = arith.negf %23 : vector<8x128xf32>
    %25 = math.exp %24 : vector<8x128xf32>
    %cst_10 = arith.constant 1.000000e+00 : f32
    %26 = vector.broadcast %cst_10 : f32 to vector<8x128xf32>
    %27 = arith.addf %26, %25 : vector<8x128xf32>
    %28 = arith.divf %26, %27 : vector<8x128xf32>
    %29 = vector.extract_strided_slice %12 {offsets = [0, 256], sizes = [8, 128], strides = [1, 1]} : vector<8x384xf32> to vector<8x128xf32>
    %30 = vector.extract_strided_slice %9 {offsets = [0, 256], sizes = [8, 128], strides = [1, 1]} : vector<8x384xf32> to vector<8x128xf32>
    %31 = arith.addf %30, %6 : vector<8x128xf32>
    %32 = arith.mulf %20, %31 : vector<8x128xf32>
    %33 = arith.addf %29, %32 : vector<8x128xf32>
    %34 = math.tanh %33 : vector<8x128xf32>
    %cst_11 = arith.constant 1.000000e+00 : f32
    %35 = vector.broadcast %cst_11 : f32 to vector<8x128xf32>
    %36 = arith.subf %35, %28 : vector<8x128xf32>
    %37 = arith.mulf %36, %34 : vector<8x128xf32>
    %38 = arith.mulf %28, %7 : vector<8x128xf32>
    %39 = arith.addf %37, %38 : vector<8x128xf32>
    %40 = arith.truncf %39 : vector<8x128xf32> to vector<8x128xbf16>
    %41 = arith.index_cast %c0_i32_6 : i32 to index
    %c0_12 = arith.constant 0 : index
    %c0_13 = arith.constant 0 : index
    %42 = vector.load %arg5[%41, %c0_12, %c0_13] : memref<8x8x128xbf16, #tpu.memory_space<vmem>>, vector<1x8x128xbf16>
    %43 = vector.shape_cast %42 : vector<1x8x128xbf16> to vector<8x128xbf16>
    %44 = vector.shape_cast %40 : vector<8x128xbf16> to vector<1x8x128xbf16>
    tpu.vector_store %arg5[%41, %c0_12, %c0_13], %44 {strides = array<i32>} : memref<8x8x128xbf16, #tpu.memory_space<vmem>>, vector<1x8x128xbf16>,
    %c1_i32 = arith.constant 1 : i32
    %45 = arith.truncf %39 : vector<8x128xf32> to vector<8x128xbf16>
    %cst_14 = arith.constant dense<0.000000e+00> : vector<8x384xf32>
    %46 = tpu.matmul %45, %3, %cst_14 {dimension_numbers = #tpu.dot_dimension_numbers<[1], [0], [0], [1], [0, 0, 1, 1], [], []>} : vector<8x128xbf16>, vector<128x384xbf16>, vector<8x384xf32> -> vector<8x384xf32>
    %47 = arith.index_cast %c1_i32 : i32 to index
    %c0_15 = arith.constant 0 : index
    %c0_16 = arith.constant 0 : index
    %48 = vector.load %arg2[%47, %c0_15, %c0_16] : memref<8x8x384xf32, #tpu.memory_space<vmem>>, vector<1x8x384xf32>
    %49 = vector.shape_cast %48 : vector<1x8x384xf32> to vector<8x384xf32>
    %50 = vector.extract_strided_slice %49 {offsets = [0, 0], sizes = [8, 128], strides = [1, 1]} : vector<8x384xf32> to vector<8x128xf32>
    %51 = vector.extract_strided_slice %46 {offsets = [0, 0], sizes = [8, 128], strides = [1, 1]} : vector<8x384xf32> to vector<8x128xf32>
    %52 = arith.addf %50, %51 : vector<8x128xf32>
    %53 = arith.negf %52 : vector<8x128xf32>
    %54 = math.exp %53 : vector<8x128xf32>
    %cst_17 = arith.constant 1.000000e+00 : f32
    %55 = vector.broadcast %cst_17 : f32 to vector<8x128xf32>
    %56 = arith.addf %55, %54 : vector<8x128xf32>
    %57 = arith.divf %55, %56 : vector<8x128xf32>
    %58 = vector.extract_strided_slice %49 {offsets = [0, 128], sizes = [8, 128], strides = [1, 1]} : vector<8x384xf32> to vector<8x128xf32>
    %59 = vector.extract_strided_slice %46 {offsets = [0, 128], sizes = [8, 128], strides = [1, 1]} : vector<8x384xf32> to vector<8x128xf32>
    %60 = arith.addf %58, %59 : vector<8x128xf32>
    %61 = arith.negf %60 : vector<8x128xf32>
    %62 = math.exp %61 : vector<8x128xf32>
    %cst_18 = arith.constant 1.000000e+00 : f32
    %63 = vector.broadcast %cst_18 : f32 to vector<8x128xf32>
    %64 = arith.addf %63, %62 : vector<8x128xf32>
    %65 = arith.divf %63, %64 : vector<8x128xf32>
    %66 = vector.extract_strided_slice %49 {offsets = [0, 256], sizes = [8, 128], strides = [1, 1]} : vector<8x384xf32> to vector<8x128xf32>
    %67 = vector.extract_strided_slice %46 {offsets = [0, 256], sizes = [8, 128], strides = [1, 1]} : vector<8x384xf32> to vector<8x128xf32>
    %68 = arith.addf %67, %6 : vector<8x128xf32>
    %69 = arith.mulf %57, %68 : vector<8x128xf32>
    %70 = arith.addf %66, %69 : vector<8x128xf32>
    %71 = math.tanh %70 : vector<8x128xf32>
    %cst_19 = arith.constant 1.000000e+00 : f32
    %72 = vector.broadcast %cst_19 : f32 to vector<8x128xf32>
    %73 = arith.subf %72, %65 : vector<8x128xf32>
    %74 = arith.mulf %73, %71 : vector<8x128xf32>
    %75 = arith.mulf %65, %39 : vector<8x128xf32>
    %76 = arith.addf %74, %75 : vector<8x128xf32>
    %77 = arith.truncf %76 : vector<8x128xf32> to vector<8x128xbf16>
    %78 = arith.index_cast %c1_i32 : i32 to index
    %c0_20 = arith.constant 0 : index
    %c0_21 = arith.constant 0 : index
    %79 = vector.load %arg5[%78, %c0_20, %c0_21] : memref<8x8x128xbf16, #tpu.memory_space<vmem>>, vector<1x8x128xbf16>
    %80 = vector.shape_cast %79 : vector<1x8x128xbf16> to vector<8x128xbf16>
    %81 = vector.shape_cast %77 : vector<8x128xbf16> to vector<1x8x128xbf16>
    tpu.vector_store %arg5[%78, %c0_20, %c0_21], %81 {strides = array<i32>} : memref<8x8x128xbf16, #tpu.memory_space<vmem>>, vector<1x8x128xbf16>,
    %c2_i32 = arith.constant 2 : i32
    %82 = arith.truncf %76 : vector<8x128xf32> to vector<8x128xbf16>
    %cst_22 = arith.constant dense<0.000000e+00> : vector<8x384xf32>
    %83 = tpu.matmul %82, %3, %cst_22 {dimension_numbers = #tpu.dot_dimension_numbers<[1], [0], [0], [1], [0, 0, 1, 1], [], []>} : vector<8x128xbf16>, vector<128x384xbf16>, vector<8x384xf32> -> vector<8x384xf32>
    %84 = arith.index_cast %c2_i32 : i32 to index
    %c0_23 = arith.constant 0 : index
    %c0_24 = arith.constant 0 : index
    %85 = vector.load %arg2[%84, %c0_23, %c0_24] : memref<8x8x384xf32, #tpu.memory_space<vmem>>, vector<1x8x384xf32>
    %86 = vector.shape_cast %85 : vector<1x8x384xf32> to vector<8x384xf32>
    %87 = vector.extract_strided_slice %86 {offsets = [0, 0], sizes = [8, 128], strides = [1, 1]} : vector<8x384xf32> to vector<8x128xf32>
    %88 = vector.extract_strided_slice %83 {offsets = [0, 0], sizes = [8, 128], strides = [1, 1]} : vector<8x384xf32> to vector<8x128xf32>
    %89 = arith.addf %87, %88 : vector<8x128xf32>
    %90 = arith.negf %89 : vector<8x128xf32>
    %91 = math.exp %90 : vector<8x128xf32>
    %cst_25 = arith.constant 1.000000e+00 : f32
    %92 = vector.broadcast %cst_25 : f32 to vector<8x128xf32>
    %93 = arith.addf %92, %91 : vector<8x128xf32>
    %94 = arith.divf %92, %93 : vector<8x128xf32>
    %95 = vector.extract_strided_slice %86 {offsets = [0, 128], sizes = [8, 128], strides = [1, 1]} : vector<8x384xf32> to vector<8x128xf32>
    %96 = vector.extract_strided_slice %83 {offsets = [0, 128], sizes = [8, 128], strides = [1, 1]} : vector<8x384xf32> to vector<8x128xf32>
    %97 = arith.addf %95, %96 : vector<8x128xf32>
    %98 = arith.negf %97 : vector<8x128xf32>
    %99 = math.exp %98 : vector<8x128xf32>
    %cst_26 = arith.constant 1.000000e+00 : f32
    %100 = vector.broadcast %cst_26 : f32 to vector<8x128xf32>
    %101 = arith.addf %100, %99 : vector<8x128xf32>
    %102 = arith.divf %100, %101 : vector<8x128xf32>
    %103 = vector.extract_strided_slice %86 {offsets = [0, 256], sizes = [8, 128], strides = [1, 1]} : vector<8x384xf32> to vector<8x128xf32>
    %104 = vector.extract_strided_slice %83 {offsets = [0, 256], sizes = [8, 128], strides = [1, 1]} : vector<8x384xf32> to vector<8x128xf32>
    %105 = arith.addf %104, %6 : vector<8x128xf32>
    %106 = arith.mulf %94, %105 : vector<8x128xf32>
    %107 = arith.addf %103, %106 : vector<8x128xf32>
    %108 = math.tanh %107 : vector<8x128xf32>
    %cst_27 = arith.constant 1.000000e+00 : f32
    %109 = vector.broadcast %cst_27 : f32 to vector<8x128xf32>
    %110 = arith.subf %109, %102 : vector<8x128xf32>
    %111 = arith.mulf %110, %108 : vector<8x128xf32>
    %112 = arith.mulf %102, %76 : vector<8x128xf32>
    %113 = arith.addf %111, %112 : vector<8x128xf32>
    %114 = arith.truncf %113 : vector<8x128xf32> to vector<8x128xbf16>
    %115 = arith.index_cast %c2_i32 : i32 to index
    %c0_28 = arith.constant 0 : index
    %c0_29 = arith.constant 0 : index
    %116 = vector.load %arg5[%115, %c0_28, %c0_29] : memref<8x8x128xbf16, #tpu.memory_space<vmem>>, vector<1x8x128xbf16>
    %117 = vector.shape_cast %116 : vector<1x8x128xbf16> to vector<8x128xbf16>
    %118 = vector.shape_cast %114 : vector<8x128xbf16> to vector<1x8x128xbf16>
    tpu.vector_store %arg5[%115, %c0_28, %c0_29], %118 {strides = array<i32>} : memref<8x8x128xbf16, #tpu.memory_space<vmem>>, vector<1x8x128xbf16>,
    %c3_i32 = arith.constant 3 : i32
    %119 = arith.truncf %113 : vector<8x128xf32> to vector<8x128xbf16>
    %cst_30 = arith.constant dense<0.000000e+00> : vector<8x384xf32>
    %120 = tpu.matmul %119, %3, %cst_30 {dimension_numbers = #tpu.dot_dimension_numbers<[1], [0], [0], [1], [0, 0, 1, 1], [], []>} : vector<8x128xbf16>, vector<128x384xbf16>, vector<8x384xf32> -> vector<8x384xf32>
    %121 = arith.index_cast %c3_i32 : i32 to index
    %c0_31 = arith.constant 0 : index
    %c0_32 = arith.constant 0 : index
    %122 = vector.load %arg2[%121, %c0_31, %c0_32] : memref<8x8x384xf32, #tpu.memory_space<vmem>>, vector<1x8x384xf32>
    %123 = vector.shape_cast %122 : vector<1x8x384xf32> to vector<8x384xf32>
    %124 = vector.extract_strided_slice %123 {offsets = [0, 0], sizes = [8, 128], strides = [1, 1]} : vector<8x384xf32> to vector<8x128xf32>
    %125 = vector.extract_strided_slice %120 {offsets = [0, 0], sizes = [8, 128], strides = [1, 1]} : vector<8x384xf32> to vector<8x128xf32>
    %126 = arith.addf %124, %125 : vector<8x128xf32>
    %127 = arith.negf %126 : vector<8x128xf32>
    %128 = math.exp %127 : vector<8x128xf32>
    %cst_33 = arith.constant 1.000000e+00 : f32
    %129 = vector.broadcast %cst_33 : f32 to vector<8x128xf32>
    %130 = arith.addf %129, %128 : vector<8x128xf32>
    %131 = arith.divf %129, %130 : vector<8x128xf32>
    %132 = vector.extract_strided_slice %123 {offsets = [0, 128], sizes = [8, 128], strides = [1, 1]} : vector<8x384xf32> to vector<8x128xf32>
    %133 = vector.extract_strided_slice %120 {offsets = [0, 128], sizes = [8, 128], strides = [1, 1]} : vector<8x384xf32> to vector<8x128xf32>
    %134 = arith.addf %132, %133 : vector<8x128xf32>
    %135 = arith.negf %134 : vector<8x128xf32>
    %136 = math.exp %135 : vector<8x128xf32>
    %cst_34 = arith.constant 1.000000e+00 : f32
    %137 = vector.broadcast %cst_34 : f32 to vector<8x128xf32>
    %138 = arith.addf %137, %136 : vector<8x128xf32>
    %139 = arith.divf %137, %138 : vector<8x128xf32>
    %140 = vector.extract_strided_slice %123 {offsets = [0, 256], sizes = [8, 128], strides = [1, 1]} : vector<8x384xf32> to vector<8x128xf32>
    %141 = vector.extract_strided_slice %120 {offsets = [0, 256], sizes = [8, 128], strides = [1, 1]} : vector<8x384xf32> to vector<8x128xf32>
    %142 = arith.addf %141, %6 : vector<8x128xf32>
    %143 = arith.mulf %131, %142 : vector<8x128xf32>
    %144 = arith.addf %140, %143 : vector<8x128xf32>
    %145 = math.tanh %144 : vector<8x128xf32>
    %cst_35 = arith.constant 1.000000e+00 : f32
    %146 = vector.broadcast %cst_35 : f32 to vector<8x128xf32>
    %147 = arith.subf %146, %139 : vector<8x128xf32>
    %148 = arith.mulf %147, %145 : vector<8x128xf32>
    %149 = arith.mulf %139, %113 : vector<8x128xf32>
    %150 = arith.addf %148, %149 : vector<8x128xf32>
    %151 = arith.truncf %150 : vector<8x128xf32> to vector<8x128xbf16>
    %152 = arith.index_cast %c3_i32 : i32 to index
    %c0_36 = arith.constant 0 : index
    %c0_37 = arith.constant 0 : index
    %153 = vector.load %arg5[%152, %c0_36, %c0_37] : memref<8x8x128xbf16, #tpu.memory_space<vmem>>, vector<1x8x128xbf16>
    %154 = vector.shape_cast %153 : vector<1x8x128xbf16> to vector<8x128xbf16>
    %155 = vector.shape_cast %151 : vector<8x128xbf16> to vector<1x8x128xbf16>
    tpu.vector_store %arg5[%152, %c0_36, %c0_37], %155 {strides = array<i32>} : memref<8x8x128xbf16, #tpu.memory_space<vmem>>, vector<1x8x128xbf16>,
    %c4_i32 = arith.constant 4 : i32
    %156 = arith.truncf %150 : vector<8x128xf32> to vector<8x128xbf16>
    %cst_38 = arith.constant dense<0.000000e+00> : vector<8x384xf32>
    %157 = tpu.matmul %156, %3, %cst_38 {dimension_numbers = #tpu.dot_dimension_numbers<[1], [0], [0], [1], [0, 0, 1, 1], [], []>} : vector<8x128xbf16>, vector<128x384xbf16>, vector<8x384xf32> -> vector<8x384xf32>
    %158 = arith.index_cast %c4_i32 : i32 to index
    %c0_39 = arith.constant 0 : index
    %c0_40 = arith.constant 0 : index
    %159 = vector.load %arg2[%158, %c0_39, %c0_40] : memref<8x8x384xf32, #tpu.memory_space<vmem>>, vector<1x8x384xf32>
    %160 = vector.shape_cast %159 : vector<1x8x384xf32> to vector<8x384xf32>
    %161 = vector.extract_strided_slice %160 {offsets = [0, 0], sizes = [8, 128], strides = [1, 1]} : vector<8x384xf32> to vector<8x128xf32>
    %162 = vector.extract_strided_slice %157 {offsets = [0, 0], sizes = [8, 128], strides = [1, 1]} : vector<8x384xf32> to vector<8x128xf32>
    %163 = arith.addf %161, %162 : vector<8x128xf32>
    %164 = arith.negf %163 : vector<8x128xf32>
    %165 = math.exp %164 : vector<8x128xf32>
    %cst_41 = arith.constant 1.000000e+00 : f32
    %166 = vector.broadcast %cst_41 : f32 to vector<8x128xf32>
    %167 = arith.addf %166, %165 : vector<8x128xf32>
    %168 = arith.divf %166, %167 : vector<8x128xf32>
    %169 = vector.extract_strided_slice %160 {offsets = [0, 128], sizes = [8, 128], strides = [1, 1]} : vector<8x384xf32> to vector<8x128xf32>
    %170 = vector.extract_strided_slice %157 {offsets = [0, 128], sizes = [8, 128], strides = [1, 1]} : vector<8x384xf32> to vector<8x128xf32>
    %171 = arith.addf %169, %170 : vector<8x128xf32>
    %172 = arith.negf %171 : vector<8x128xf32>
    %173 = math.exp %172 : vector<8x128xf32>
    %cst_42 = arith.constant 1.000000e+00 : f32
    %174 = vector.broadcast %cst_42 : f32 to vector<8x128xf32>
    %175 = arith.addf %174, %173 : vector<8x128xf32>
    %176 = arith.divf %174, %175 : vector<8x128xf32>
    %177 = vector.extract_strided_slice %160 {offsets = [0, 256], sizes = [8, 128], strides = [1, 1]} : vector<8x384xf32> to vector<8x128xf32>
    %178 = vector.extract_strided_slice %157 {offsets = [0, 256], sizes = [8, 128], strides = [1, 1]} : vector<8x384xf32> to vector<8x128xf32>
    %179 = arith.addf %178, %6 : vector<8x128xf32>
    %180 = arith.mulf %168, %179 : vector<8x128xf32>
    %181 = arith.addf %177, %180 : vector<8x128xf32>
    %182 = math.tanh %181 : vector<8x128xf32>
    %cst_43 = arith.constant 1.000000e+00 : f32
    %183 = vector.broadcast %cst_43 : f32 to vector<8x128xf32>
    %184 = arith.subf %183, %176 : vector<8x128xf32>
    %185 = arith.mulf %184, %182 : vector<8x128xf32>
    %186 = arith.mulf %176, %150 : vector<8x128xf32>
    %187 = arith.addf %185, %186 : vector<8x128xf32>
    %188 = arith.truncf %187 : vector<8x128xf32> to vector<8x128xbf16>
    %189 = arith.index_cast %c4_i32 : i32 to index
    %c0_44 = arith.constant 0 : index
    %c0_45 = arith.constant 0 : index
    %190 = vector.load %arg5[%189, %c0_44, %c0_45] : memref<8x8x128xbf16, #tpu.memory_space<vmem>>, vector<1x8x128xbf16>
    %191 = vector.shape_cast %190 : vector<1x8x128xbf16> to vector<8x128xbf16>
    %192 = vector.shape_cast %188 : vector<8x128xbf16> to vector<1x8x128xbf16>
    tpu.vector_store %arg5[%189, %c0_44, %c0_45], %192 {strides = array<i32>} : memref<8x8x128xbf16, #tpu.memory_space<vmem>>, vector<1x8x128xbf16>,
    %c5_i32 = arith.constant 5 : i32
    %193 = arith.truncf %187 : vector<8x128xf32> to vector<8x128xbf16>
    %cst_46 = arith.constant dense<0.000000e+00> : vector<8x384xf32>
    %194 = tpu.matmul %193, %3, %cst_46 {dimension_numbers = #tpu.dot_dimension_numbers<[1], [0], [0], [1], [0, 0, 1, 1], [], []>} : vector<8x128xbf16>, vector<128x384xbf16>, vector<8x384xf32> -> vector<8x384xf32>
    %195 = arith.index_cast %c5_i32 : i32 to index
    %c0_47 = arith.constant 0 : index
    %c0_48 = arith.constant 0 : index
    %196 = vector.load %arg2[%195, %c0_47, %c0_48] : memref<8x8x384xf32, #tpu.memory_space<vmem>>, vector<1x8x384xf32>
    %197 = vector.shape_cast %196 : vector<1x8x384xf32> to vector<8x384xf32>
    %198 = vector.extract_strided_slice %197 {offsets = [0, 0], sizes = [8, 128], strides = [1, 1]} : vector<8x384xf32> to vector<8x128xf32>
    %199 = vector.extract_strided_slice %194 {offsets = [0, 0], sizes = [8, 128], strides = [1, 1]} : vector<8x384xf32> to vector<8x128xf32>
    %200 = arith.addf %198, %199 : vector<8x128xf32>
    %201 = arith.negf %200 : vector<8x128xf32>
    %202 = math.exp %201 : vector<8x128xf32>
    %cst_49 = arith.constant 1.000000e+00 : f32
    %203 = vector.broadcast %cst_49 : f32 to vector<8x128xf32>
    %204 = arith.addf %203, %202 : vector<8x128xf32>
    %205 = arith.divf %203, %204 : vector<8x128xf32>
    %206 = vector.extract_strided_slice %197 {offsets = [0, 128], sizes = [8, 128], strides = [1, 1]} : vector<8x384xf32> to vector<8x128xf32>
    %207 = vector.extract_strided_slice %194 {offsets = [0, 128], sizes = [8, 128], strides = [1, 1]} : vector<8x384xf32> to vector<8x128xf32>
    %208 = arith.addf %206, %207 : vector<8x128xf32>
    %209 = arith.negf %208 : vector<8x128xf32>
    %210 = math.exp %209 : vector<8x128xf32>
    %cst_50 = arith.constant 1.000000e+00 : f32
    %211 = vector.broadcast %cst_50 : f32 to vector<8x128xf32>
    %212 = arith.addf %211, %210 : vector<8x128xf32>
    %213 = arith.divf %211, %212 : vector<8x128xf32>
    %214 = vector.extract_strided_slice %197 {offsets = [0, 256], sizes = [8, 128], strides = [1, 1]} : vector<8x384xf32> to vector<8x128xf32>
    %215 = vector.extract_strided_slice %194 {offsets = [0, 256], sizes = [8, 128], strides = [1, 1]} : vector<8x384xf32> to vector<8x128xf32>
    %216 = arith.addf %215, %6 : vector<8x128xf32>
    %217 = arith.mulf %205, %216 : vector<8x128xf32>
    %218 = arith.addf %214, %217 : vector<8x128xf32>
    %219 = math.tanh %218 : vector<8x128xf32>
    %cst_51 = arith.constant 1.000000e+00 : f32
    %220 = vector.broadcast %cst_51 : f32 to vector<8x128xf32>
    %221 = arith.subf %220, %213 : vector<8x128xf32>
    %222 = arith.mulf %221, %219 : vector<8x128xf32>
    %223 = arith.mulf %213, %187 : vector<8x128xf32>
    %224 = arith.addf %222, %223 : vector<8x128xf32>
    %225 = arith.truncf %224 : vector<8x128xf32> to vector<8x128xbf16>
    %226 = arith.index_cast %c5_i32 : i32 to index
    %c0_52 = arith.constant 0 : index
    %c0_53 = arith.constant 0 : index
    %227 = vector.load %arg5[%226, %c0_52, %c0_53] : memref<8x8x128xbf16, #tpu.memory_space<vmem>>, vector<1x8x128xbf16>
    %228 = vector.shape_cast %227 : vector<1x8x128xbf16> to vector<8x128xbf16>
    %229 = vector.shape_cast %225 : vector<8x128xbf16> to vector<1x8x128xbf16>
    tpu.vector_store %arg5[%226, %c0_52, %c0_53], %229 {strides = array<i32>} : memref<8x8x128xbf16, #tpu.memory_space<vmem>>, vector<1x8x128xbf16>,
    %c6_i32 = arith.constant 6 : i32
    %230 = arith.truncf %224 : vector<8x128xf32> to vector<8x128xbf16>
    %cst_54 = arith.constant dense<0.000000e+00> : vector<8x384xf32>
    %231 = tpu.matmul %230, %3, %cst_54 {dimension_numbers = #tpu.dot_dimension_numbers<[1], [0], [0], [1], [0, 0, 1, 1], [], []>} : vector<8x128xbf16>, vector<128x384xbf16>, vector<8x384xf32> -> vector<8x384xf32>
    %232 = arith.index_cast %c6_i32 : i32 to index
    %c0_55 = arith.constant 0 : index
    %c0_56 = arith.constant 0 : index
    %233 = vector.load %arg2[%232, %c0_55, %c0_56] : memref<8x8x384xf32, #tpu.memory_space<vmem>>, vector<1x8x384xf32>
    %234 = vector.shape_cast %233 : vector<1x8x384xf32> to vector<8x384xf32>
    %235 = vector.extract_strided_slice %234 {offsets = [0, 0], sizes = [8, 128], strides = [1, 1]} : vector<8x384xf32> to vector<8x128xf32>
    %236 = vector.extract_strided_slice %231 {offsets = [0, 0], sizes = [8, 128], strides = [1, 1]} : vector<8x384xf32> to vector<8x128xf32>
    %237 = arith.addf %235, %236 : vector<8x128xf32>
    %238 = arith.negf %237 : vector<8x128xf32>
    %239 = math.exp %238 : vector<8x128xf32>
    %cst_57 = arith.constant 1.000000e+00 : f32
    %240 = vector.broadcast %cst_57 : f32 to vector<8x128xf32>
    %241 = arith.addf %240, %239 : vector<8x128xf32>
    %242 = arith.divf %240, %241 : vector<8x128xf32>
    %243 = vector.extract_strided_slice %234 {offsets = [0, 128], sizes = [8, 128], strides = [1, 1]} : vector<8x384xf32> to vector<8x128xf32>
    %244 = vector.extract_strided_slice %231 {offsets = [0, 128], sizes = [8, 128], strides = [1, 1]} : vector<8x384xf32> to vector<8x128xf32>
    %245 = arith.addf %243, %244 : vector<8x128xf32>
    %246 = arith.negf %245 : vector<8x128xf32>
    %247 = math.exp %246 : vector<8x128xf32>
    %cst_58 = arith.constant 1.000000e+00 : f32
    %248 = vector.broadcast %cst_58 : f32 to vector<8x128xf32>
    %249 = arith.addf %248, %247 : vector<8x128xf32>
    %250 = arith.divf %248, %249 : vector<8x128xf32>
    %251 = vector.extract_strided_slice %234 {offsets = [0, 256], sizes = [8, 128], strides = [1, 1]} : vector<8x384xf32> to vector<8x128xf32>
    %252 = vector.extract_strided_slice %231 {offsets = [0, 256], sizes = [8, 128], strides = [1, 1]} : vector<8x384xf32> to vector<8x128xf32>
    %253 = arith.addf %252, %6 : vector<8x128xf32>
    %254 = arith.mulf %242, %253 : vector<8x128xf32>
    %255 = arith.addf %251, %254 : vector<8x128xf32>
    %256 = math.tanh %255 : vector<8x128xf32>
    %cst_59 = arith.constant 1.000000e+00 : f32
    %257 = vector.broadcast %cst_59 : f32 to vector<8x128xf32>
    %258 = arith.subf %257, %250 : vector<8x128xf32>
    %259 = arith.mulf %258, %256 : vector<8x128xf32>
    %260 = arith.mulf %250, %224 : vector<8x128xf32>
    %261 = arith.addf %259, %260 : vector<8x128xf32>
    %262 = arith.truncf %261 : vector<8x128xf32> to vector<8x128xbf16>
    %263 = arith.index_cast %c6_i32 : i32 to index
    %c0_60 = arith.constant 0 : index
    %c0_61 = arith.constant 0 : index
    %264 = vector.load %arg5[%263, %c0_60, %c0_61] : memref<8x8x128xbf16, #tpu.memory_space<vmem>>, vector<1x8x128xbf16>
    %265 = vector.shape_cast %264 : vector<1x8x128xbf16> to vector<8x128xbf16>
    %266 = vector.shape_cast %262 : vector<8x128xbf16> to vector<1x8x128xbf16>
    tpu.vector_store %arg5[%263, %c0_60, %c0_61], %266 {strides = array<i32>} : memref<8x8x128xbf16, #tpu.memory_space<vmem>>, vector<1x8x128xbf16>,
    %c7_i32 = arith.constant 7 : i32
    %267 = arith.truncf %261 : vector<8x128xf32> to vector<8x128xbf16>
    %cst_62 = arith.constant dense<0.000000e+00> : vector<8x384xf32>
    %268 = tpu.matmul %267, %3, %cst_62 {dimension_numbers = #tpu.dot_dimension_numbers<[1], [0], [0], [1], [0, 0, 1, 1], [], []>} : vector<8x128xbf16>, vector<128x384xbf16>, vector<8x384xf32> -> vector<8x384xf32>
    %269 = arith.index_cast %c7_i32 : i32 to index
    %c0_63 = arith.constant 0 : index
    %c0_64 = arith.constant 0 : index
    %270 = vector.load %arg2[%269, %c0_63, %c0_64] : memref<8x8x384xf32, #tpu.memory_space<vmem>>, vector<1x8x384xf32>
    %271 = vector.shape_cast %270 : vector<1x8x384xf32> to vector<8x384xf32>
    %272 = vector.extract_strided_slice %271 {offsets = [0, 0], sizes = [8, 128], strides = [1, 1]} : vector<8x384xf32> to vector<8x128xf32>
    %273 = vector.extract_strided_slice %268 {offsets = [0, 0], sizes = [8, 128], strides = [1, 1]} : vector<8x384xf32> to vector<8x128xf32>
    %274 = arith.addf %272, %273 : vector<8x128xf32>
    %275 = arith.negf %274 : vector<8x128xf32>
    %276 = math.exp %275 : vector<8x128xf32>
    %cst_65 = arith.constant 1.000000e+00 : f32
    %277 = vector.broadcast %cst_65 : f32 to vector<8x128xf32>
    %278 = arith.addf %277, %276 : vector<8x128xf32>
    %279 = arith.divf %277, %278 : vector<8x128xf32>
    %280 = vector.extract_strided_slice %271 {offsets = [0, 128], sizes = [8, 128], strides = [1, 1]} : vector<8x384xf32> to vector<8x128xf32>
    %281 = vector.extract_strided_slice %268 {offsets = [0, 128], sizes = [8, 128], strides = [1, 1]} : vector<8x384xf32> to vector<8x128xf32>
    %282 = arith.addf %280, %281 : vector<8x128xf32>
    %283 = arith.negf %282 : vector<8x128xf32>
    %284 = math.exp %283 : vector<8x128xf32>
    %cst_66 = arith.constant 1.000000e+00 : f32
    %285 = vector.broadcast %cst_66 : f32 to vector<8x128xf32>
    %286 = arith.addf %285, %284 : vector<8x128xf32>
    %287 = arith.divf %285, %286 : vector<8x128xf32>
    %288 = vector.extract_strided_slice %271 {offsets = [0, 256], sizes = [8, 128], strides = [1, 1]} : vector<8x384xf32> to vector<8x128xf32>
    %289 = vector.extract_strided_slice %268 {offsets = [0, 256], sizes = [8, 128], strides = [1, 1]} : vector<8x384xf32> to vector<8x128xf32>
    %290 = arith.addf %289, %6 : vector<8x128xf32>
    %291 = arith.mulf %279, %290 : vector<8x128xf32>
    %292 = arith.addf %288, %291 : vector<8x128xf32>
    %293 = math.tanh %292 : vector<8x128xf32>
    %cst_67 = arith.constant 1.000000e+00 : f32
    %294 = vector.broadcast %cst_67 : f32 to vector<8x128xf32>
    %295 = arith.subf %294, %287 : vector<8x128xf32>
    %296 = arith.mulf %295, %293 : vector<8x128xf32>
    %297 = arith.mulf %287, %261 : vector<8x128xf32>
    %298 = arith.addf %296, %297 : vector<8x128xf32>
    %299 = arith.truncf %298 : vector<8x128xf32> to vector<8x128xbf16>
    %300 = arith.index_cast %c7_i32 : i32 to index
    %c0_68 = arith.constant 0 : index
    %c0_69 = arith.constant 0 : index
    %301 = vector.load %arg5[%300, %c0_68, %c0_69] : memref<8x8x128xbf16, #tpu.memory_space<vmem>>, vector<1x8x128xbf16>
    %302 = vector.shape_cast %301 : vector<1x8x128xbf16> to vector<8x128xbf16>
    %303 = vector.shape_cast %299 : vector<8x128xbf16> to vector<1x8x128xbf16>
    tpu.vector_store %arg5[%300, %c0_68, %c0_69], %303 {strides = array<i32>} : memref<8x8x128xbf16, #tpu.memory_space<vmem>>, vector<1x8x128xbf16>,
    %c8_i32 = arith.constant 8 : i32
    %c0_70 = arith.constant 0 : index
    %c0_71 = arith.constant 0 : index
    %304 = vector.load %arg6[%c0_70, %c0_71] : memref<8x128xf32, #tpu.memory_space<vmem>>, vector<8x128xf32>
    tpu.vector_store %arg6[%c0_70, %c0_71], %298 {strides = array<i32>} : memref<8x128xf32, #tpu.memory_space<vmem>>, vector<8x128xf32>,
    return
  }
  func.func @transform_0(%arg0: i32, %arg1: i32) -> (i32, i32, i32) {
    %c0_i32 = arith.constant 0 : i32
    %c0_i32_0 = arith.constant 0 : i32
    return %arg1, %arg0, %c0_i32 : i32, i32, i32
  }
  func.func @transform_1(%arg0: i32, %arg1: i32) -> (i32, i32) {
    %c0_i32 = arith.constant 0 : i32
    %c0_i32_0 = arith.constant 0 : i32
    %c0_i32_1 = arith.constant 0 : i32
    return %c0_i32, %c0_i32_0 : i32, i32
  }
  func.func @transform_2(%arg0: i32, %arg1: i32) -> (i32, i32) {
    %c0_i32 = arith.constant 0 : i32
    %c0_i32_0 = arith.constant 0 : i32
    %c0_i32_1 = arith.constant 0 : i32
    return %c0_i32, %c0_i32_0 : i32, i32
  }
  func.func @transform_3(%arg0: i32, %arg1: i32) -> (i32, i32, i32) {
    %c0_i32 = arith.constant 0 : i32
    %c0_i32_0 = arith.constant 0 : i32
    return %arg1, %arg0, %c0_i32 : i32, i32, i32
  }
}

module attributes {stable_mosaic.version = 11 : i64} {
  func.func @kernel(%arg0: i32, %arg1: i32, %arg2: memref<8x8x384xf32, #tpu.memory_space<vmem>>, %arg3: memref<128x384xbf16, #tpu.memory_space<vmem>>, %arg4: memref<1x128xf32, #tpu.memory_space<vmem>>, %arg5: memref<128x128xf32, #tpu.memory_space<vmem>>, %arg6: memref<1x128xf32, #tpu.memory_space<vmem>>, %arg7: memref<8x128xf32, #tpu.memory_space<vmem>>, %arg8: memref<8x128xf32, #tpu.memory_space<vmem>>) attributes {dimension_semantics = [#tpu.dimension_semantics<parallel>, #tpu.dimension_semantics<arbitrary>], iteration_bounds = array<i64: 1, 1>, scalar_prefetch = 0 : i64, scratch_operands = 1 : i64, tpu.core_type = #tpu.core_type<tc>, window_params = [{transform_indices = @transform_0, window_bounds = array<i64: 8, 8, 384>}, {pipeline_mode = #tpu.pipeline_mode<synchronous>, transform_indices = @transform_1, window_bounds = array<i64: 128, 384>}, {pipeline_mode = #tpu.pipeline_mode<synchronous>, transform_indices = @transform_2, window_bounds = array<i64: 1, 128>}, {pipeline_mode = #tpu.pipeline_mode<synchronous>, transform_indices = @transform_3, window_bounds = array<i64: 128, 128>}, {pipeline_mode = #tpu.pipeline_mode<synchronous>, transform_indices = @transform_4, window_bounds = array<i64: 1, 128>}, {transform_indices = @transform_5, window_bounds = array<i64: 8, 128>}]} {
    %c0_i32 = arith.constant 0 : i32
    %0 = arith.cmpi eq, %arg1, %c0_i32 : i32
    %1 = arith.extui %0 : i1 to i32
    %c0_i32_0 = arith.constant 0 : i32
    %2 = arith.cmpi ne, %1, %c0_i32_0 : i32
    scf.if %2 {
      %cst_58 = arith.constant 0.000000e+00 : f32
      %268 = vector.broadcast %cst_58 : f32 to vector<8x128xf32>
      %c0_59 = arith.constant 0 : index
      %c0_60 = arith.constant 0 : index
      %269 = vector.load %arg8[%c0_59, %c0_60] : memref<8x128xf32, #tpu.memory_space<vmem>>, vector<8x128xf32>
      tpu.vector_store %arg8[%c0_59, %c0_60], %268 {strides = array<i32>} : memref<8x128xf32, #tpu.memory_space<vmem>>, vector<8x128xf32>,
    } else {
    }
    %c0 = arith.constant 0 : index
    %c0_1 = arith.constant 0 : index
    %3 = vector.load %arg3[%c0, %c0_1] : memref<128x384xbf16, #tpu.memory_space<vmem>>, vector<128x384xbf16>
    %c0_2 = arith.constant 0 : index
    %c0_3 = arith.constant 0 : index
    %4 = vector.load %arg4[%c0_2, %c0_3] : memref<1x128xf32, #tpu.memory_space<vmem>>, vector<1x128xf32>
    %5 = vector.shape_cast %4 : vector<1x128xf32> to vector<1x128xf32>
    %6 = vector.broadcast %5 : vector<1x128xf32> to vector<8x128xf32>
    %c0_4 = arith.constant 0 : index
    %c0_5 = arith.constant 0 : index
    %7 = vector.load %arg8[%c0_4, %c0_5] : memref<8x128xf32, #tpu.memory_space<vmem>>, vector<8x128xf32>
    %c0_i32_6 = arith.constant 0 : i32
    %8 = arith.truncf %7 : vector<8x128xf32> to vector<8x128xbf16>
    %cst = arith.constant dense<0.000000e+00> : vector<8x384xf32>
    %9 = tpu.matmul %8, %3, %cst {dimension_numbers = #tpu.dot_dimension_numbers<[1], [0], [0], [1], [0, 0, 1, 1], [], []>} : vector<8x128xbf16>, vector<128x384xbf16>, vector<8x384xf32> -> vector<8x384xf32>
    %10 = arith.index_cast %c0_i32_6 : i32 to index
    %c0_7 = arith.constant 0 : index
    %c0_8 = arith.constant 0 : index
    %11 = vector.load %arg2[%10, %c0_7, %c0_8] : memref<8x8x384xf32, #tpu.memory_space<vmem>>, vector<1x8x384xf32>
    %12 = vector.shape_cast %11 : vector<1x8x384xf32> to vector<8x384xf32>
    %13 = vector.extract_strided_slice %12 {offsets = [0, 0], sizes = [8, 128], strides = [1, 1]} : vector<8x384xf32> to vector<8x128xf32>
    %14 = vector.extract_strided_slice %9 {offsets = [0, 0], sizes = [8, 128], strides = [1, 1]} : vector<8x384xf32> to vector<8x128xf32>
    %15 = arith.addf %13, %14 : vector<8x128xf32>
    %16 = arith.negf %15 : vector<8x128xf32>
    %17 = math.exp %16 : vector<8x128xf32>
    %cst_9 = arith.constant 1.000000e+00 : f32
    %18 = vector.broadcast %cst_9 : f32 to vector<8x128xf32>
    %19 = arith.addf %18, %17 : vector<8x128xf32>
    %20 = arith.divf %18, %19 : vector<8x128xf32>
    %21 = vector.extract_strided_slice %12 {offsets = [0, 128], sizes = [8, 128], strides = [1, 1]} : vector<8x384xf32> to vector<8x128xf32>
    %22 = vector.extract_strided_slice %9 {offsets = [0, 128], sizes = [8, 128], strides = [1, 1]} : vector<8x384xf32> to vector<8x128xf32>
    %23 = arith.addf %21, %22 : vector<8x128xf32>
    %24 = arith.negf %23 : vector<8x128xf32>
    %25 = math.exp %24 : vector<8x128xf32>
    %cst_10 = arith.constant 1.000000e+00 : f32
    %26 = vector.broadcast %cst_10 : f32 to vector<8x128xf32>
    %27 = arith.addf %26, %25 : vector<8x128xf32>
    %28 = arith.divf %26, %27 : vector<8x128xf32>
    %29 = vector.extract_strided_slice %12 {offsets = [0, 256], sizes = [8, 128], strides = [1, 1]} : vector<8x384xf32> to vector<8x128xf32>
    %30 = vector.extract_strided_slice %9 {offsets = [0, 256], sizes = [8, 128], strides = [1, 1]} : vector<8x384xf32> to vector<8x128xf32>
    %31 = arith.addf %30, %6 : vector<8x128xf32>
    %32 = arith.mulf %20, %31 : vector<8x128xf32>
    %33 = arith.addf %29, %32 : vector<8x128xf32>
    %34 = math.tanh %33 : vector<8x128xf32>
    %cst_11 = arith.constant 1.000000e+00 : f32
    %35 = vector.broadcast %cst_11 : f32 to vector<8x128xf32>
    %36 = arith.subf %35, %28 : vector<8x128xf32>
    %37 = arith.mulf %36, %34 : vector<8x128xf32>
    %38 = arith.mulf %28, %7 : vector<8x128xf32>
    %39 = arith.addf %37, %38 : vector<8x128xf32>
    %c1_i32 = arith.constant 1 : i32
    %40 = arith.truncf %39 : vector<8x128xf32> to vector<8x128xbf16>
    %cst_12 = arith.constant dense<0.000000e+00> : vector<8x384xf32>
    %41 = tpu.matmul %40, %3, %cst_12 {dimension_numbers = #tpu.dot_dimension_numbers<[1], [0], [0], [1], [0, 0, 1, 1], [], []>} : vector<8x128xbf16>, vector<128x384xbf16>, vector<8x384xf32> -> vector<8x384xf32>
    %42 = arith.index_cast %c1_i32 : i32 to index
    %c0_13 = arith.constant 0 : index
    %c0_14 = arith.constant 0 : index
    %43 = vector.load %arg2[%42, %c0_13, %c0_14] : memref<8x8x384xf32, #tpu.memory_space<vmem>>, vector<1x8x384xf32>
    %44 = vector.shape_cast %43 : vector<1x8x384xf32> to vector<8x384xf32>
    %45 = vector.extract_strided_slice %44 {offsets = [0, 0], sizes = [8, 128], strides = [1, 1]} : vector<8x384xf32> to vector<8x128xf32>
    %46 = vector.extract_strided_slice %41 {offsets = [0, 0], sizes = [8, 128], strides = [1, 1]} : vector<8x384xf32> to vector<8x128xf32>
    %47 = arith.addf %45, %46 : vector<8x128xf32>
    %48 = arith.negf %47 : vector<8x128xf32>
    %49 = math.exp %48 : vector<8x128xf32>
    %cst_15 = arith.constant 1.000000e+00 : f32
    %50 = vector.broadcast %cst_15 : f32 to vector<8x128xf32>
    %51 = arith.addf %50, %49 : vector<8x128xf32>
    %52 = arith.divf %50, %51 : vector<8x128xf32>
    %53 = vector.extract_strided_slice %44 {offsets = [0, 128], sizes = [8, 128], strides = [1, 1]} : vector<8x384xf32> to vector<8x128xf32>
    %54 = vector.extract_strided_slice %41 {offsets = [0, 128], sizes = [8, 128], strides = [1, 1]} : vector<8x384xf32> to vector<8x128xf32>
    %55 = arith.addf %53, %54 : vector<8x128xf32>
    %56 = arith.negf %55 : vector<8x128xf32>
    %57 = math.exp %56 : vector<8x128xf32>
    %cst_16 = arith.constant 1.000000e+00 : f32
    %58 = vector.broadcast %cst_16 : f32 to vector<8x128xf32>
    %59 = arith.addf %58, %57 : vector<8x128xf32>
    %60 = arith.divf %58, %59 : vector<8x128xf32>
    %61 = vector.extract_strided_slice %44 {offsets = [0, 256], sizes = [8, 128], strides = [1, 1]} : vector<8x384xf32> to vector<8x128xf32>
    %62 = vector.extract_strided_slice %41 {offsets = [0, 256], sizes = [8, 128], strides = [1, 1]} : vector<8x384xf32> to vector<8x128xf32>
    %63 = arith.addf %62, %6 : vector<8x128xf32>
    %64 = arith.mulf %52, %63 : vector<8x128xf32>
    %65 = arith.addf %61, %64 : vector<8x128xf32>
    %66 = math.tanh %65 : vector<8x128xf32>
    %cst_17 = arith.constant 1.000000e+00 : f32
    %67 = vector.broadcast %cst_17 : f32 to vector<8x128xf32>
    %68 = arith.subf %67, %60 : vector<8x128xf32>
    %69 = arith.mulf %68, %66 : vector<8x128xf32>
    %70 = arith.mulf %60, %39 : vector<8x128xf32>
    %71 = arith.addf %69, %70 : vector<8x128xf32>
    %c2_i32 = arith.constant 2 : i32
    %72 = arith.truncf %71 : vector<8x128xf32> to vector<8x128xbf16>
    %cst_18 = arith.constant dense<0.000000e+00> : vector<8x384xf32>
    %73 = tpu.matmul %72, %3, %cst_18 {dimension_numbers = #tpu.dot_dimension_numbers<[1], [0], [0], [1], [0, 0, 1, 1], [], []>} : vector<8x128xbf16>, vector<128x384xbf16>, vector<8x384xf32> -> vector<8x384xf32>
    %74 = arith.index_cast %c2_i32 : i32 to index
    %c0_19 = arith.constant 0 : index
    %c0_20 = arith.constant 0 : index
    %75 = vector.load %arg2[%74, %c0_19, %c0_20] : memref<8x8x384xf32, #tpu.memory_space<vmem>>, vector<1x8x384xf32>
    %76 = vector.shape_cast %75 : vector<1x8x384xf32> to vector<8x384xf32>
    %77 = vector.extract_strided_slice %76 {offsets = [0, 0], sizes = [8, 128], strides = [1, 1]} : vector<8x384xf32> to vector<8x128xf32>
    %78 = vector.extract_strided_slice %73 {offsets = [0, 0], sizes = [8, 128], strides = [1, 1]} : vector<8x384xf32> to vector<8x128xf32>
    %79 = arith.addf %77, %78 : vector<8x128xf32>
    %80 = arith.negf %79 : vector<8x128xf32>
    %81 = math.exp %80 : vector<8x128xf32>
    %cst_21 = arith.constant 1.000000e+00 : f32
    %82 = vector.broadcast %cst_21 : f32 to vector<8x128xf32>
    %83 = arith.addf %82, %81 : vector<8x128xf32>
    %84 = arith.divf %82, %83 : vector<8x128xf32>
    %85 = vector.extract_strided_slice %76 {offsets = [0, 128], sizes = [8, 128], strides = [1, 1]} : vector<8x384xf32> to vector<8x128xf32>
    %86 = vector.extract_strided_slice %73 {offsets = [0, 128], sizes = [8, 128], strides = [1, 1]} : vector<8x384xf32> to vector<8x128xf32>
    %87 = arith.addf %85, %86 : vector<8x128xf32>
    %88 = arith.negf %87 : vector<8x128xf32>
    %89 = math.exp %88 : vector<8x128xf32>
    %cst_22 = arith.constant 1.000000e+00 : f32
    %90 = vector.broadcast %cst_22 : f32 to vector<8x128xf32>
    %91 = arith.addf %90, %89 : vector<8x128xf32>
    %92 = arith.divf %90, %91 : vector<8x128xf32>
    %93 = vector.extract_strided_slice %76 {offsets = [0, 256], sizes = [8, 128], strides = [1, 1]} : vector<8x384xf32> to vector<8x128xf32>
    %94 = vector.extract_strided_slice %73 {offsets = [0, 256], sizes = [8, 128], strides = [1, 1]} : vector<8x384xf32> to vector<8x128xf32>
    %95 = arith.addf %94, %6 : vector<8x128xf32>
    %96 = arith.mulf %84, %95 : vector<8x128xf32>
    %97 = arith.addf %93, %96 : vector<8x128xf32>
    %98 = math.tanh %97 : vector<8x128xf32>
    %cst_23 = arith.constant 1.000000e+00 : f32
    %99 = vector.broadcast %cst_23 : f32 to vector<8x128xf32>
    %100 = arith.subf %99, %92 : vector<8x128xf32>
    %101 = arith.mulf %100, %98 : vector<8x128xf32>
    %102 = arith.mulf %92, %71 : vector<8x128xf32>
    %103 = arith.addf %101, %102 : vector<8x128xf32>
    %c3_i32 = arith.constant 3 : i32
    %104 = arith.truncf %103 : vector<8x128xf32> to vector<8x128xbf16>
    %cst_24 = arith.constant dense<0.000000e+00> : vector<8x384xf32>
    %105 = tpu.matmul %104, %3, %cst_24 {dimension_numbers = #tpu.dot_dimension_numbers<[1], [0], [0], [1], [0, 0, 1, 1], [], []>} : vector<8x128xbf16>, vector<128x384xbf16>, vector<8x384xf32> -> vector<8x384xf32>
    %106 = arith.index_cast %c3_i32 : i32 to index
    %c0_25 = arith.constant 0 : index
    %c0_26 = arith.constant 0 : index
    %107 = vector.load %arg2[%106, %c0_25, %c0_26] : memref<8x8x384xf32, #tpu.memory_space<vmem>>, vector<1x8x384xf32>
    %108 = vector.shape_cast %107 : vector<1x8x384xf32> to vector<8x384xf32>
    %109 = vector.extract_strided_slice %108 {offsets = [0, 0], sizes = [8, 128], strides = [1, 1]} : vector<8x384xf32> to vector<8x128xf32>
    %110 = vector.extract_strided_slice %105 {offsets = [0, 0], sizes = [8, 128], strides = [1, 1]} : vector<8x384xf32> to vector<8x128xf32>
    %111 = arith.addf %109, %110 : vector<8x128xf32>
    %112 = arith.negf %111 : vector<8x128xf32>
    %113 = math.exp %112 : vector<8x128xf32>
    %cst_27 = arith.constant 1.000000e+00 : f32
    %114 = vector.broadcast %cst_27 : f32 to vector<8x128xf32>
    %115 = arith.addf %114, %113 : vector<8x128xf32>
    %116 = arith.divf %114, %115 : vector<8x128xf32>
    %117 = vector.extract_strided_slice %108 {offsets = [0, 128], sizes = [8, 128], strides = [1, 1]} : vector<8x384xf32> to vector<8x128xf32>
    %118 = vector.extract_strided_slice %105 {offsets = [0, 128], sizes = [8, 128], strides = [1, 1]} : vector<8x384xf32> to vector<8x128xf32>
    %119 = arith.addf %117, %118 : vector<8x128xf32>
    %120 = arith.negf %119 : vector<8x128xf32>
    %121 = math.exp %120 : vector<8x128xf32>
    %cst_28 = arith.constant 1.000000e+00 : f32
    %122 = vector.broadcast %cst_28 : f32 to vector<8x128xf32>
    %123 = arith.addf %122, %121 : vector<8x128xf32>
    %124 = arith.divf %122, %123 : vector<8x128xf32>
    %125 = vector.extract_strided_slice %108 {offsets = [0, 256], sizes = [8, 128], strides = [1, 1]} : vector<8x384xf32> to vector<8x128xf32>
    %126 = vector.extract_strided_slice %105 {offsets = [0, 256], sizes = [8, 128], strides = [1, 1]} : vector<8x384xf32> to vector<8x128xf32>
    %127 = arith.addf %126, %6 : vector<8x128xf32>
    %128 = arith.mulf %116, %127 : vector<8x128xf32>
    %129 = arith.addf %125, %128 : vector<8x128xf32>
    %130 = math.tanh %129 : vector<8x128xf32>
    %cst_29 = arith.constant 1.000000e+00 : f32
    %131 = vector.broadcast %cst_29 : f32 to vector<8x128xf32>
    %132 = arith.subf %131, %124 : vector<8x128xf32>
    %133 = arith.mulf %132, %130 : vector<8x128xf32>
    %134 = arith.mulf %124, %103 : vector<8x128xf32>
    %135 = arith.addf %133, %134 : vector<8x128xf32>
    %c4_i32 = arith.constant 4 : i32
    %136 = arith.truncf %135 : vector<8x128xf32> to vector<8x128xbf16>
    %cst_30 = arith.constant dense<0.000000e+00> : vector<8x384xf32>
    %137 = tpu.matmul %136, %3, %cst_30 {dimension_numbers = #tpu.dot_dimension_numbers<[1], [0], [0], [1], [0, 0, 1, 1], [], []>} : vector<8x128xbf16>, vector<128x384xbf16>, vector<8x384xf32> -> vector<8x384xf32>
    %138 = arith.index_cast %c4_i32 : i32 to index
    %c0_31 = arith.constant 0 : index
    %c0_32 = arith.constant 0 : index
    %139 = vector.load %arg2[%138, %c0_31, %c0_32] : memref<8x8x384xf32, #tpu.memory_space<vmem>>, vector<1x8x384xf32>
    %140 = vector.shape_cast %139 : vector<1x8x384xf32> to vector<8x384xf32>
    %141 = vector.extract_strided_slice %140 {offsets = [0, 0], sizes = [8, 128], strides = [1, 1]} : vector<8x384xf32> to vector<8x128xf32>
    %142 = vector.extract_strided_slice %137 {offsets = [0, 0], sizes = [8, 128], strides = [1, 1]} : vector<8x384xf32> to vector<8x128xf32>
    %143 = arith.addf %141, %142 : vector<8x128xf32>
    %144 = arith.negf %143 : vector<8x128xf32>
    %145 = math.exp %144 : vector<8x128xf32>
    %cst_33 = arith.constant 1.000000e+00 : f32
    %146 = vector.broadcast %cst_33 : f32 to vector<8x128xf32>
    %147 = arith.addf %146, %145 : vector<8x128xf32>
    %148 = arith.divf %146, %147 : vector<8x128xf32>
    %149 = vector.extract_strided_slice %140 {offsets = [0, 128], sizes = [8, 128], strides = [1, 1]} : vector<8x384xf32> to vector<8x128xf32>
    %150 = vector.extract_strided_slice %137 {offsets = [0, 128], sizes = [8, 128], strides = [1, 1]} : vector<8x384xf32> to vector<8x128xf32>
    %151 = arith.addf %149, %150 : vector<8x128xf32>
    %152 = arith.negf %151 : vector<8x128xf32>
    %153 = math.exp %152 : vector<8x128xf32>
    %cst_34 = arith.constant 1.000000e+00 : f32
    %154 = vector.broadcast %cst_34 : f32 to vector<8x128xf32>
    %155 = arith.addf %154, %153 : vector<8x128xf32>
    %156 = arith.divf %154, %155 : vector<8x128xf32>
    %157 = vector.extract_strided_slice %140 {offsets = [0, 256], sizes = [8, 128], strides = [1, 1]} : vector<8x384xf32> to vector<8x128xf32>
    %158 = vector.extract_strided_slice %137 {offsets = [0, 256], sizes = [8, 128], strides = [1, 1]} : vector<8x384xf32> to vector<8x128xf32>
    %159 = arith.addf %158, %6 : vector<8x128xf32>
    %160 = arith.mulf %148, %159 : vector<8x128xf32>
    %161 = arith.addf %157, %160 : vector<8x128xf32>
    %162 = math.tanh %161 : vector<8x128xf32>
    %cst_35 = arith.constant 1.000000e+00 : f32
    %163 = vector.broadcast %cst_35 : f32 to vector<8x128xf32>
    %164 = arith.subf %163, %156 : vector<8x128xf32>
    %165 = arith.mulf %164, %162 : vector<8x128xf32>
    %166 = arith.mulf %156, %135 : vector<8x128xf32>
    %167 = arith.addf %165, %166 : vector<8x128xf32>
    %c5_i32 = arith.constant 5 : i32
    %168 = arith.truncf %167 : vector<8x128xf32> to vector<8x128xbf16>
    %cst_36 = arith.constant dense<0.000000e+00> : vector<8x384xf32>
    %169 = tpu.matmul %168, %3, %cst_36 {dimension_numbers = #tpu.dot_dimension_numbers<[1], [0], [0], [1], [0, 0, 1, 1], [], []>} : vector<8x128xbf16>, vector<128x384xbf16>, vector<8x384xf32> -> vector<8x384xf32>
    %170 = arith.index_cast %c5_i32 : i32 to index
    %c0_37 = arith.constant 0 : index
    %c0_38 = arith.constant 0 : index
    %171 = vector.load %arg2[%170, %c0_37, %c0_38] : memref<8x8x384xf32, #tpu.memory_space<vmem>>, vector<1x8x384xf32>
    %172 = vector.shape_cast %171 : vector<1x8x384xf32> to vector<8x384xf32>
    %173 = vector.extract_strided_slice %172 {offsets = [0, 0], sizes = [8, 128], strides = [1, 1]} : vector<8x384xf32> to vector<8x128xf32>
    %174 = vector.extract_strided_slice %169 {offsets = [0, 0], sizes = [8, 128], strides = [1, 1]} : vector<8x384xf32> to vector<8x128xf32>
    %175 = arith.addf %173, %174 : vector<8x128xf32>
    %176 = arith.negf %175 : vector<8x128xf32>
    %177 = math.exp %176 : vector<8x128xf32>
    %cst_39 = arith.constant 1.000000e+00 : f32
    %178 = vector.broadcast %cst_39 : f32 to vector<8x128xf32>
    %179 = arith.addf %178, %177 : vector<8x128xf32>
    %180 = arith.divf %178, %179 : vector<8x128xf32>
    %181 = vector.extract_strided_slice %172 {offsets = [0, 128], sizes = [8, 128], strides = [1, 1]} : vector<8x384xf32> to vector<8x128xf32>
    %182 = vector.extract_strided_slice %169 {offsets = [0, 128], sizes = [8, 128], strides = [1, 1]} : vector<8x384xf32> to vector<8x128xf32>
    %183 = arith.addf %181, %182 : vector<8x128xf32>
    %184 = arith.negf %183 : vector<8x128xf32>
    %185 = math.exp %184 : vector<8x128xf32>
    %cst_40 = arith.constant 1.000000e+00 : f32
    %186 = vector.broadcast %cst_40 : f32 to vector<8x128xf32>
    %187 = arith.addf %186, %185 : vector<8x128xf32>
    %188 = arith.divf %186, %187 : vector<8x128xf32>
    %189 = vector.extract_strided_slice %172 {offsets = [0, 256], sizes = [8, 128], strides = [1, 1]} : vector<8x384xf32> to vector<8x128xf32>
    %190 = vector.extract_strided_slice %169 {offsets = [0, 256], sizes = [8, 128], strides = [1, 1]} : vector<8x384xf32> to vector<8x128xf32>
    %191 = arith.addf %190, %6 : vector<8x128xf32>
    %192 = arith.mulf %180, %191 : vector<8x128xf32>
    %193 = arith.addf %189, %192 : vector<8x128xf32>
    %194 = math.tanh %193 : vector<8x128xf32>
    %cst_41 = arith.constant 1.000000e+00 : f32
    %195 = vector.broadcast %cst_41 : f32 to vector<8x128xf32>
    %196 = arith.subf %195, %188 : vector<8x128xf32>
    %197 = arith.mulf %196, %194 : vector<8x128xf32>
    %198 = arith.mulf %188, %167 : vector<8x128xf32>
    %199 = arith.addf %197, %198 : vector<8x128xf32>
    %c6_i32 = arith.constant 6 : i32
    %200 = arith.truncf %199 : vector<8x128xf32> to vector<8x128xbf16>
    %cst_42 = arith.constant dense<0.000000e+00> : vector<8x384xf32>
    %201 = tpu.matmul %200, %3, %cst_42 {dimension_numbers = #tpu.dot_dimension_numbers<[1], [0], [0], [1], [0, 0, 1, 1], [], []>} : vector<8x128xbf16>, vector<128x384xbf16>, vector<8x384xf32> -> vector<8x384xf32>
    %202 = arith.index_cast %c6_i32 : i32 to index
    %c0_43 = arith.constant 0 : index
    %c0_44 = arith.constant 0 : index
    %203 = vector.load %arg2[%202, %c0_43, %c0_44] : memref<8x8x384xf32, #tpu.memory_space<vmem>>, vector<1x8x384xf32>
    %204 = vector.shape_cast %203 : vector<1x8x384xf32> to vector<8x384xf32>
    %205 = vector.extract_strided_slice %204 {offsets = [0, 0], sizes = [8, 128], strides = [1, 1]} : vector<8x384xf32> to vector<8x128xf32>
    %206 = vector.extract_strided_slice %201 {offsets = [0, 0], sizes = [8, 128], strides = [1, 1]} : vector<8x384xf32> to vector<8x128xf32>
    %207 = arith.addf %205, %206 : vector<8x128xf32>
    %208 = arith.negf %207 : vector<8x128xf32>
    %209 = math.exp %208 : vector<8x128xf32>
    %cst_45 = arith.constant 1.000000e+00 : f32
    %210 = vector.broadcast %cst_45 : f32 to vector<8x128xf32>
    %211 = arith.addf %210, %209 : vector<8x128xf32>
    %212 = arith.divf %210, %211 : vector<8x128xf32>
    %213 = vector.extract_strided_slice %204 {offsets = [0, 128], sizes = [8, 128], strides = [1, 1]} : vector<8x384xf32> to vector<8x128xf32>
    %214 = vector.extract_strided_slice %201 {offsets = [0, 128], sizes = [8, 128], strides = [1, 1]} : vector<8x384xf32> to vector<8x128xf32>
    %215 = arith.addf %213, %214 : vector<8x128xf32>
    %216 = arith.negf %215 : vector<8x128xf32>
    %217 = math.exp %216 : vector<8x128xf32>
    %cst_46 = arith.constant 1.000000e+00 : f32
    %218 = vector.broadcast %cst_46 : f32 to vector<8x128xf32>
    %219 = arith.addf %218, %217 : vector<8x128xf32>
    %220 = arith.divf %218, %219 : vector<8x128xf32>
    %221 = vector.extract_strided_slice %204 {offsets = [0, 256], sizes = [8, 128], strides = [1, 1]} : vector<8x384xf32> to vector<8x128xf32>
    %222 = vector.extract_strided_slice %201 {offsets = [0, 256], sizes = [8, 128], strides = [1, 1]} : vector<8x384xf32> to vector<8x128xf32>
    %223 = arith.addf %222, %6 : vector<8x128xf32>
    %224 = arith.mulf %212, %223 : vector<8x128xf32>
    %225 = arith.addf %221, %224 : vector<8x128xf32>
    %226 = math.tanh %225 : vector<8x128xf32>
    %cst_47 = arith.constant 1.000000e+00 : f32
    %227 = vector.broadcast %cst_47 : f32 to vector<8x128xf32>
    %228 = arith.subf %227, %220 : vector<8x128xf32>
    %229 = arith.mulf %228, %226 : vector<8x128xf32>
    %230 = arith.mulf %220, %199 : vector<8x128xf32>
    %231 = arith.addf %229, %230 : vector<8x128xf32>
    %c7_i32 = arith.constant 7 : i32
    %232 = arith.truncf %231 : vector<8x128xf32> to vector<8x128xbf16>
    %cst_48 = arith.constant dense<0.000000e+00> : vector<8x384xf32>
    %233 = tpu.matmul %232, %3, %cst_48 {dimension_numbers = #tpu.dot_dimension_numbers<[1], [0], [0], [1], [0, 0, 1, 1], [], []>} : vector<8x128xbf16>, vector<128x384xbf16>, vector<8x384xf32> -> vector<8x384xf32>
    %234 = arith.index_cast %c7_i32 : i32 to index
    %c0_49 = arith.constant 0 : index
    %c0_50 = arith.constant 0 : index
    %235 = vector.load %arg2[%234, %c0_49, %c0_50] : memref<8x8x384xf32, #tpu.memory_space<vmem>>, vector<1x8x384xf32>
    %236 = vector.shape_cast %235 : vector<1x8x384xf32> to vector<8x384xf32>
    %237 = vector.extract_strided_slice %236 {offsets = [0, 0], sizes = [8, 128], strides = [1, 1]} : vector<8x384xf32> to vector<8x128xf32>
    %238 = vector.extract_strided_slice %233 {offsets = [0, 0], sizes = [8, 128], strides = [1, 1]} : vector<8x384xf32> to vector<8x128xf32>
    %239 = arith.addf %237, %238 : vector<8x128xf32>
    %240 = arith.negf %239 : vector<8x128xf32>
    %241 = math.exp %240 : vector<8x128xf32>
    %cst_51 = arith.constant 1.000000e+00 : f32
    %242 = vector.broadcast %cst_51 : f32 to vector<8x128xf32>
    %243 = arith.addf %242, %241 : vector<8x128xf32>
    %244 = arith.divf %242, %243 : vector<8x128xf32>
    %245 = vector.extract_strided_slice %236 {offsets = [0, 128], sizes = [8, 128], strides = [1, 1]} : vector<8x384xf32> to vector<8x128xf32>
    %246 = vector.extract_strided_slice %233 {offsets = [0, 128], sizes = [8, 128], strides = [1, 1]} : vector<8x384xf32> to vector<8x128xf32>
    %247 = arith.addf %245, %246 : vector<8x128xf32>
    %248 = arith.negf %247 : vector<8x128xf32>
    %249 = math.exp %248 : vector<8x128xf32>
    %cst_52 = arith.constant 1.000000e+00 : f32
    %250 = vector.broadcast %cst_52 : f32 to vector<8x128xf32>
    %251 = arith.addf %250, %249 : vector<8x128xf32>
    %252 = arith.divf %250, %251 : vector<8x128xf32>
    %253 = vector.extract_strided_slice %236 {offsets = [0, 256], sizes = [8, 128], strides = [1, 1]} : vector<8x384xf32> to vector<8x128xf32>
    %254 = vector.extract_strided_slice %233 {offsets = [0, 256], sizes = [8, 128], strides = [1, 1]} : vector<8x384xf32> to vector<8x128xf32>
    %255 = arith.addf %254, %6 : vector<8x128xf32>
    %256 = arith.mulf %244, %255 : vector<8x128xf32>
    %257 = arith.addf %253, %256 : vector<8x128xf32>
    %258 = math.tanh %257 : vector<8x128xf32>
    %cst_53 = arith.constant 1.000000e+00 : f32
    %259 = vector.broadcast %cst_53 : f32 to vector<8x128xf32>
    %260 = arith.subf %259, %252 : vector<8x128xf32>
    %261 = arith.mulf %260, %258 : vector<8x128xf32>
    %262 = arith.mulf %252, %231 : vector<8x128xf32>
    %263 = arith.addf %261, %262 : vector<8x128xf32>
    %c8_i32 = arith.constant 8 : i32
    %c0_54 = arith.constant 0 : index
    %c0_55 = arith.constant 0 : index
    %264 = vector.load %arg8[%c0_54, %c0_55] : memref<8x128xf32, #tpu.memory_space<vmem>>, vector<8x128xf32>
    tpu.vector_store %arg8[%c0_54, %c0_55], %263 {strides = array<i32>} : memref<8x128xf32, #tpu.memory_space<vmem>>, vector<8x128xf32>,
    %c0_i32_56 = arith.constant 0 : i32
    %265 = arith.cmpi eq, %arg1, %c0_i32_56 : i32
    %266 = arith.extui %265 : i1 to i32
    %c0_i32_57 = arith.constant 0 : i32
    %267 = arith.cmpi ne, %266, %c0_i32_57 : i32
    scf.if %267 {
      %c0_58 = arith.constant 0 : index
      %c0_59 = arith.constant 0 : index
      %268 = vector.load %arg8[%c0_58, %c0_59] : memref<8x128xf32, #tpu.memory_space<vmem>>, vector<8x128xf32>
      %c0_60 = arith.constant 0 : index
      %c0_61 = arith.constant 0 : index
      %269 = vector.load %arg5[%c0_60, %c0_61] : memref<128x128xf32, #tpu.memory_space<vmem>>, vector<128x128xf32>
      %cst_62 = arith.constant dense<0.000000e+00> : vector<8x128xf32>
      %270 = tpu.matmul %268, %269, %cst_62 {dimension_numbers = #tpu.dot_dimension_numbers<[1], [0], [0], [1], [0, 0, 1, 1], [], []>} : vector<8x128xf32>, vector<128x128xf32>, vector<8x128xf32> -> vector<8x128xf32>
      %c0_63 = arith.constant 0 : index
      %c0_64 = arith.constant 0 : index
      %271 = vector.load %arg6[%c0_63, %c0_64] : memref<1x128xf32, #tpu.memory_space<vmem>>, vector<1x128xf32>
      %272 = vector.broadcast %271 : vector<1x128xf32> to vector<8x128xf32>
      %273 = arith.addf %270, %272 : vector<8x128xf32>
      %c0_65 = arith.constant 0 : index
      %c0_66 = arith.constant 0 : index
      %274 = vector.load %arg7[%c0_65, %c0_66] : memref<8x128xf32, #tpu.memory_space<vmem>>, vector<8x128xf32>
      tpu.vector_store %arg7[%c0_65, %c0_66], %273 {strides = array<i32>} : memref<8x128xf32, #tpu.memory_space<vmem>>, vector<8x128xf32>,
    } else {
    }
    return
  }
  func.func @transform_0(%arg0: i32, %arg1: i32) -> (i32, i32, i32) {
    %c0_i32 = arith.constant 0 : i32
    %c0_i32_0 = arith.constant 0 : i32
    return %arg1, %arg0, %c0_i32 : i32, i32, i32
  }
  func.func @transform_1(%arg0: i32, %arg1: i32) -> (i32, i32) {
    %c0_i32 = arith.constant 0 : i32
    %c0_i32_0 = arith.constant 0 : i32
    %c0_i32_1 = arith.constant 0 : i32
    return %c0_i32, %c0_i32_0 : i32, i32
  }
  func.func @transform_2(%arg0: i32, %arg1: i32) -> (i32, i32) {
    %c0_i32 = arith.constant 0 : i32
    %c0_i32_0 = arith.constant 0 : i32
    %c0_i32_1 = arith.constant 0 : i32
    return %c0_i32, %c0_i32_0 : i32, i32
  }
  func.func @transform_3(%arg0: i32, %arg1: i32) -> (i32, i32) {
    %c0_i32 = arith.constant 0 : i32
    %c0_i32_0 = arith.constant 0 : i32
    %c0_i32_1 = arith.constant 0 : i32
    return %c0_i32, %c0_i32_0 : i32, i32
  }
  func.func @transform_4(%arg0: i32, %arg1: i32) -> (i32, i32) {
    %c0_i32 = arith.constant 0 : i32
    %c0_i32_0 = arith.constant 0 : i32
    %c0_i32_1 = arith.constant 0 : i32
    return %c0_i32, %c0_i32_0 : i32, i32
  }
  func.func @transform_5(%arg0: i32, %arg1: i32) -> (i32, i32) {
    %c0_i32 = arith.constant 0 : i32
    %c0_i32_0 = arith.constant 0 : i32
    return %arg0, %c0_i32 : i32, i32
  }
}

</mosaic_0001>

<llo_original>
// kernel: _forward_padded.4
$region0: #{_forward_padded.4}
  #allocation0 [shape = 'u32[]', space=smem, size = 0x4, offset = 0x4, fixed_abs, tag = 'smem constant byte address 0x4 - core index']
  #allocation1 [shape = 'u32[144,128]{1,0:T(1,128)}', space=vmem, size = 0x12000, scoped, tag = 'internal scratch']
  %s0 = inlined_call_operand.vmem [shape: bf16[64,128], index: 0, kind: input, shape index: {}]
  %s1 = inlined_call_operand.hbm [shape: bf16[128,384], index: 1, kind: input, shape index: {}]
  %s2 = inlined_call_operand.vmem [shape: f32[1,384], index: 2, kind: input, shape index: {}]
  %s3 = inlined_call_operand.vmem [shape: f32[64,384], index: 3, kind: output, shape index: {}]
  %s4 = sld [smem:[#allocation0]]
  $region26: #{_forward_padded.4} parent=0
    _
  %s6 = ssub.s32 1, %s4
  %s7 = scalar_select 0, %s6, %s4
  $region1: #{_forward_padded.4} parent=0
    #allocation2 [shape = 'u8[98304]{0}', space=vmem, size = 0x18000, scoped, tag = 'input window, operand 1, single buffered']
    #allocation3 [shape = 's32[1]{0}', space=sflag, size = 0x4, scoped, tag = 'scoped memory for _forward_padded.4']
    %8 = vsyncpa [#allocation3], 0
    // Predicated region
    $region2: #{_forward_padded.4} parent=1 // pred_check
      _
    $region3: #{_forward_padded.4} parent=1 // pred_check_branch
      %10 = sbr.rel (0) target = $region5
    $region4: #{_forward_padded.4} parent=1 // pred_region
      _
    $region5: #{_forward_padded.4} parent=1 // pred_fallthru
      _
    // Predicated region
    $region6: #{_forward_padded.4} parent=1 // pred_check
      _
    $region7: #{_forward_padded.4} parent=1 // pred_check_branch
      %12 = sbr.rel (0) target = $region9
    $region8: #{_forward_padded.4} parent=1 // pred_region
      %s14 = ssub.s32 3072, 3072
      %15 = vsyncadd [#allocation3], %s14
      %s16 = sshll.u32 [#allocation2], 4
      %s17 = int_to_ptr.vmem [resolvable:$true] %s16
      %22 = dma.hbm_to_vmem [thread:$0]  %s1, 3072, %s17, [#allocation3], 192, 192, 12
    $region9: #{_forward_padded.4} parent=1 // pred_fallthru
      _
    // Predicated region
    $region10: #{_forward_padded.4} parent=1 // pred_check
      _
    $region11: #{_forward_padded.4} parent=1 // pred_check_branch
      %24 = sbr.rel (0) target = $region13
    $region12: #{_forward_padded.4} parent=1 // pred_region
      _
    $region13: #{_forward_padded.4} parent=1 // pred_fallthru
      _
    // Predicated region
    $region14: #{_forward_padded.4} parent=1 // pred_check
      _
    $region15: #{_forward_padded.4} parent=1 // pred_check_branch
      %26 = sbr.rel (0) target = $region17
    $region16: #{_forward_padded.4} parent=1 // pred_region
      %27 = dma.done [#allocation3], 3072
    $region17: #{_forward_padded.4} parent=1 // pred_fallthru
      _
    %v29 = vld [vmem:[%s0] sm:$0xf]
    %v30 = vld [vmem:[%s0 + $0x4] sm:$0xf]
    %v31 = vld [vmem:[%s0 + $0x8] sm:$0xf]
    %v32 = vld [vmem:[%s0 + $0xc] sm:$0xf]
    %v33 = vld [vmem:[%s0 + $0x10] sm:$0xf]
    %v34 = vld [vmem:[%s0 + $0x14] sm:$0xf]
    %v35 = vld [vmem:[%s0 + $0x18] sm:$0xf]
    %v36 = vld [vmem:[%s0 + $0x1c] sm:$0xf]
    %v37 = vld [vmem:[#allocation2] sm:$0xff]
    %v38 = vld [vmem:[#allocation2 + $0x8] sm:$0xf]
    %v39 = vld [vmem:[#allocation2 + $0xc] sm:$0xff]
    %v40 = vld [vmem:[#allocation2 + $0x14] sm:$0xf]
    %v41 = vld [vmem:[#allocation2 + $0x18] sm:$0xff]
    %v42 = vld [vmem:[#allocation2 + $0x20] sm:$0xf]
    %v43 = vld [vmem:[#allocation2 + $0x24] sm:$0xff]
    %v44 = vld [vmem:[#allocation2 + $0x2c] sm:$0xf]
    %v45 = vld [vmem:[#allocation2 + $0x30] sm:$0xff]
    %v46 = vld [vmem:[#allocation2 + $0x38] sm:$0xf]
    %v47 = vld [vmem:[#allocation2 + $0x3c] sm:$0xff]
    %v48 = vld [vmem:[#allocation2 + $0x44] sm:$0xf]
    %v49 = vld [vmem:[#allocation2 + $0x48] sm:$0xff]
    %v50 = vld [vmem:[#allocation2 + $0x50] sm:$0xf]
    %v51 = vld [vmem:[#allocation2 + $0x54] sm:$0xff]
    %v52 = vld [vmem:[#allocation2 + $0x5c] sm:$0xf]
    %v53 = vld [vmem:[#allocation2 + $0x60] sm:$0xff]
    %v54 = vld [vmem:[#allocation2 + $0x68] sm:$0xf]
    %v55 = vld [vmem:[#allocation2 + $0x6c] sm:$0xff]
    %v56 = vld [vmem:[#allocation2 + $0x74] sm:$0xf]
    %v57 = vld [vmem:[#allocation2 + $0x78] sm:$0xff]
    %v58 = vld [vmem:[#allocation2 + $0x80] sm:$0xf]
    %v59 = vld [vmem:[#allocation2 + $0x84] sm:$0xff]
    %v60 = vld [vmem:[#allocation2 + $0x8c] sm:$0xf]
    %v61 = vld [vmem:[#allocation2 + $0x90] sm:$0xff]
    %v62 = vld [vmem:[#allocation2 + $0x98] sm:$0xf]
    %v63 = vld [vmem:[#allocation2 + $0x9c] sm:$0xff]
    %v64 = vld [vmem:[#allocation2 + $0xa4] sm:$0xf]
    %v65 = vld [vmem:[#allocation2 + $0xa8] sm:$0xff]
    %v66 = vld [vmem:[#allocation2 + $0xb0] sm:$0xf]
    %v67 = vld [vmem:[#allocation2 + $0xb4] sm:$0xff]
    %v68 = vld [vmem:[#allocation2 + $0xbc] sm:$0xf]
    %v69 = vld [vmem:[%s2] sm:$0x7]
    %v71 = vlaneseq
    %v72 = vshrl.u32 %v71, 7
    %v73 = vsub.s32 0, %v72
    %v74 = vrot.slane %v69, %v73
    %v75 = vlaneseq
    %v76 = vshrl.u32 %v75, 7
    %v77 = vsub.s32 1, %v76
    %v78 = vrot.slane %v69, %v77
    %v79 = vlaneseq
    %v80 = vshrl.u32 %v79, 7
    %v81 = vsub.s32 2, %v80
    %v82 = vrot.slane %v69, %v81
    %v94 = vunpack.c.l.b16 %v29
    %v95 = vunpack.c.l.b16 %v30
    %v96 = vunpack.c.l.b16 %v31
    %v97 = vunpack.c.l.b16 %v32
    %v98 = vunpack.c.l.b16 %v33
    %v99 = vunpack.c.l.b16 %v34
    %v100 = vunpack.c.l.b16 %v35
    %v101 = vunpack.c.l.b16 %v36
    %v102 = vpack.c.b16 %v95, %v94
    %v103 = vpack.c.b16 %v97, %v96
    %v104 = vpack.c.b16 %v99, %v98
    %v105 = vpack.c.b16 %v101, %v100
    %v142 = vunpack.c.l.b16 %v37
    %v143 = vunpack.c.h.b16 %v37
    %v144 = vunpack.c.l.b16 %v38
    %v145 = vunpack.c.l.b16 %v39
    %v146 = vunpack.c.h.b16 %v39
    %v147 = vunpack.c.l.b16 %v40
    %v148 = vunpack.c.l.b16 %v41
    %v149 = vunpack.c.h.b16 %v41
    %v150 = vunpack.c.l.b16 %v42
    %v151 = vunpack.c.l.b16 %v43
    %v152 = vunpack.c.h.b16 %v43
    %v153 = vunpack.c.l.b16 %v44
    %v154 = vunpack.c.l.b16 %v45
    %v155 = vunpack.c.h.b16 %v45
    %v156 = vunpack.c.l.b16 %v46
    %v157 = vunpack.c.l.b16 %v47
    %v158 = vunpack.c.h.b16 %v47
    %v159 = vunpack.c.l.b16 %v48
    %v160 = vunpack.c.l.b16 %v49
    %v161 = vunpack.c.h.b16 %v49
    %v162 = vunpack.c.l.b16 %v50
    %v163 = vunpack.c.l.b16 %v51
    %v164 = vunpack.c.h.b16 %v51
    %v165 = vunpack.c.l.b16 %v52
    %v166 = vunpack.c.l.b16 %v53
    %v167 = vunpack.c.h.b16 %v53
    %v168 = vunpack.c.l.b16 %v54
    %v169 = vunpack.c.l.b16 %v55
    %v170 = vunpack.c.h.b16 %v55
    %v171 = vunpack.c.l.b16 %v56
    %v172 = vunpack.c.l.b16 %v57
    %v173 = vunpack.c.h.b16 %v57
    %v174 = vunpack.c.l.b16 %v58
    %v175 = vunpack.c.l.b16 %v59
    %v176 = vunpack.c.h.b16 %v59
    %v177 = vunpack.c.l.b16 %v60
    %v178 = vunpack.c.l.b16 %v61
    %v179 = vunpack.c.h.b16 %v61
    %v180 = vunpack.c.l.b16 %v62
    %v181 = vunpack.c.l.b16 %v63
    %v182 = vunpack.c.h.b16 %v63
    %v183 = vunpack.c.l.b16 %v64
    %v184 = vunpack.c.l.b16 %v65
    %v185 = vunpack.c.h.b16 %v65
    %v186 = vunpack.c.l.b16 %v66
    %v187 = vunpack.c.l.b16 %v67
    %v188 = vunpack.c.h.b16 %v67
    %v189 = vunpack.c.l.b16 %v68
    %v190 = vpack.c.b16 %v145, %v142
    %v191 = vpack.c.b16 %v146, %v143
    %v192 = vpack.c.b16 %v147, %v144
    %v193 = vpack.c.b16 %v151, %v148
    %v194 = vpack.c.b16 %v152, %v149
    %v195 = vpack.c.b16 %v153, %v150
    %v196 = vpack.c.b16 %v157, %v154
    %v197 = vpack.c.b16 %v158, %v155
    %v198 = vpack.c.b16 %v159, %v156
    %v199 = vpack.c.b16 %v163, %v160
    %v200 = vpack.c.b16 %v164, %v161
    %v201 = vpack.c.b16 %v165, %v162
    %v202 = vpack.c.b16 %v169, %v166
    %v203 = vpack.c.b16 %v170, %v167
    %v204 = vpack.c.b16 %v171, %v168
    %v205 = vpack.c.b16 %v175, %v172
    %v206 = vpack.c.b16 %v176, %v173
    %v207 = vpack.c.b16 %v177, %v174
    %v208 = vpack.c.b16 %v181, %v178
    %v209 = vpack.c.b16 %v182, %v179
    %v210 = vpack.c.b16 %v183, %v180
    %v211 = vpack.c.b16 %v187, %v184
    %v212 = vpack.c.b16 %v188, %v185
    %v213 = vpack.c.b16 %v189, %v186
    %238 = vmatprep.subr.bf16.mxu0 %v212
    %239 = vmatpush1.bf16.msra.mxu0 %v211
    %240 = vmatprep.subr.bf16.mxu0 %v209
    %241 = vmatpush1.bf16.msra.mxu0 %v208
    %242 = vmatprep.subr.bf16.mxu0 %v206
    %243 = vmatpush1.bf16.msra.mxu0 %v205
    %244 = vmatprep.subr.bf16.mxu0 %v203
    %245 = vmatpush1.bf16.msra.mxu0 %v202
    %246 = vmatprep.subr.bf16.mxu0 %v200
    %247 = vmatpush1.bf16.msra.mxu0 %v199
    %248 = vmatprep.subr.bf16.mxu0 %v197
    %249 = vmatpush1.bf16.msra.mxu0 %v196
    %250 = vmatprep.subr.bf16.mxu0 %v194
    %251 = vmatpush1.bf16.msra.mxu0 %v193
    %252 = vmatprep.subr.bf16.mxu0 %v191
    %253 = vmatpush1.bf16.msra.mxu0 %v190
    %254 = vmatprep.subr.bf16.mxu0 0
    %255 = vmatpush2.bf16.msra.mxu0 0
    %256 = vmatprep.subr.bf16.mxu0 0
    %257 = vmatpush2.bf16.msra.mxu0 0
    %258 = vmatprep.subr.bf16.mxu0 0
    %259 = vmatpush2.bf16.msra.mxu0 0
    %260 = vmatprep.subr.bf16.mxu0 0
    %261 = vmatpush2.bf16.msra.mxu0 0
    %262 = vmatprep.subr.bf16.mxu0 0
    %263 = vmatpush2.bf16.msra.mxu0 0
    %264 = vmatprep.subr.bf16.mxu0 0
    %265 = vmatpush2.bf16.msra.mxu0 0
    %266 = vmatprep.subr.bf16.mxu0 0
    %267 = vmatpush2.bf16.msra.mxu0 0
    %268 = vmatprep.subr.bf16.mxu0 0
    %269 = vmatpush2.bf16.msra.mxu0 0
    %270 = vmatprep.mubr.bf16.mxu0 0
    %271 = vmatmul.mubr.bf16.gmra.mxu0 %v102
    %v272 = vpop.f32.mrf.mxu0
    %v273 = vadd.f32 %v74, %v272
    %v274 = vpop.f32.mrf.mxu0
    %v275 = vadd.f32 %v78, %v274
    %v276 = vpop.f32.mrf.mxu0
    %v277 = vadd.f32 %v74, %v276
    %v278 = vpop.f32.mrf.mxu0
    %v279 = vadd.f32 %v78, %v278
    %280 = vmatprep.mubr.bf16.mxu0 0
    %281 = vmatmul.mubr.bf16.gmra.mxu0 %v103
    %v282 = vpop.f32.mrf.mxu0
    %v283 = vadd.f32 %v74, %v282
    %v284 = vpop.f32.mrf.mxu0
    %v285 = vadd.f32 %v78, %v284
    %v286 = vpop.f32.mrf.mxu0
    %v287 = vadd.f32 %v74, %v286
    %v288 = vpop.f32.mrf.mxu0
    %v289 = vadd.f32 %v78, %v288
    %290 = vmatprep.mubr.bf16.mxu0 0
    %291 = vmatmul.mubr.bf16.gmra.mxu0 %v104
    %v292 = vpop.f32.mrf.mxu0
    %v293 = vadd.f32 %v74, %v292
    %v294 = vpop.f32.mrf.mxu0
    %v295 = vadd.f32 %v78, %v294
    %v296 = vpop.f32.mrf.mxu0
    %v297 = vadd.f32 %v74, %v296
    %v298 = vpop.f32.mrf.mxu0
    %v299 = vadd.f32 %v78, %v298
    %300 = vmatprep.mubr.bf16.mxu0 0
    %301 = vmatmul.mubr.bf16.gmra.mxu0 %v105
    %v302 = vpop.f32.mrf.mxu0
    %v303 = vadd.f32 %v74, %v302
    %v304 = vpop.f32.mrf.mxu0
    %v305 = vadd.f32 %v78, %v304
    %v306 = vpop.f32.mrf.mxu0
    %v307 = vadd.f32 %v74, %v306
    %v308 = vpop.f32.mrf.mxu0
    %v309 = vadd.f32 %v78, %v308
    %310 = vdwg.mxu0
    %311 = vmatprep.subr.bf16.mxu0 0
    %312 = vmatpush1.bf16.msra.mxu0 %v213
    %313 = vmatprep.subr.bf16.mxu0 0
    %314 = vmatpush1.bf16.msra.mxu0 %v210
    %315 = vmatprep.subr.bf16.mxu0 0
    %316 = vmatpush1.bf16.msra.mxu0 %v207
    %317 = vmatprep.subr.bf16.mxu0 0
    %318 = vmatpush1.bf16.msra.mxu0 %v204
    %319 = vmatprep.subr.bf16.mxu0 0
    %320 = vmatpush1.bf16.msra.mxu0 %v201
    %321 = vmatprep.subr.bf16.mxu0 0
    %322 = vmatpush1.bf16.msra.mxu0 %v198
    %323 = vmatprep.subr.bf16.mxu0 0
    %324 = vmatpush1.bf16.msra.mxu0 %v195
    %325 = vmatprep.subr.bf16.mxu0 0
    %326 = vmatpush1.bf16.msra.mxu0 %v192
    %327 = vmatprep.subr.bf16.mxu0 0
    %328 = vmatpush2.bf16.msra.mxu0 0
    %329 = vmatprep.subr.bf16.mxu0 0
    %330 = vmatpush2.bf16.msra.mxu0 0
    %331 = vmatprep.subr.bf16.mxu0 0
    %332 = vmatpush2.bf16.msra.mxu0 0
    %333 = vmatprep.subr.bf16.mxu0 0
    %334 = vmatpush2.bf16.msra.mxu0 0
    %335 = vmatprep.subr.bf16.mxu0 0
    %336 = vmatpush2.bf16.msra.mxu0 0
    %337 = vmatprep.subr.bf16.mxu0 0
    %338 = vmatpush2.bf16.msra.mxu0 0
    %339 = vmatprep.subr.bf16.mxu0 0
    %340 = vmatpush2.bf16.msra.mxu0 0
    %341 = vmatprep.subr.bf16.mxu0 0
    %342 = vmatpush2.bf16.msra.mxu0 0
    %343 = vmatprep.mubr.bf16.mxu0 0
    %344 = vmatmul.mubr.bf16.gmra.mxu0 %v102
    %v345 = vpop.f32.mrf.mxu0
    %v346 = vadd.f32 %v82, %v345
    %v347 = vpop.f32.mrf.mxu0
    %v348 = vpop.f32.mrf.mxu0
    %v349 = vadd.f32 %v82, %v348
    %v350 = vpop.f32.mrf.mxu0
    %351 = vmatprep.mubr.bf16.mxu0 0
    %352 = vmatmul.mubr.bf16.gmra.mxu0 %v103
    %v353 = vpop.f32.mrf.mxu0
    %v354 = vadd.f32 %v82, %v353
    %v355 = vpop.f32.mrf.mxu0
    %v356 = vpop.f32.mrf.mxu0
    %v357 = vadd.f32 %v82, %v356
    %v358 = vpop.f32.mrf.mxu0
    %359 = vmatprep.mubr.bf16.mxu0 0
    %360 = vmatmul.mubr.bf16.gmra.mxu0 %v104
    %v361 = vpop.f32.mrf.mxu0
    %v362 = vadd.f32 %v82, %v361
    %v363 = vpop.f32.mrf.mxu0
    %v364 = vpop.f32.mrf.mxu0
    %v365 = vadd.f32 %v82, %v364
    %v366 = vpop.f32.mrf.mxu0
    %367 = vmatprep.mubr.bf16.mxu0 0
    %368 = vmatmul.mubr.bf16.gmra.mxu0 %v105
    %v369 = vpop.f32.mrf.mxu0
    %v370 = vadd.f32 %v82, %v369
    %v371 = vpop.f32.mrf.mxu0
    %v372 = vpop.f32.mrf.mxu0
    %v373 = vadd.f32 %v82, %v372
    %v374 = vpop.f32.mrf.mxu0
    %375 = vdwg.mxu0
    %376 = vst [vmem:[%s3] sm:$0xff] %v273
    %377 = vst [vmem:[%s3 + $0x8] sm:$0xff] %v275
    %378 = vst [vmem:[%s3 + $0x10] sm:$0xff] %v346
    %379 = vst [vmem:[%s3 + $0x18] sm:$0xff] %v277
    %380 = vst [vmem:[%s3 + $0x20] sm:$0xff] %v279
    %381 = vst [vmem:[%s3 + $0x28] sm:$0xff] %v349
    %382 = vst [vmem:[%s3 + $0x30] sm:$0xff] %v283
    %383 = vst [vmem:[%s3 + $0x38] sm:$0xff] %v285
    %384 = vst [vmem:[%s3 + $0x40] sm:$0xff] %v354
    %385 = vst [vmem:[%s3 + $0x48] sm:$0xff] %v287
    %386 = vst [vmem:[%s3 + $0x50] sm:$0xff] %v289
    %387 = vst [vmem:[%s3 + $0x58] sm:$0xff] %v357
    %388 = vst [vmem:[%s3 + $0x60] sm:$0xff] %v293
    %389 = vst [vmem:[%s3 + $0x68] sm:$0xff] %v295
    %390 = vst [vmem:[%s3 + $0x70] sm:$0xff] %v362
    %391 = vst [vmem:[%s3 + $0x78] sm:$0xff] %v297
    %392 = vst [vmem:[%s3 + $0x80] sm:$0xff] %v299
    %393 = vst [vmem:[%s3 + $0x88] sm:$0xff] %v365
    %394 = vst [vmem:[%s3 + $0x90] sm:$0xff] %v303
    %395 = vst [vmem:[%s3 + $0x98] sm:$0xff] %v305
    %396 = vst [vmem:[%s3 + $0xa0] sm:$0xff] %v370
    %397 = vst [vmem:[%s3 + $0xa8] sm:$0xff] %v307
    %398 = vst [vmem:[%s3 + $0xb0] sm:$0xff] %v309
    %399 = vst [vmem:[%s3 + $0xb8] sm:$0xff] %v373
    // Predicated region
    $region18: #{_forward_padded.4} parent=1 // pred_check
      _
    $region19: #{_forward_padded.4} parent=1 // pred_check_branch
      %401 = sbr.rel (0) target = $region21
    $region20: #{_forward_padded.4} parent=1 // pred_region
      _
    $region21: #{_forward_padded.4} parent=1 // pred_fallthru
      _
    // Predicated region
    $region22: #{_forward_padded.4} parent=1 // pred_check
      _
    $region23: #{_forward_padded.4} parent=1 // pred_check_branch
      %403 = sbr.rel (0) target = $region25
    $region24: #{_forward_padded.4} parent=1 // pred_region
      _
    $region25: #{_forward_padded.4} parent=1 // pred_fallthru
      _
    %404 = vsyncpa [#allocation3], 1

// kernel: _forward_padded.6
$region0: #{_forward_padded.6}
  #allocation0 [shape = 'u32[]', space=smem, size = 0x4, offset = 0x4, fixed_abs, tag = 'smem constant byte address 0x4 - core index']
  #allocation1 [shape = 'u32[144,128]{1,0:T(1,128)}', space=vmem, size = 0x12000, scoped, tag = 'internal scratch']
  %s0 = inlined_call_operand.vmem [shape: bf16[64,128], index: 0, kind: input, shape index: {}]
  %s1 = inlined_call_operand.vmem [shape: bf16[128,384], index: 1, kind: input, shape index: {}]
  %s2 = inlined_call_operand.vmem [shape: f32[1,384], index: 2, kind: input, shape index: {}]
  %s3 = inlined_call_operand.vmem [shape: f32[64,384], index: 3, kind: output, shape index: {}]
  %s4 = sld [smem:[#allocation0]]
  $region22: #{_forward_padded.6} parent=0
    _
  %s6 = ssub.s32 1, %s4
  %s7 = scalar_select 0, %s6, %s4
  // Predicated region
  $region2: #{_forward_padded.6} parent=0 // pred_check
    _
  $region3: #{_forward_padded.6} parent=0 // pred_check_branch
    %9 = sbr.rel (0) target = $region5
  $region4: #{_forward_padded.6} parent=0 // pred_region
    _
  $region5: #{_forward_padded.6} parent=0 // pred_fallthru
    _
  // Predicated region
  $region6: #{_forward_padded.6} parent=0 // pred_check
    _
  $region7: #{_forward_padded.6} parent=0 // pred_check_branch
    %11 = sbr.rel (0) target = $region9
  $region8: #{_forward_padded.6} parent=0 // pred_region
    _
  $region9: #{_forward_padded.6} parent=0 // pred_fallthru
    _
  // Predicated region
  $region10: #{_forward_padded.6} parent=0 // pred_check
    _
  $region11: #{_forward_padded.6} parent=0 // pred_check_branch
    %13 = sbr.rel (0) target = $region13
  $region12: #{_forward_padded.6} parent=0 // pred_region
    _
  $region13: #{_forward_padded.6} parent=0 // pred_fallthru
    _
  %v15 = vld [vmem:[%s0] sm:$0xf]
  %v16 = vld [vmem:[%s0 + $0x4] sm:$0xf]
  %v17 = vld [vmem:[%s0 + $0x8] sm:$0xf]
  %v18 = vld [vmem:[%s0 + $0xc] sm:$0xf]
  %v19 = vld [vmem:[%s0 + $0x10] sm:$0xf]
  %v20 = vld [vmem:[%s0 + $0x14] sm:$0xf]
  %v21 = vld [vmem:[%s0 + $0x18] sm:$0xf]
  %v22 = vld [vmem:[%s0 + $0x1c] sm:$0xf]
  %v23 = vld [vmem:[%s1] sm:$0xff]
  %v24 = vld [vmem:[%s1 + $0x8] sm:$0xf]
  %v25 = vld [vmem:[%s1 + $0xc] sm:$0xff]
  %v26 = vld [vmem:[%s1 + $0x14] sm:$0xf]
  %v27 = vld [vmem:[%s1 + $0x18] sm:$0xff]
  %v28 = vld [vmem:[%s1 + $0x20] sm:$0xf]
  %v29 = vld [vmem:[%s1 + $0x24] sm:$0xff]
  %v30 = vld [vmem:[%s1 + $0x2c] sm:$0xf]
  %v31 = vld [vmem:[%s1 + $0x30] sm:$0xff]
  %v32 = vld [vmem:[%s1 + $0x38] sm:$0xf]
  %v33 = vld [vmem:[%s1 + $0x3c] sm:$0xff]
  %v34 = vld [vmem:[%s1 + $0x44] sm:$0xf]
  %v35 = vld [vmem:[%s1 + $0x48] sm:$0xff]
  %v36 = vld [vmem:[%s1 + $0x50] sm:$0xf]
  %v37 = vld [vmem:[%s1 + $0x54] sm:$0xff]
  %v38 = vld [vmem:[%s1 + $0x5c] sm:$0xf]
  %v39 = vld [vmem:[%s1 + $0x60] sm:$0xff]
  %v40 = vld [vmem:[%s1 + $0x68] sm:$0xf]
  %v41 = vld [vmem:[%s1 + $0x6c] sm:$0xff]
  %v42 = vld [vmem:[%s1 + $0x74] sm:$0xf]
  %v43 = vld [vmem:[%s1 + $0x78] sm:$0xff]
  %v44 = vld [vmem:[%s1 + $0x80] sm:$0xf]
  %v45 = vld [vmem:[%s1 + $0x84] sm:$0xff]
  %v46 = vld [vmem:[%s1 + $0x8c] sm:$0xf]
  %v47 = vld [vmem:[%s1 + $0x90] sm:$0xff]
  %v48 = vld [vmem:[%s1 + $0x98] sm:$0xf]
  %v49 = vld [vmem:[%s1 + $0x9c] sm:$0xff]
  %v50 = vld [vmem:[%s1 + $0xa4] sm:$0xf]
  %v51 = vld [vmem:[%s1 + $0xa8] sm:$0xff]
  %v52 = vld [vmem:[%s1 + $0xb0] sm:$0xf]
  %v53 = vld [vmem:[%s1 + $0xb4] sm:$0xff]
  %v54 = vld [vmem:[%s1 + $0xbc] sm:$0xf]
  %v55 = vld [vmem:[%s2] sm:$0x7]
  %v57 = vlaneseq
  %v58 = vshrl.u32 %v57, 7
  %v59 = vsub.s32 0, %v58
  %v60 = vrot.slane %v55, %v59
  %v61 = vlaneseq
  %v62 = vshrl.u32 %v61, 7
  %v63 = vsub.s32 1, %v62
  %v64 = vrot.slane %v55, %v63
  %v65 = vlaneseq
  %v66 = vshrl.u32 %v65, 7
  %v67 = vsub.s32 2, %v66
  %v68 = vrot.slane %v55, %v67
  %v80 = vunpack.c.l.b16 %v15
  %v81 = vunpack.c.l.b16 %v16
  %v82 = vunpack.c.l.b16 %v17
  %v83 = vunpack.c.l.b16 %v18
  %v84 = vunpack.c.l.b16 %v19
  %v85 = vunpack.c.l.b16 %v20
  %v86 = vunpack.c.l.b16 %v21
  %v87 = vunpack.c.l.b16 %v22
  %v88 = vpack.c.b16 %v81, %v80
  %v89 = vpack.c.b16 %v83, %v82
  %v90 = vpack.c.b16 %v85, %v84
  %v91 = vpack.c.b16 %v87, %v86
  %v128 = vunpack.c.l.b16 %v23
  %v129 = vunpack.c.h.b16 %v23
  %v130 = vunpack.c.l.b16 %v24
  %v131 = vunpack.c.l.b16 %v25
  %v132 = vunpack.c.h.b16 %v25
  %v133 = vunpack.c.l.b16 %v26
  %v134 = vunpack.c.l.b16 %v27
  %v135 = vunpack.c.h.b16 %v27
  %v136 = vunpack.c.l.b16 %v28
  %v137 = vunpack.c.l.b16 %v29
  %v138 = vunpack.c.h.b16 %v29
  %v139 = vunpack.c.l.b16 %v30
  %v140 = vunpack.c.l.b16 %v31
  %v141 = vunpack.c.h.b16 %v31
  %v142 = vunpack.c.l.b16 %v32
  %v143 = vunpack.c.l.b16 %v33
  %v144 = vunpack.c.h.b16 %v33
  %v145 = vunpack.c.l.b16 %v34
  %v146 = vunpack.c.l.b16 %v35
  %v147 = vunpack.c.h.b16 %v35
  %v148 = vunpack.c.l.b16 %v36
  %v149 = vunpack.c.l.b16 %v37
  %v150 = vunpack.c.h.b16 %v37
  %v151 = vunpack.c.l.b16 %v38
  %v152 = vunpack.c.l.b16 %v39
  %v153 = vunpack.c.h.b16 %v39
  %v154 = vunpack.c.l.b16 %v40
  %v155 = vunpack.c.l.b16 %v41
  %v156 = vunpack.c.h.b16 %v41
  %v157 = vunpack.c.l.b16 %v42
  %v158 = vunpack.c.l.b16 %v43
  %v159 = vunpack.c.h.b16 %v43
  %v160 = vunpack.c.l.b16 %v44
  %v161 = vunpack.c.l.b16 %v45
  %v162 = vunpack.c.h.b16 %v45
  %v163 = vunpack.c.l.b16 %v46
  %v164 = vunpack.c.l.b16 %v47
  %v165 = vunpack.c.h.b16 %v47
  %v166 = vunpack.c.l.b16 %v48
  %v167 = vunpack.c.l.b16 %v49
  %v168 = vunpack.c.h.b16 %v49
  %v169 = vunpack.c.l.b16 %v50
  %v170 = vunpack.c.l.b16 %v51
  %v171 = vunpack.c.h.b16 %v51
  %v172 = vunpack.c.l.b16 %v52
  %v173 = vunpack.c.l.b16 %v53
  %v174 = vunpack.c.h.b16 %v53
  %v175 = vunpack.c.l.b16 %v54
  %v176 = vpack.c.b16 %v131, %v128
  %v177 = vpack.c.b16 %v132, %v129
  %v178 = vpack.c.b16 %v133, %v130
  %v179 = vpack.c.b16 %v137, %v134
  %v180 = vpack.c.b16 %v138, %v135
  %v181 = vpack.c.b16 %v139, %v136
  %v182 = vpack.c.b16 %v143, %v140
  %v183 = vpack.c.b16 %v144, %v141
  %v184 = vpack.c.b16 %v145, %v142
  %v185 = vpack.c.b16 %v149, %v146
  %v186 = vpack.c.b16 %v150, %v147
  %v187 = vpack.c.b16 %v151, %v148
  %v188 = vpack.c.b16 %v155, %v152
  %v189 = vpack.c.b16 %v156, %v153
  %v190 = vpack.c.b16 %v157, %v154
  %v191 = vpack.c.b16 %v161, %v158
  %v192 = vpack.c.b16 %v162, %v159
  %v193 = vpack.c.b16 %v163, %v160
  %v194 = vpack.c.b16 %v167, %v164
  %v195 = vpack.c.b16 %v168, %v165
  %v196 = vpack.c.b16 %v169, %v166
  %v197 = vpack.c.b16 %v173, %v170
  %v198 = vpack.c.b16 %v174, %v171
  %v199 = vpack.c.b16 %v175, %v172
  %224 = vmatprep.subr.bf16.mxu0 %v198
  %225 = vmatpush1.bf16.msra.mxu0 %v197
  %226 = vmatprep.subr.bf16.mxu0 %v195
  %227 = vmatpush1.bf16.msra.mxu0 %v194
  %228 = vmatprep.subr.bf16.mxu0 %v192
  %229 = vmatpush1.bf16.msra.mxu0 %v191
  %230 = vmatprep.subr.bf16.mxu0 %v189
  %231 = vmatpush1.bf16.msra.mxu0 %v188
  %232 = vmatprep.subr.bf16.mxu0 %v186
  %233 = vmatpush1.bf16.msra.mxu0 %v185
  %234 = vmatprep.subr.bf16.mxu0 %v183
  %235 = vmatpush1.bf16.msra.mxu0 %v182
  %236 = vmatprep.subr.bf16.mxu0 %v180
  %237 = vmatpush1.bf16.msra.mxu0 %v179
  %238 = vmatprep.subr.bf16.mxu0 %v177
  %239 = vmatpush1.bf16.msra.mxu0 %v176
  %240 = vmatprep.subr.bf16.mxu0 0
  %241 = vmatpush2.bf16.msra.mxu0 0
  %242 = vmatprep.subr.bf16.mxu0 0
  %243 = vmatpush2.bf16.msra.mxu0 0
  %244 = vmatprep.subr.bf16.mxu0 0
  %245 = vmatpush2.bf16.msra.mxu0 0
  %246 = vmatprep.subr.bf16.mxu0 0
  %247 = vmatpush2.bf16.msra.mxu0 0
  %248 = vmatprep.subr.bf16.mxu0 0
  %249 = vmatpush2.bf16.msra.mxu0 0
  %250 = vmatprep.subr.bf16.mxu0 0
  %251 = vmatpush2.bf16.msra.mxu0 0
  %252 = vmatprep.subr.bf16.mxu0 0
  %253 = vmatpush2.bf16.msra.mxu0 0
  %254 = vmatprep.subr.bf16.mxu0 0
  %255 = vmatpush2.bf16.msra.mxu0 0
  %256 = vmatprep.mubr.bf16.mxu0 0
  %257 = vmatmul.mubr.bf16.gmra.mxu0 %v88
  %v258 = vpop.f32.mrf.mxu0
  %v259 = vadd.f32 %v60, %v258
  %v260 = vpop.f32.mrf.mxu0
  %v261 = vadd.f32 %v64, %v260
  %v262 = vpop.f32.mrf.mxu0
  %v263 = vadd.f32 %v60, %v262
  %v264 = vpop.f32.mrf.mxu0
  %v265 = vadd.f32 %v64, %v264
  %266 = vmatprep.mubr.bf16.mxu0 0
  %267 = vmatmul.mubr.bf16.gmra.mxu0 %v89
  %v268 = vpop.f32.mrf.mxu0
  %v269 = vadd.f32 %v60, %v268
  %v270 = vpop.f32.mrf.mxu0
  %v271 = vadd.f32 %v64, %v270
  %v272 = vpop.f32.mrf.mxu0
  %v273 = vadd.f32 %v60, %v272
  %v274 = vpop.f32.mrf.mxu0
  %v275 = vadd.f32 %v64, %v274
  %276 = vmatprep.mubr.bf16.mxu0 0
  %277 = vmatmul.mubr.bf16.gmra.mxu0 %v90
  %v278 = vpop.f32.mrf.mxu0
  %v279 = vadd.f32 %v60, %v278
  %v280 = vpop.f32.mrf.mxu0
  %v281 = vadd.f32 %v64, %v280
  %v282 = vpop.f32.mrf.mxu0
  %v283 = vadd.f32 %v60, %v282
  %v284 = vpop.f32.mrf.mxu0
  %v285 = vadd.f32 %v64, %v284
  %286 = vmatprep.mubr.bf16.mxu0 0
  %287 = vmatmul.mubr.bf16.gmra.mxu0 %v91
  %v288 = vpop.f32.mrf.mxu0
  %v289 = vadd.f32 %v60, %v288
  %v290 = vpop.f32.mrf.mxu0
  %v291 = vadd.f32 %v64, %v290
  %v292 = vpop.f32.mrf.mxu0
  %v293 = vadd.f32 %v60, %v292
  %v294 = vpop.f32.mrf.mxu0
  %v295 = vadd.f32 %v64, %v294
  %296 = vdwg.mxu0
  %297 = vmatprep.subr.bf16.mxu0 0
  %298 = vmatpush1.bf16.msra.mxu0 %v199
  %299 = vmatprep.subr.bf16.mxu0 0
  %300 = vmatpush1.bf16.msra.mxu0 %v196
  %301 = vmatprep.subr.bf16.mxu0 0
  %302 = vmatpush1.bf16.msra.mxu0 %v193
  %303 = vmatprep.subr.bf16.mxu0 0
  %304 = vmatpush1.bf16.msra.mxu0 %v190
  %305 = vmatprep.subr.bf16.mxu0 0
  %306 = vmatpush1.bf16.msra.mxu0 %v187
  %307 = vmatprep.subr.bf16.mxu0 0
  %308 = vmatpush1.bf16.msra.mxu0 %v184
  %309 = vmatprep.subr.bf16.mxu0 0
  %310 = vmatpush1.bf16.msra.mxu0 %v181
  %311 = vmatprep.subr.bf16.mxu0 0
  %312 = vmatpush1.bf16.msra.mxu0 %v178
  %313 = vmatprep.subr.bf16.mxu0 0
  %314 = vmatpush2.bf16.msra.mxu0 0
  %315 = vmatprep.subr.bf16.mxu0 0
  %316 = vmatpush2.bf16.msra.mxu0 0
  %317 = vmatprep.subr.bf16.mxu0 0
  %318 = vmatpush2.bf16.msra.mxu0 0
  %319 = vmatprep.subr.bf16.mxu0 0
  %320 = vmatpush2.bf16.msra.mxu0 0
  %321 = vmatprep.subr.bf16.mxu0 0
  %322 = vmatpush2.bf16.msra.mxu0 0
  %323 = vmatprep.subr.bf16.mxu0 0
  %324 = vmatpush2.bf16.msra.mxu0 0
  %325 = vmatprep.subr.bf16.mxu0 0
  %326 = vmatpush2.bf16.msra.mxu0 0
  %327 = vmatprep.subr.bf16.mxu0 0
  %328 = vmatpush2.bf16.msra.mxu0 0
  %329 = vmatprep.mubr.bf16.mxu0 0
  %330 = vmatmul.mubr.bf16.gmra.mxu0 %v88
  %v331 = vpop.f32.mrf.mxu0
  %v332 = vadd.f32 %v68, %v331
  %v333 = vpop.f32.mrf.mxu0
  %v334 = vpop.f32.mrf.mxu0
  %v335 = vadd.f32 %v68, %v334
  %v336 = vpop.f32.mrf.mxu0
  %337 = vmatprep.mubr.bf16.mxu0 0
  %338 = vmatmul.mubr.bf16.gmra.mxu0 %v89
  %v339 = vpop.f32.mrf.mxu0
  %v340 = vadd.f32 %v68, %v339
  %v341 = vpop.f32.mrf.mxu0
  %v342 = vpop.f32.mrf.mxu0
  %v343 = vadd.f32 %v68, %v342
  %v344 = vpop.f32.mrf.mxu0
  %345 = vmatprep.mubr.bf16.mxu0 0
  %346 = vmatmul.mubr.bf16.gmra.mxu0 %v90
  %v347 = vpop.f32.mrf.mxu0
  %v348 = vadd.f32 %v68, %v347
  %v349 = vpop.f32.mrf.mxu0
  %v350 = vpop.f32.mrf.mxu0
  %v351 = vadd.f32 %v68, %v350
  %v352 = vpop.f32.mrf.mxu0
  %353 = vmatprep.mubr.bf16.mxu0 0
  %354 = vmatmul.mubr.bf16.gmra.mxu0 %v91
  %v355 = vpop.f32.mrf.mxu0
  %v356 = vadd.f32 %v68, %v355
  %v357 = vpop.f32.mrf.mxu0
  %v358 = vpop.f32.mrf.mxu0
  %v359 = vadd.f32 %v68, %v358
  %v360 = vpop.f32.mrf.mxu0
  %361 = vdwg.mxu0
  %362 = vst [vmem:[%s3] sm:$0xff] %v259
  %363 = vst [vmem:[%s3 + $0x8] sm:$0xff] %v261
  %364 = vst [vmem:[%s3 + $0x10] sm:$0xff] %v332
  %365 = vst [vmem:[%s3 + $0x18] sm:$0xff] %v263
  %366 = vst [vmem:[%s3 + $0x20] sm:$0xff] %v265
  %367 = vst [vmem:[%s3 + $0x28] sm:$0xff] %v335
  %368 = vst [vmem:[%s3 + $0x30] sm:$0xff] %v269
  %369 = vst [vmem:[%s3 + $0x38] sm:$0xff] %v271
  %370 = vst [vmem:[%s3 + $0x40] sm:$0xff] %v340
  %371 = vst [vmem:[%s3 + $0x48] sm:$0xff] %v273
  %372 = vst [vmem:[%s3 + $0x50] sm:$0xff] %v275
  %373 = vst [vmem:[%s3 + $0x58] sm:$0xff] %v343
  %374 = vst [vmem:[%s3 + $0x60] sm:$0xff] %v279
  %375 = vst [vmem:[%s3 + $0x68] sm:$0xff] %v281
  %376 = vst [vmem:[%s3 + $0x70] sm:$0xff] %v348
  %377 = vst [vmem:[%s3 + $0x78] sm:$0xff] %v283
  %378 = vst [vmem:[%s3 + $0x80] sm:$0xff] %v285
  %379 = vst [vmem:[%s3 + $0x88] sm:$0xff] %v351
  %380 = vst [vmem:[%s3 + $0x90] sm:$0xff] %v289
  %381 = vst [vmem:[%s3 + $0x98] sm:$0xff] %v291
  %382 = vst [vmem:[%s3 + $0xa0] sm:$0xff] %v356
  %383 = vst [vmem:[%s3 + $0xa8] sm:$0xff] %v293
  %384 = vst [vmem:[%s3 + $0xb0] sm:$0xff] %v295
  %385 = vst [vmem:[%s3 + $0xb8] sm:$0xff] %v359
  // Predicated region
  $region14: #{_forward_padded.6} parent=0 // pred_check
    _
  $region15: #{_forward_padded.6} parent=0 // pred_check_branch
    %387 = sbr.rel (0) target = $region17
  $region16: #{_forward_padded.6} parent=0 // pred_region
    _
  $region17: #{_forward_padded.6} parent=0 // pred_fallthru
    _
  // Predicated region
  $region18: #{_forward_padded.6} parent=0 // pred_check
    _
  $region19: #{_forward_padded.6} parent=0 // pred_check_branch
    %389 = sbr.rel (0) target = $region21
  $region20: #{_forward_padded.6} parent=0 // pred_region
    _
  $region21: #{_forward_padded.6} parent=0 // pred_fallthru
    _

// kernel: _forward_padded.5
$region0: #{_forward_padded.5}
  #allocation0 [shape = 'u32[]', space=smem, size = 0x4, offset = 0x4, fixed_abs, tag = 'smem constant byte address 0x4 - core index']
  #allocation1 [shape = 'u32[144,128]{1,0:T(1,128)}', space=vmem, size = 0x12000, scoped, tag = 'internal scratch']
  #allocation2 [shape = 'f32[8,128]{1,0:T(8,128)}', space=vmem, size = 0x1000, scoped, tag = 'scratch operand']
  %s0 = inlined_call_operand.vmem [shape: f32[8,8,384], index: 0, kind: input, shape index: {}]
  %s1 = inlined_call_operand.vmem [shape: bf16[128,384], index: 1, kind: input, shape index: {}]
  %s2 = inlined_call_operand.vmem [shape: f32[1,128], index: 2, kind: input, shape index: {}]
  %s3 = inlined_call_operand.vmem [shape: bf16[8,8,128], index: 3, kind: output, shape index: {}]
  %s4 = sld [smem:[#allocation0]]
  $region26: #{_forward_padded.5} parent=0
    _
  %s6 = ssub.s32 1, %s4
  %s7 = scalar_select 0, %s6, %s4
  // Predicated region
  $region2: #{_forward_padded.5} parent=0 // pred_check
    _
  $region3: #{_forward_padded.5} parent=0 // pred_check_branch
    %9 = sbr.rel (0) target = $region5
  $region4: #{_forward_padded.5} parent=0 // pred_region
    _
  $region5: #{_forward_padded.5} parent=0 // pred_fallthru
    _
  // Predicated region
  $region6: #{_forward_padded.5} parent=0 // pred_check
    _
  $region7: #{_forward_padded.5} parent=0 // pred_check_branch
    %11 = sbr.rel (0) target = $region9
  $region8: #{_forward_padded.5} parent=0 // pred_region
    _
  $region9: #{_forward_padded.5} parent=0 // pred_fallthru
    _
  // Predicated region
  $region10: #{_forward_padded.5} parent=0 // pred_check
    _
  $region11: #{_forward_padded.5} parent=0 // pred_check_branch
    %13 = sbr.rel (0) target = $region13
  $region12: #{_forward_padded.5} parent=0 // pred_region
    _
  $region13: #{_forward_padded.5} parent=0 // pred_fallthru
    _
  %p15 = scmp.eq.s32.totalorder 0, 0
  // Predicated region
  $region14: #{_forward_padded.5} parent=0 // pred_check
    %p16 = pneg %p15
  $region15: #{_forward_padded.5} parent=0 // pred_check_branch
    %18 = sbr.rel (%p16) target = $region17
  $region16: #{_forward_padded.5} parent=0 // pred_region
    %19 = vst [vmem:[#allocation2] sm:$0xff] 0.0
  $region17: #{_forward_padded.5} parent=0 // pred_fallthru
    _
  %v20 = vld [vmem:[%s1] sm:$0xff]
  %v21 = vld [vmem:[%s1 + $0x8] sm:$0xf]
  %v22 = vld [vmem:[%s1 + $0xc] sm:$0xff]
  %v23 = vld [vmem:[%s1 + $0x14] sm:$0xf]
  %v24 = vld [vmem:[%s1 + $0x18] sm:$0xff]
  %v25 = vld [vmem:[%s1 + $0x20] sm:$0xf]
  %v26 = vld [vmem:[%s1 + $0x24] sm:$0xff]
  %v27 = vld [vmem:[%s1 + $0x2c] sm:$0xf]
  %v28 = vld [vmem:[%s1 + $0x30] sm:$0xff]
  %v29 = vld [vmem:[%s1 + $0x38] sm:$0xf]
  %v30 = vld [vmem:[%s1 + $0x3c] sm:$0xff]
  %v31 = vld [vmem:[%s1 + $0x44] sm:$0xf]
  %v32 = vld [vmem:[%s1 + $0x48] sm:$0xff]
  %v33 = vld [vmem:[%s1 + $0x50] sm:$0xf]
  %v34 = vld [vmem:[%s1 + $0x54] sm:$0xff]
  %v35 = vld [vmem:[%s1 + $0x5c] sm:$0xf]
  %v36 = vld [vmem:[%s1 + $0x60] sm:$0xff]
  %v37 = vld [vmem:[%s1 + $0x68] sm:$0xf]
  %v38 = vld [vmem:[%s1 + $0x6c] sm:$0xff]
  %v39 = vld [vmem:[%s1 + $0x74] sm:$0xf]
  %v40 = vld [vmem:[%s1 + $0x78] sm:$0xff]
  %v41 = vld [vmem:[%s1 + $0x80] sm:$0xf]
  %v42 = vld [vmem:[%s1 + $0x84] sm:$0xff]
  %v43 = vld [vmem:[%s1 + $0x8c] sm:$0xf]
  %v44 = vld [vmem:[%s1 + $0x90] sm:$0xff]
  %v45 = vld [vmem:[%s1 + $0x98] sm:$0xf]
  %v46 = vld [vmem:[%s1 + $0x9c] sm:$0xff]
  %v47 = vld [vmem:[%s1 + $0xa4] sm:$0xf]
  %v48 = vld [vmem:[%s1 + $0xa8] sm:$0xff]
  %v49 = vld [vmem:[%s1 + $0xb0] sm:$0xf]
  %v50 = vld [vmem:[%s1 + $0xb4] sm:$0xff]
  %v51 = vld [vmem:[%s1 + $0xbc] sm:$0xf]
  %v52 = vld [vmem:[%s2] sm:$0x1]
  %v54 = vlaneseq
  %v55 = vshrl.u32 %v54, 7
  %v56 = vsub.s32 0, %v55
  %v57 = vrot.slane %v52, %v56
  %v59 = vld [vmem:[#allocation2] sm:$0xff]
  %v60 = vpack.c.bf16 %v59, %v59
  %v93 = vunpack.c.l.b16 %v20
  %v94 = vunpack.c.h.b16 %v20
  %v95 = vunpack.c.l.b16 %v21
  %v96 = vunpack.c.l.b16 %v22
  %v97 = vunpack.c.h.b16 %v22
  %v98 = vunpack.c.l.b16 %v23
  %v99 = vunpack.c.l.b16 %v24
  %v100 = vunpack.c.h.b16 %v24
  %v101 = vunpack.c.l.b16 %v25
  %v102 = vunpack.c.l.b16 %v26
  %v103 = vunpack.c.h.b16 %v26
  %v104 = vunpack.c.l.b16 %v27
  %v105 = vunpack.c.l.b16 %v28
  %v106 = vunpack.c.h.b16 %v28
  %v107 = vunpack.c.l.b16 %v29
  %v108 = vunpack.c.l.b16 %v30
  %v109 = vunpack.c.h.b16 %v30
  %v110 = vunpack.c.l.b16 %v31
  %v111 = vunpack.c.l.b16 %v32
  %v112 = vunpack.c.h.b16 %v32
  %v113 = vunpack.c.l.b16 %v33
  %v114 = vunpack.c.l.b16 %v34
  %v115 = vunpack.c.h.b16 %v34
  %v116 = vunpack.c.l.b16 %v35
  %v117 = vunpack.c.l.b16 %v36
  %v118 = vunpack.c.h.b16 %v36
  %v119 = vunpack.c.l.b16 %v37
  %v120 = vunpack.c.l.b16 %v38
  %v121 = vunpack.c.h.b16 %v38
  %v122 = vunpack.c.l.b16 %v39
  %v123 = vunpack.c.l.b16 %v40
  %v124 = vunpack.c.h.b16 %v40
  %v125 = vunpack.c.l.b16 %v41
  %v126 = vunpack.c.l.b16 %v42
  %v127 = vunpack.c.h.b16 %v42
  %v128 = vunpack.c.l.b16 %v43
  %v129 = vunpack.c.l.b16 %v44
  %v130 = vunpack.c.h.b16 %v44
  %v131 = vunpack.c.l.b16 %v45
  %v132 = vunpack.c.l.b16 %v46
  %v133 = vunpack.c.h.b16 %v46
  %v134 = vunpack.c.l.b16 %v47
  %v135 = vunpack.c.l.b16 %v48
  %v136 = vunpack.c.h.b16 %v48
  %v137 = vunpack.c.l.b16 %v49
  %v138 = vunpack.c.l.b16 %v50
  %v139 = vunpack.c.h.b16 %v50
  %v140 = vunpack.c.l.b16 %v51
  %v141 = vpack.c.b16 %v96, %v93
  %v142 = vpack.c.b16 %v97, %v94
  %v143 = vpack.c.b16 %v98, %v95
  %v144 = vpack.c.b16 %v102, %v99
  %v145 = vpack.c.b16 %v103, %v100
  %v146 = vpack.c.b16 %v104, %v101
  %v147 = vpack.c.b16 %v108, %v105
  %v148 = vpack.c.b16 %v109, %v106
  %v149 = vpack.c.b16 %v110, %v107
  %v150 = vpack.c.b16 %v114, %v111
  %v151 = vpack.c.b16 %v115, %v112
  %v152 = vpack.c.b16 %v116, %v113
  %v153 = vpack.c.b16 %v120, %v117
  %v154 = vpack.c.b16 %v121, %v118
  %v155 = vpack.c.b16 %v122, %v119
  %v156 = vpack.c.b16 %v126, %v123
  %v157 = vpack.c.b16 %v127, %v124
  %v158 = vpack.c.b16 %v128, %v125
  %v159 = vpack.c.b16 %v132, %v129
  %v160 = vpack.c.b16 %v133, %v130
  %v161 = vpack.c.b16 %v134, %v131
  %v162 = vpack.c.b16 %v138, %v135
  %v163 = vpack.c.b16 %v139, %v136
  %v164 = vpack.c.b16 %v140, %v137
  %189 = vmatprep.subr.bf16.mxu0 %v163
  %190 = vmatpush1.bf16.msra.mxu0 %v162
  %191 = vmatprep.subr.bf16.mxu0 %v160
  %192 = vmatpush1.bf16.msra.mxu0 %v159
  %193 = vmatprep.subr.bf16.mxu0 %v157
  %194 = vmatpush1.bf16.msra.mxu0 %v156
  %195 = vmatprep.subr.bf16.mxu0 %v154
  %196 = vmatpush1.bf16.msra.mxu0 %v153
  %197 = vmatprep.subr.bf16.mxu0 %v151
  %198 = vmatpush1.bf16.msra.mxu0 %v150
  %199 = vmatprep.subr.bf16.mxu0 %v148
  %200 = vmatpush1.bf16.msra.mxu0 %v147
  %201 = vmatprep.subr.bf16.mxu0 %v145
  %202 = vmatpush1.bf16.msra.mxu0 %v144
  %203 = vmatprep.subr.bf16.mxu0 %v142
  %204 = vmatpush1.bf16.msra.mxu0 %v141
  %205 = vmatprep.subr.bf16.mxu0 0
  %206 = vmatpush2.bf16.msra.mxu0 0
  %207 = vmatprep.subr.bf16.mxu0 0
  %208 = vmatpush2.bf16.msra.mxu0 0
  %209 = vmatprep.subr.bf16.mxu0 0
  %210 = vmatpush2.bf16.msra.mxu0 0
  %211 = vmatprep.subr.bf16.mxu0 0
  %212 = vmatpush2.bf16.msra.mxu0 0
  %213 = vmatprep.subr.bf16.mxu0 0
  %214 = vmatpush2.bf16.msra.mxu0 0
  %215 = vmatprep.subr.bf16.mxu0 0
  %216 = vmatpush2.bf16.msra.mxu0 0
  %217 = vmatprep.subr.bf16.mxu0 0
  %218 = vmatpush2.bf16.msra.mxu0 0
  %219 = vmatprep.subr.bf16.mxu0 0
  %220 = vmatpush2.bf16.msra.mxu0 0
  %221 = vmatprep.mubr.bf16.mxu0 0
  %222 = vmatmul.mubr.bf16.gmra.mxu0 %v60
  %v223 = vpop.f32.mrf.mxu0
  %v224 = vadd.f32 0.0, %v223
  %v225 = vpop.f32.mrf.mxu0
  %v226 = vadd.f32 0.0, %v225
  %v227 = vpop.f32.mrf.mxu0
  %v228 = vpop.f32.mrf.mxu0
  %229 = vdwg.mxu0
  %230 = vmatprep.subr.bf16.mxu0 0
  %231 = vmatpush1.bf16.msra.mxu0 %v164
  %232 = vmatprep.subr.bf16.mxu0 0
  %233 = vmatpush1.bf16.msra.mxu0 %v161
  %234 = vmatprep.subr.bf16.mxu0 0
  %235 = vmatpush1.bf16.msra.mxu0 %v158
  %236 = vmatprep.subr.bf16.mxu0 0
  %237 = vmatpush1.bf16.msra.mxu0 %v155
  %238 = vmatprep.subr.bf16.mxu0 0
  %239 = vmatpush1.bf16.msra.mxu0 %v152
  %240 = vmatprep.subr.bf16.mxu0 0
  %241 = vmatpush1.bf16.msra.mxu0 %v149
  %242 = vmatprep.subr.bf16.mxu0 0
  %243 = vmatpush1.bf16.msra.mxu0 %v146
  %244 = vmatprep.subr.bf16.mxu0 0
  %245 = vmatpush1.bf16.msra.mxu0 %v143
  %246 = vmatprep.subr.bf16.mxu0 0
  %247 = vmatpush2.bf16.msra.mxu0 0
  %248 = vmatprep.subr.bf16.mxu0 0
  %249 = vmatpush2.bf16.msra.mxu0 0
  %250 = vmatprep.subr.bf16.mxu0 0
  %251 = vmatpush2.bf16.msra.mxu0 0
  %252 = vmatprep.subr.bf16.mxu0 0
  %253 = vmatpush2.bf16.msra.mxu0 0
  %254 = vmatprep.subr.bf16.mxu0 0
  %255 = vmatpush2.bf16.msra.mxu0 0
  %256 = vmatprep.subr.bf16.mxu0 0
  %257 = vmatpush2.bf16.msra.mxu0 0
  %258 = vmatprep.subr.bf16.mxu0 0
  %259 = vmatpush2.bf16.msra.mxu0 0
  %260 = vmatprep.subr.bf16.mxu0 0
  %261 = vmatpush2.bf16.msra.mxu0 0
  %262 = vmatprep.mubr.bf16.mxu0 0
  %263 = vmatmul.mubr.bf16.gmra.mxu0 %v60
  %v264 = vpop.f32.mrf.mxu0
  %v265 = vadd.f32 0.0, %v264
  %v266 = vpop.f32.mrf.mxu0
  %v267 = vpop.f32.mrf.mxu0
  %v268 = vpop.f32.mrf.mxu0
  %269 = vdwg.mxu0
  %v270 = vld [vmem:[%s0] sm:$0xff]
  %v271 = vld [vmem:[%s0 + $0x8] sm:$0xff]
  %v272 = vld [vmem:[%s0 + $0x10] sm:$0xff]
  %v273 = vadd.f32 %v270, %v224
  %v274 = vxor.u32 %v273, 2147483648
  %v275 = vmul.f32 %v274, 1.442695
  %v276 = vpow.pop %v275
  %v277 = vadd.f32 %v276, 1.0
  %v278 = vrcp.pop %v277
  %v279 = vmul.f32 1.0, %v278
  %v280 = vadd.f32 %v271, %v226
  %v281 = vxor.u32 %v280, 2147483648
  %v282 = vmul.f32 %v281, 1.442695
  %v283 = vpow.pop %v282
  %v284 = vadd.f32 %v283, 1.0
  %v285 = vrcp.pop %v284
  %v286 = vmul.f32 1.0, %v285
  %v287 = vadd.f32 %v265, %v57
  %v288 = vmul.f32 %v279, %v287
  %v289 = vadd.f32 %v272, %v288
  %v290 = vtanh.pop %v289
  %v291 = vsub.f32 1.0, %v286
  %v292 = vmul.f32 %v291, %v290
  %v293 = vmul.f32 %v286, %v59
  %v294 = vadd.f32 %v292, %v293
  %v295 = vpack.c.bf16 %v294, %v294
  %296 = vst [vmem:[%s3] sm:$0xf] %v295
  %297 = vmatprep.subr.bf16.mxu0 %v163
  %298 = vmatpush1.bf16.msra.mxu0 %v162
  %299 = vmatprep.subr.bf16.mxu0 %v160
  %300 = vmatpush1.bf16.msra.mxu0 %v159
  %301 = vmatprep.subr.bf16.mxu0 %v157
  %302 = vmatpush1.bf16.msra.mxu0 %v156
  %303 = vmatprep.subr.bf16.mxu0 %v154
  %304 = vmatpush1.bf16.msra.mxu0 %v153
  %305 = vmatprep.subr.bf16.mxu0 %v151
  %306 = vmatpush1.bf16.msra.mxu0 %v150
  %307 = vmatprep.subr.bf16.mxu0 %v148
  %308 = vmatpush1.bf16.msra.mxu0 %v147
  %309 = vmatprep.subr.bf16.mxu0 %v145
  %310 = vmatpush1.bf16.msra.mxu0 %v144
  %311 = vmatprep.subr.bf16.mxu0 %v142
  %312 = vmatpush1.bf16.msra.mxu0 %v141
  %313 = vmatprep.subr.bf16.mxu0 0
  %314 = vmatpush2.bf16.msra.mxu0 0
  %315 = vmatprep.subr.bf16.mxu0 0
  %316 = vmatpush2.bf16.msra.mxu0 0
  %317 = vmatprep.subr.bf16.mxu0 0
  %318 = vmatpush2.bf16.msra.mxu0 0
  %319 = vmatprep.subr.bf16.mxu0 0
  %320 = vmatpush2.bf16.msra.mxu0 0
  %321 = vmatprep.subr.bf16.mxu0 0
  %322 = vmatpush2.bf16.msra.mxu0 0
  %323 = vmatprep.subr.bf16.mxu0 0
  %324 = vmatpush2.bf16.msra.mxu0 0
  %325 = vmatprep.subr.bf16.mxu0 0
  %326 = vmatpush2.bf16.msra.mxu0 0
  %327 = vmatprep.subr.bf16.mxu0 0
  %328 = vmatpush2.bf16.msra.mxu0 0
  %329 = vmatprep.mubr.bf16.mxu0 0
  %330 = vmatmul.mubr.bf16.gmra.mxu0 %v295
  %v331 = vpop.f32.mrf.mxu0
  %v332 = vadd.f32 0.0, %v331
  %v333 = vpop.f32.mrf.mxu0
  %v334 = vadd.f32 0.0, %v333
  %v335 = vpop.f32.mrf.mxu0
  %v336 = vpop.f32.mrf.mxu0
  %337 = vdwg.mxu0
  %338 = vmatprep.subr.bf16.mxu0 0
  %339 = vmatpush1.bf16.msra.mxu0 %v164
  %340 = vmatprep.subr.bf16.mxu0 0
  %341 = vmatpush1.bf16.msra.mxu0 %v161
  %342 = vmatprep.subr.bf16.mxu0 0
  %343 = vmatpush1.bf16.msra.mxu0 %v158
  %344 = vmatprep.subr.bf16.mxu0 0
  %345 = vmatpush1.bf16.msra.mxu0 %v155
  %346 = vmatprep.subr.bf16.mxu0 0
  %347 = vmatpush1.bf16.msra.mxu0 %v152
  %348 = vmatprep.subr.bf16.mxu0 0
  %349 = vmatpush1.bf16.msra.mxu0 %v149
  %350 = vmatprep.subr.bf16.mxu0 0
  %351 = vmatpush1.bf16.msra.mxu0 %v146
  %352 = vmatprep.subr.bf16.mxu0 0
  %353 = vmatpush1.bf16.msra.mxu0 %v143
  %354 = vmatprep.subr.bf16.mxu0 0
  %355 = vmatpush2.bf16.msra.mxu0 0
  %356 = vmatprep.subr.bf16.mxu0 0
  %357 = vmatpush2.bf16.msra.mxu0 0
  %358 = vmatprep.subr.bf16.mxu0 0
  %359 = vmatpush2.bf16.msra.mxu0 0
  %360 = vmatprep.subr.bf16.mxu0 0
  %361 = vmatpush2.bf16.msra.mxu0 0
  %362 = vmatprep.subr.bf16.mxu0 0
  %363 = vmatpush2.bf16.msra.mxu0 0
  %364 = vmatprep.subr.bf16.mxu0 0
  %365 = vmatpush2.bf16.msra.mxu0 0
  %366 = vmatprep.subr.bf16.mxu0 0
  %367 = vmatpush2.bf16.msra.mxu0 0
  %368 = vmatprep.subr.bf16.mxu0 0
  %369 = vmatpush2.bf16.msra.mxu0 0
  %370 = vmatprep.mubr.bf16.mxu0 0
  %371 = vmatmul.mubr.bf16.gmra.mxu0 %v295
  %v372 = vpop.f32.mrf.mxu0
  %v373 = vadd.f32 0.0, %v372
  %v374 = vpop.f32.mrf.mxu0
  %v375 = vpop.f32.mrf.mxu0
  %v376 = vpop.f32.mrf.mxu0
  %377 = vdwg.mxu0
  %s378 = scalar_lea.vmem %s0, 24
  %v379 = vld [vmem:[%s378] sm:$0xff]
  %v380 = vld [vmem:[%s378 + $0x8] sm:$0xff]
  %v381 = vld [vmem:[%s378 + $0x10] sm:$0xff]
  %v382 = vadd.f32 %v379, %v332
  %v383 = vxor.u32 %v382, 2147483648
  %v384 = vmul.f32 %v383, 1.442695
  %v385 = vpow.pop %v384
  %v386 = vadd.f32 %v385, 1.0
  %v387 = vrcp.pop %v386
  %v388 = vmul.f32 1.0, %v387
  %v389 = vadd.f32 %v380, %v334
  %v390 = vxor.u32 %v389, 2147483648
  %v391 = vmul.f32 %v390, 1.442695
  %v392 = vpow.pop %v391
  %v393 = vadd.f32 %v392, 1.0
  %v394 = vrcp.pop %v393
  %v395 = vmul.f32 1.0, %v394
  %v396 = vadd.f32 %v373, %v57
  %v397 = vmul.f32 %v388, %v396
  %v398 = vadd.f32 %v381, %v397
  %v399 = vtanh.pop %v398
  %v400 = vsub.f32 1.0, %v395
  %v401 = vmul.f32 %v400, %v399
  %v402 = vmul.f32 %v395, %v294
  %v403 = vadd.f32 %v401, %v402
  %v404 = vpack.c.bf16 %v403, %v403
  %s405 = scalar_lea.vmem %s3, 4
  %406 = vst [vmem:[%s405] sm:$0xf] %v404
  %407 = vmatprep.subr.bf16.mxu0 %v163
  %408 = vmatpush1.bf16.msra.mxu0 %v162
  %409 = vmatprep.subr.bf16.mxu0 %v160
  %410 = vmatpush1.bf16.msra.mxu0 %v159
  %411 = vmatprep.subr.bf16.mxu0 %v157
  %412 = vmatpush1.bf16.msra.mxu0 %v156
  %413 = vmatprep.subr.bf16.mxu0 %v154
  %414 = vmatpush1.bf16.msra.mxu0 %v153
  %415 = vmatprep.subr.bf16.mxu0 %v151
  %416 = vmatpush1.bf16.msra.mxu0 %v150
  %417 = vmatprep.subr.bf16.mxu0 %v148
  %418 = vmatpush1.bf16.msra.mxu0 %v147
  %419 = vmatprep.subr.bf16.mxu0 %v145
  %420 = vmatpush1.bf16.msra.mxu0 %v144
  %421 = vmatprep.subr.bf16.mxu0 %v142
  %422 = vmatpush1.bf16.msra.mxu0 %v141
  %423 = vmatprep.subr.bf16.mxu0 0
  %424 = vmatpush2.bf16.msra.mxu0 0
  %425 = vmatprep.subr.bf16.mxu0 0
  %426 = vmatpush2.bf16.msra.mxu0 0
  %427 = vmatprep.subr.bf16.mxu0 0
  %428 = vmatpush2.bf16.msra.mxu0 0
  %429 = vmatprep.subr.bf16.mxu0 0
  %430 = vmatpush2.bf16.msra.mxu0 0
  %431 = vmatprep.subr.bf16.mxu0 0
  %432 = vmatpush2.bf16.msra.mxu0 0
  %433 = vmatprep.subr.bf16.mxu0 0
  %434 = vmatpush2.bf16.msra.mxu0 0
  %435 = vmatprep.subr.bf16.mxu0 0
  %436 = vmatpush2.bf16.msra.mxu0 0
  %437 = vmatprep.subr.bf16.mxu0 0
  %438 = vmatpush2.bf16.msra.mxu0 0
  %439 = vmatprep.mubr.bf16.mxu0 0
  %440 = vmatmul.mubr.bf16.gmra.mxu0 %v404
  %v441 = vpop.f32.mrf.mxu0
  %v442 = vadd.f32 0.0, %v441
  %v443 = vpop.f32.mrf.mxu0
  %v444 = vadd.f32 0.0, %v443
  %v445 = vpop.f32.mrf.mxu0
  %v446 = vpop.f32.mrf.mxu0
  %447 = vdwg.mxu0
  %448 = vmatprep.subr.bf16.mxu0 0
  %449 = vmatpush1.bf16.msra.mxu0 %v164
  %450 = vmatprep.subr.bf16.mxu0 0
  %451 = vmatpush1.bf16.msra.mxu0 %v161
  %452 = vmatprep.subr.bf16.mxu0 0
  %453 = vmatpush1.bf16.msra.mxu0 %v158
  %454 = vmatprep.subr.bf16.mxu0 0
  %455 = vmatpush1.bf16.msra.mxu0 %v155
  %456 = vmatprep.subr.bf16.mxu0 0
  %457 = vmatpush1.bf16.msra.mxu0 %v152
  %458 = vmatprep.subr.bf16.mxu0 0
  %459 = vmatpush1.bf16.msra.mxu0 %v149
  %460 = vmatprep.subr.bf16.mxu0 0
  %461 = vmatpush1.bf16.msra.mxu0 %v146
  %462 = vmatprep.subr.bf16.mxu0 0
  %463 = vmatpush1.bf16.msra.mxu0 %v143
  %464 = vmatprep.subr.bf16.mxu0 0
  %465 = vmatpush2.bf16.msra.mxu0 0
  %466 = vmatprep.subr.bf16.mxu0 0
  %467 = vmatpush2.bf16.msra.mxu0 0
  %468 = vmatprep.subr.bf16.mxu0 0
  %469 = vmatpush2.bf16.msra.mxu0 0
  %470 = vmatprep.subr.bf16.mxu0 0
  %471 = vmatpush2.bf16.msra.mxu0 0
  %472 = vmatprep.subr.bf16.mxu0 0
  %473 = vmatpush2.bf16.msra.mxu0 0
  %474 = vmatprep.subr.bf16.mxu0 0
  %475 = vmatpush2.bf16.msra.mxu0 0
  %476 = vmatprep.subr.bf16.mxu0 0
  %477 = vmatpush2.bf16.msra.mxu0 0
  %478 = vmatprep.subr.bf16.mxu0 0
  %479 = vmatpush2.bf16.msra.mxu0 0
  %480 = vmatprep.mubr.bf16.mxu0 0
  %481 = vmatmul.mubr.bf16.gmra.mxu0 %v404
  %v482 = vpop.f32.mrf.mxu0
  %v483 = vadd.f32 0.0, %v482
  %v484 = vpop.f32.mrf.mxu0
  %v485 = vpop.f32.mrf.mxu0
  %v486 = vpop.f32.mrf.mxu0
  %487 = vdwg.mxu0
  %s488 = scalar_lea.vmem %s0, 48
  %v489 = vld [vmem:[%s488] sm:$0xff]
  %v490 = vld [vmem:[%s488 + $0x8] sm:$0xff]
  %v491 = vld [vmem:[%s488 + $0x10] sm:$0xff]
  %v492 = vadd.f32 %v489, %v442
  %v493 = vxor.u32 %v492, 2147483648
  %v494 = vmul.f32 %v493, 1.442695
  %v495 = vpow.pop %v494
  %v496 = vadd.f32 %v495, 1.0
  %v497 = vrcp.pop %v496
  %v498 = vmul.f32 1.0, %v497
  %v499 = vadd.f32 %v490, %v444
  %v500 = vxor.u32 %v499, 2147483648
  %v501 = vmul.f32 %v500, 1.442695
  %v502 = vpow.pop %v501
  %v503 = vadd.f32 %v502, 1.0
  %v504 = vrcp.pop %v503
  %v505 = vmul.f32 1.0, %v504
  %v506 = vadd.f32 %v483, %v57
  %v507 = vmul.f32 %v498, %v506
  %v508 = vadd.f32 %v491, %v507
  %v509 = vtanh.pop %v508
  %v510 = vsub.f32 1.0, %v505
  %v511 = vmul.f32 %v510, %v509
  %v512 = vmul.f32 %v505, %v403
  %v513 = vadd.f32 %v511, %v512
  %v514 = vpack.c.bf16 %v513, %v513
  %s515 = scalar_lea.vmem %s3, 8
  %516 = vst [vmem:[%s515] sm:$0xf] %v514
  %517 = vmatprep.subr.bf16.mxu0 %v163
  %518 = vmatpush1.bf16.msra.mxu0 %v162
  %519 = vmatprep.subr.bf16.mxu0 %v160
  %520 = vmatpush1.bf16.msra.mxu0 %v159
  %521 = vmatprep.subr.bf16.mxu0 %v157
  %522 = vmatpush1.bf16.msra.mxu0 %v156
  %523 = vmatprep.subr.bf16.mxu0 %v154
  %524 = vmatpush1.bf16.msra.mxu0 %v153
  %525 = vmatprep.subr.bf16.mxu0 %v151
  %526 = vmatpush1.bf16.msra.mxu0 %v150
  %527 = vmatprep.subr.bf16.mxu0 %v148
  %528 = vmatpush1.bf16.msra.mxu0 %v147
  %529 = vmatprep.subr.bf16.mxu0 %v145
  %530 = vmatpush1.bf16.msra.mxu0 %v144
  %531 = vmatprep.subr.bf16.mxu0 %v142
  %532 = vmatpush1.bf16.msra.mxu0 %v141
  %533 = vmatprep.subr.bf16.mxu0 0
  %534 = vmatpush2.bf16.msra.mxu0 0
  %535 = vmatprep.subr.bf16.mxu0 0
  %536 = vmatpush2.bf16.msra.mxu0 0
  %537 = vmatprep.subr.bf16.mxu0 0
  %538 = vmatpush2.bf16.msra.mxu0 0
  %539 = vmatprep.subr.bf16.mxu0 0
  %540 = vmatpush2.bf16.msra.mxu0 0
  %541 = vmatprep.subr.bf16.mxu0 0
  %542 = vmatpush2.bf16.msra.mxu0 0
  %543 = vmatprep.subr.bf16.mxu0 0
  %544 = vmatpush2.bf16.msra.mxu0 0
  %545 = vmatprep.subr.bf16.mxu0 0
  %546 = vmatpush2.bf16.msra.mxu0 0
  %547 = vmatprep.subr.bf16.mxu0 0
  %548 = vmatpush2.bf16.msra.mxu0 0
  %549 = vmatprep.mubr.bf16.mxu0 0
  %550 = vmatmul.mubr.bf16.gmra.mxu0 %v514
  %v551 = vpop.f32.mrf.mxu0
  %v552 = vadd.f32 0.0, %v551
  %v553 = vpop.f32.mrf.mxu0
  %v554 = vadd.f32 0.0, %v553
  %v555 = vpop.f32.mrf.mxu0
  %v556 = vpop.f32.mrf.mxu0
  %557 = vdwg.mxu0
  %558 = vmatprep.subr.bf16.mxu0 0
  %559 = vmatpush1.bf16.msra.mxu0 %v164
  %560 = vmatprep.subr.bf16.mxu0 0
  %561 = vmatpush1.bf16.msra.mxu0 %v161
  %562 = vmatprep.subr.bf16.mxu0 0
  %563 = vmatpush1.bf16.msra.mxu0 %v158
  %564 = vmatprep.subr.bf16.mxu0 0
  %565 = vmatpush1.bf16.msra.mxu0 %v155
  %566 = vmatprep.subr.bf16.mxu0 0
  %567 = vmatpush1.bf16.msra.mxu0 %v152
  %568 = vmatprep.subr.bf16.mxu0 0
  %569 = vmatpush1.bf16.msra.mxu0 %v149
  %570 = vmatprep.subr.bf16.mxu0 0
  %571 = vmatpush1.bf16.msra.mxu0 %v146
  %572 = vmatprep.subr.bf16.mxu0 0
  %573 = vmatpush1.bf16.msra.mxu0 %v143
  %574 = vmatprep.subr.bf16.mxu0 0
  %575 = vmatpush2.bf16.msra.mxu0 0
  %576 = vmatprep.subr.bf16.mxu0 0
  %577 = vmatpush2.bf16.msra.mxu0 0
  %578 = vmatprep.subr.bf16.mxu0 0
  %579 = vmatpush2.bf16.msra.mxu0 0
  %580 = vmatprep.subr.bf16.mxu0 0
  %581 = vmatpush2.bf16.msra.mxu0 0
  %582 = vmatprep.subr.bf16.mxu0 0
  %583 = vmatpush2.bf16.msra.mxu0 0
  %584 = vmatprep.subr.bf16.mxu0 0
  %585 = vmatpush2.bf16.msra.mxu0 0
  %586 = vmatprep.subr.bf16.mxu0 0
  %587 = vmatpush2.bf16.msra.mxu0 0
  %588 = vmatprep.subr.bf16.mxu0 0
  %589 = vmatpush2.bf16.msra.mxu0 0
  %590 = vmatprep.mubr.bf16.mxu0 0
  %591 = vmatmul.mubr.bf16.gmra.mxu0 %v514
  %v592 = vpop.f32.mrf.mxu0
  %v593 = vadd.f32 0.0, %v592
  %v594 = vpop.f32.mrf.mxu0
  %v595 = vpop.f32.mrf.mxu0
  %v596 = vpop.f32.mrf.mxu0
  %597 = vdwg.mxu0
  %s598 = scalar_lea.vmem %s0, 72
  %v599 = vld [vmem:[%s598] sm:$0xff]
  %v600 = vld [vmem:[%s598 + $0x8] sm:$0xff]
  %v601 = vld [vmem:[%s598 + $0x10] sm:$0xff]
  %v602 = vadd.f32 %v599, %v552
  %v603 = vxor.u32 %v602, 2147483648
  %v604 = vmul.f32 %v603, 1.442695
  %v605 = vpow.pop %v604
  %v606 = vadd.f32 %v605, 1.0
  %v607 = vrcp.pop %v606
  %v608 = vmul.f32 1.0, %v607
  %v609 = vadd.f32 %v600, %v554
  %v610 = vxor.u32 %v609, 2147483648
  %v611 = vmul.f32 %v610, 1.442695
  %v612 = vpow.pop %v611
  %v613 = vadd.f32 %v612, 1.0
  %v614 = vrcp.pop %v613
  %v615 = vmul.f32 1.0, %v614
  %v616 = vadd.f32 %v593, %v57
  %v617 = vmul.f32 %v608, %v616
  %v618 = vadd.f32 %v601, %v617
  %v619 = vtanh.pop %v618
  %v620 = vsub.f32 1.0, %v615
  %v621 = vmul.f32 %v620, %v619
  %v622 = vmul.f32 %v615, %v513
  %v623 = vadd.f32 %v621, %v622
  %v624 = vpack.c.bf16 %v623, %v623
  %s625 = scalar_lea.vmem %s3, 12
  %626 = vst [vmem:[%s625] sm:$0xf] %v624
  %627 = vmatprep.subr.bf16.mxu0 %v163
  %628 = vmatpush1.bf16.msra.mxu0 %v162
  %629 = vmatprep.subr.bf16.mxu0 %v160
  %630 = vmatpush1.bf16.msra.mxu0 %v159
  %631 = vmatprep.subr.bf16.mxu0 %v157
  %632 = vmatpush1.bf16.msra.mxu0 %v156
  %633 = vmatprep.subr.bf16.mxu0 %v154
  %634 = vmatpush1.bf16.msra.mxu0 %v153
  %635 = vmatprep.subr.bf16.mxu0 %v151
  %636 = vmatpush1.bf16.msra.mxu0 %v150
  %637 = vmatprep.subr.bf16.mxu0 %v148
  %638 = vmatpush1.bf16.msra.mxu0 %v147
  %639 = vmatprep.subr.bf16.mxu0 %v145
  %640 = vmatpush1.bf16.msra.mxu0 %v144
  %641 = vmatprep.subr.bf16.mxu0 %v142
  %642 = vmatpush1.bf16.msra.mxu0 %v141
  %643 = vmatprep.subr.bf16.mxu0 0
  %644 = vmatpush2.bf16.msra.mxu0 0
  %645 = vmatprep.subr.bf16.mxu0 0
  %646 = vmatpush2.bf16.msra.mxu0 0
  %647 = vmatprep.subr.bf16.mxu0 0
  %648 = vmatpush2.bf16.msra.mxu0 0
  %649 = vmatprep.subr.bf16.mxu0 0
  %650 = vmatpush2.bf16.msra.mxu0 0
  %651 = vmatprep.subr.bf16.mxu0 0
  %652 = vmatpush2.bf16.msra.mxu0 0
  %653 = vmatprep.subr.bf16.mxu0 0
  %654 = vmatpush2.bf16.msra.mxu0 0
  %655 = vmatprep.subr.bf16.mxu0 0
  %656 = vmatpush2.bf16.msra.mxu0 0
  %657 = vmatprep.subr.bf16.mxu0 0
  %658 = vmatpush2.bf16.msra.mxu0 0
  %659 = vmatprep.mubr.bf16.mxu0 0
  %660 = vmatmul.mubr.bf16.gmra.mxu0 %v624
  %v661 = vpop.f32.mrf.mxu0
  %v662 = vadd.f32 0.0, %v661
  %v663 = vpop.f32.mrf.mxu0
  %v664 = vadd.f32 0.0, %v663
  %v665 = vpop.f32.mrf.mxu0
  %v666 = vpop.f32.mrf.mxu0
  %667 = vdwg.mxu0
  %668 = vmatprep.subr.bf16.mxu0 0
  %669 = vmatpush1.bf16.msra.mxu0 %v164
  %670 = vmatprep.subr.bf16.mxu0 0
  %671 = vmatpush1.bf16.msra.mxu0 %v161
  %672 = vmatprep.subr.bf16.mxu0 0
  %673 = vmatpush1.bf16.msra.mxu0 %v158
  %674 = vmatprep.subr.bf16.mxu0 0
  %675 = vmatpush1.bf16.msra.mxu0 %v155
  %676 = vmatprep.subr.bf16.mxu0 0
  %677 = vmatpush1.bf16.msra.mxu0 %v152
  %678 = vmatprep.subr.bf16.mxu0 0
  %679 = vmatpush1.bf16.msra.mxu0 %v149
  %680 = vmatprep.subr.bf16.mxu0 0
  %681 = vmatpush1.bf16.msra.mxu0 %v146
  %682 = vmatprep.subr.bf16.mxu0 0
  %683 = vmatpush1.bf16.msra.mxu0 %v143
  %684 = vmatprep.subr.bf16.mxu0 0
  %685 = vmatpush2.bf16.msra.mxu0 0
  %686 = vmatprep.subr.bf16.mxu0 0
  %687 = vmatpush2.bf16.msra.mxu0 0
  %688 = vmatprep.subr.bf16.mxu0 0
  %689 = vmatpush2.bf16.msra.mxu0 0
  %690 = vmatprep.subr.bf16.mxu0 0
  %691 = vmatpush2.bf16.msra.mxu0 0
  %692 = vmatprep.subr.bf16.mxu0 0
  %693 = vmatpush2.bf16.msra.mxu0 0
  %694 = vmatprep.subr.bf16.mxu0 0
  %695 = vmatpush2.bf16.msra.mxu0 0
  %696 = vmatprep.subr.bf16.mxu0 0
  %697 = vmatpush2.bf16.msra.mxu0 0
  %698 = vmatprep.subr.bf16.mxu0 0
  %699 = vmatpush2.bf16.msra.mxu0 0
  %700 = vmatprep.mubr.bf16.mxu0 0
  %701 = vmatmul.mubr.bf16.gmra.mxu0 %v624
  %v702 = vpop.f32.mrf.mxu0
  %v703 = vadd.f32 0.0, %v702
  %v704 = vpop.f32.mrf.mxu0
  %v705 = vpop.f32.mrf.mxu0
  %v706 = vpop.f32.mrf.mxu0
  %707 = vdwg.mxu0
  %s708 = scalar_lea.vmem %s0, 96
  %v709 = vld [vmem:[%s708] sm:$0xff]
  %v710 = vld [vmem:[%s708 + $0x8] sm:$0xff]
  %v711 = vld [vmem:[%s708 + $0x10] sm:$0xff]
  %v712 = vadd.f32 %v709, %v662
  %v713 = vxor.u32 %v712, 2147483648
  %v714 = vmul.f32 %v713, 1.442695
  %v715 = vpow.pop %v714
  %v716 = vadd.f32 %v715, 1.0
  %v717 = vrcp.pop %v716
  %v718 = vmul.f32 1.0, %v717
  %v719 = vadd.f32 %v710, %v664
  %v720 = vxor.u32 %v719, 2147483648
  %v721 = vmul.f32 %v720, 1.442695
  %v722 = vpow.pop %v721
  %v723 = vadd.f32 %v722, 1.0
  %v724 = vrcp.pop %v723
  %v725 = vmul.f32 1.0, %v724
  %v726 = vadd.f32 %v703, %v57
  %v727 = vmul.f32 %v718, %v726
  %v728 = vadd.f32 %v711, %v727
  %v729 = vtanh.pop %v728
  %v730 = vsub.f32 1.0, %v725
  %v731 = vmul.f32 %v730, %v729
  %v732 = vmul.f32 %v725, %v623
  %v733 = vadd.f32 %v731, %v732
  %v734 = vpack.c.bf16 %v733, %v733
  %s735 = scalar_lea.vmem %s3, 16
  %736 = vst [vmem:[%s735] sm:$0xf] %v734
  %737 = vmatprep.subr.bf16.mxu0 %v163
  %738 = vmatpush1.bf16.msra.mxu0 %v162
  %739 = vmatprep.subr.bf16.mxu0 %v160
  %740 = vmatpush1.bf16.msra.mxu0 %v159
  %741 = vmatprep.subr.bf16.mxu0 %v157
  %742 = vmatpush1.bf16.msra.mxu0 %v156
  %743 = vmatprep.subr.bf16.mxu0 %v154
  %744 = vmatpush1.bf16.msra.mxu0 %v153
  %745 = vmatprep.subr.bf16.mxu0 %v151
  %746 = vmatpush1.bf16.msra.mxu0 %v150
  %747 = vmatprep.subr.bf16.mxu0 %v148
  %748 = vmatpush1.bf16.msra.mxu0 %v147
  %749 = vmatprep.subr.bf16.mxu0 %v145
  %750 = vmatpush1.bf16.msra.mxu0 %v144
  %751 = vmatprep.subr.bf16.mxu0 %v142
  %752 = vmatpush1.bf16.msra.mxu0 %v141
  %753 = vmatprep.subr.bf16.mxu0 0
  %754 = vmatpush2.bf16.msra.mxu0 0
  %755 = vmatprep.subr.bf16.mxu0 0
  %756 = vmatpush2.bf16.msra.mxu0 0
  %757 = vmatprep.subr.bf16.mxu0 0
  %758 = vmatpush2.bf16.msra.mxu0 0
  %759 = vmatprep.subr.bf16.mxu0 0
  %760 = vmatpush2.bf16.msra.mxu0 0
  %761 = vmatprep.subr.bf16.mxu0 0
  %762 = vmatpush2.bf16.msra.mxu0 0
  %763 = vmatprep.subr.bf16.mxu0 0
  %764 = vmatpush2.bf16.msra.mxu0 0
  %765 = vmatprep.subr.bf16.mxu0 0
  %766 = vmatpush2.bf16.msra.mxu0 0
  %767 = vmatprep.subr.bf16.mxu0 0
  %768 = vmatpush2.bf16.msra.mxu0 0
  %769 = vmatprep.mubr.bf16.mxu0 0
  %770 = vmatmul.mubr.bf16.gmra.mxu0 %v734
  %v771 = vpop.f32.mrf.mxu0
  %v772 = vadd.f32 0.0, %v771
  %v773 = vpop.f32.mrf.mxu0
  %v774 = vadd.f32 0.0, %v773
  %v775 = vpop.f32.mrf.mxu0
  %v776 = vpop.f32.mrf.mxu0
  %777 = vdwg.mxu0
  %778 = vmatprep.subr.bf16.mxu0 0
  %779 = vmatpush1.bf16.msra.mxu0 %v164
  %780 = vmatprep.subr.bf16.mxu0 0
  %781 = vmatpush1.bf16.msra.mxu0 %v161
  %782 = vmatprep.subr.bf16.mxu0 0
  %783 = vmatpush1.bf16.msra.mxu0 %v158
  %784 = vmatprep.subr.bf16.mxu0 0
  %785 = vmatpush1.bf16.msra.mxu0 %v155
  %786 = vmatprep.subr.bf16.mxu0 0
  %787 = vmatpush1.bf16.msra.mxu0 %v152
  %788 = vmatprep.subr.bf16.mxu0 0
  %789 = vmatpush1.bf16.msra.mxu0 %v149
  %790 = vmatprep.subr.bf16.mxu0 0
  %791 = vmatpush1.bf16.msra.mxu0 %v146
  %792 = vmatprep.subr.bf16.mxu0 0
  %793 = vmatpush1.bf16.msra.mxu0 %v143
  %794 = vmatprep.subr.bf16.mxu0 0
  %795 = vmatpush2.bf16.msra.mxu0 0
  %796 = vmatprep.subr.bf16.mxu0 0
  %797 = vmatpush2.bf16.msra.mxu0 0
  %798 = vmatprep.subr.bf16.mxu0 0
  %799 = vmatpush2.bf16.msra.mxu0 0
  %800 = vmatprep.subr.bf16.mxu0 0
  %801 = vmatpush2.bf16.msra.mxu0 0
  %802 = vmatprep.subr.bf16.mxu0 0
  %803 = vmatpush2.bf16.msra.mxu0 0
  %804 = vmatprep.subr.bf16.mxu0 0
  %805 = vmatpush2.bf16.msra.mxu0 0
  %806 = vmatprep.subr.bf16.mxu0 0
  %807 = vmatpush2.bf16.msra.mxu0 0
  %808 = vmatprep.subr.bf16.mxu0 0
  %809 = vmatpush2.bf16.msra.mxu0 0
  %810 = vmatprep.mubr.bf16.mxu0 0
  %811 = vmatmul.mubr.bf16.gmra.mxu0 %v734
  %v812 = vpop.f32.mrf.mxu0
  %v813 = vadd.f32 0.0, %v812
  %v814 = vpop.f32.mrf.mxu0
  %v815 = vpop.f32.mrf.mxu0
  %v816 = vpop.f32.mrf.mxu0
  %817 = vdwg.mxu0
  %s818 = scalar_lea.vmem %s0, 120
  %v819 = vld [vmem:[%s818] sm:$0xff]
  %v820 = vld [vmem:[%s818 + $0x8] sm:$0xff]
  %v821 = vld [vmem:[%s818 + $0x10] sm:$0xff]
  %v822 = vadd.f32 %v819, %v772
  %v823 = vxor.u32 %v822, 2147483648
  %v824 = vmul.f32 %v823, 1.442695
  %v825 = vpow.pop %v824
  %v826 = vadd.f32 %v825, 1.0
  %v827 = vrcp.pop %v826
  %v828 = vmul.f32 1.0, %v827
  %v829 = vadd.f32 %v820, %v774
  %v830 = vxor.u32 %v829, 2147483648
  %v831 = vmul.f32 %v830, 1.442695
  %v832 = vpow.pop %v831
  %v833 = vadd.f32 %v832, 1.0
  %v834 = vrcp.pop %v833
  %v835 = vmul.f32 1.0, %v834
  %v836 = vadd.f32 %v813, %v57
  %v837 = vmul.f32 %v828, %v836
  %v838 = vadd.f32 %v821, %v837
  %v839 = vtanh.pop %v838
  %v840 = vsub.f32 1.0, %v835
  %v841 = vmul.f32 %v840, %v839
  %v842 = vmul.f32 %v835, %v733
  %v843 = vadd.f32 %v841, %v842
  %v844 = vpack.c.bf16 %v843, %v843
  %s845 = scalar_lea.vmem %s3, 20
  %846 = vst [vmem:[%s845] sm:$0xf] %v844
  %847 = vmatprep.subr.bf16.mxu0 %v163
  %848 = vmatpush1.bf16.msra.mxu0 %v162
  %849 = vmatprep.subr.bf16.mxu0 %v160
  %850 = vmatpush1.bf16.msra.mxu0 %v159
  %851 = vmatprep.subr.bf16.mxu0 %v157
  %852 = vmatpush1.bf16.msra.mxu0 %v156
  %853 = vmatprep.subr.bf16.mxu0 %v154
  %854 = vmatpush1.bf16.msra.mxu0 %v153
  %855 = vmatprep.subr.bf16.mxu0 %v151
  %856 = vmatpush1.bf16.msra.mxu0 %v150
  %857 = vmatprep.subr.bf16.mxu0 %v148
  %858 = vmatpush1.bf16.msra.mxu0 %v147
  %859 = vmatprep.subr.bf16.mxu0 %v145
  %860 = vmatpush1.bf16.msra.mxu0 %v144
  %861 = vmatprep.subr.bf16.mxu0 %v142
  %862 = vmatpush1.bf16.msra.mxu0 %v141
  %863 = vmatprep.subr.bf16.mxu0 0
  %864 = vmatpush2.bf16.msra.mxu0 0
  %865 = vmatprep.subr.bf16.mxu0 0
  %866 = vmatpush2.bf16.msra.mxu0 0
  %867 = vmatprep.subr.bf16.mxu0 0
  %868 = vmatpush2.bf16.msra.mxu0 0
  %869 = vmatprep.subr.bf16.mxu0 0
  %870 = vmatpush2.bf16.msra.mxu0 0
  %871 = vmatprep.subr.bf16.mxu0 0
  %872 = vmatpush2.bf16.msra.mxu0 0
  %873 = vmatprep.subr.bf16.mxu0 0
  %874 = vmatpush2.bf16.msra.mxu0 0
  %875 = vmatprep.subr.bf16.mxu0 0
  %876 = vmatpush2.bf16.msra.mxu0 0
  %877 = vmatprep.subr.bf16.mxu0 0
  %878 = vmatpush2.bf16.msra.mxu0 0
  %879 = vmatprep.mubr.bf16.mxu0 0
  %880 = vmatmul.mubr.bf16.gmra.mxu0 %v844
  %v881 = vpop.f32.mrf.mxu0
  %v882 = vadd.f32 0.0, %v881
  %v883 = vpop.f32.mrf.mxu0
  %v884 = vadd.f32 0.0, %v883
  %v885 = vpop.f32.mrf.mxu0
  %v886 = vpop.f32.mrf.mxu0
  %887 = vdwg.mxu0
  %888 = vmatprep.subr.bf16.mxu0 0
  %889 = vmatpush1.bf16.msra.mxu0 %v164
  %890 = vmatprep.subr.bf16.mxu0 0
  %891 = vmatpush1.bf16.msra.mxu0 %v161
  %892 = vmatprep.subr.bf16.mxu0 0
  %893 = vmatpush1.bf16.msra.mxu0 %v158
  %894 = vmatprep.subr.bf16.mxu0 0
  %895 = vmatpush1.bf16.msra.mxu0 %v155
  %896 = vmatprep.subr.bf16.mxu0 0
  %897 = vmatpush1.bf16.msra.mxu0 %v152
  %898 = vmatprep.subr.bf16.mxu0 0
  %899 = vmatpush1.bf16.msra.mxu0 %v149
  %900 = vmatprep.subr.bf16.mxu0 0
  %901 = vmatpush1.bf16.msra.mxu0 %v146
  %902 = vmatprep.subr.bf16.mxu0 0
  %903 = vmatpush1.bf16.msra.mxu0 %v143
  %904 = vmatprep.subr.bf16.mxu0 0
  %905 = vmatpush2.bf16.msra.mxu0 0
  %906 = vmatprep.subr.bf16.mxu0 0
  %907 = vmatpush2.bf16.msra.mxu0 0
  %908 = vmatprep.subr.bf16.mxu0 0
  %909 = vmatpush2.bf16.msra.mxu0 0
  %910 = vmatprep.subr.bf16.mxu0 0
  %911 = vmatpush2.bf16.msra.mxu0 0
  %912 = vmatprep.subr.bf16.mxu0 0
  %913 = vmatpush2.bf16.msra.mxu0 0
  %914 = vmatprep.subr.bf16.mxu0 0
  %915 = vmatpush2.bf16.msra.mxu0 0
  %916 = vmatprep.subr.bf16.mxu0 0
  %917 = vmatpush2.bf16.msra.mxu0 0
  %918 = vmatprep.subr.bf16.mxu0 0
  %919 = vmatpush2.bf16.msra.mxu0 0
  %920 = vmatprep.mubr.bf16.mxu0 0
  %921 = vmatmul.mubr.bf16.gmra.mxu0 %v844
  %v922 = vpop.f32.mrf.mxu0
  %v923 = vadd.f32 0.0, %v922
  %v924 = vpop.f32.mrf.mxu0
  %v925 = vpop.f32.mrf.mxu0
  %v926 = vpop.f32.mrf.mxu0
  %927 = vdwg.mxu0
  %s928 = scalar_lea.vmem %s0, 144
  %v929 = vld [vmem:[%s928] sm:$0xff]
  %v930 = vld [vmem:[%s928 + $0x8] sm:$0xff]
  %v931 = vld [vmem:[%s928 + $0x10] sm:$0xff]
  %v932 = vadd.f32 %v929, %v882
  %v933 = vxor.u32 %v932, 2147483648
  %v934 = vmul.f32 %v933, 1.442695
  %v935 = vpow.pop %v934
  %v936 = vadd.f32 %v935, 1.0
  %v937 = vrcp.pop %v936
  %v938 = vmul.f32 1.0, %v937
  %v939 = vadd.f32 %v930, %v884
  %v940 = vxor.u32 %v939, 2147483648
  %v941 = vmul.f32 %v940, 1.442695
  %v942 = vpow.pop %v941
  %v943 = vadd.f32 %v942, 1.0
  %v944 = vrcp.pop %v943
  %v945 = vmul.f32 1.0, %v944
  %v946 = vadd.f32 %v923, %v57
  %v947 = vmul.f32 %v938, %v946
  %v948 = vadd.f32 %v931, %v947
  %v949 = vtanh.pop %v948
  %v950 = vsub.f32 1.0, %v945
  %v951 = vmul.f32 %v950, %v949
  %v952 = vmul.f32 %v945, %v843
  %v953 = vadd.f32 %v951, %v952
  %v954 = vpack.c.bf16 %v953, %v953
  %s955 = scalar_lea.vmem %s3, 24
  %956 = vst [vmem:[%s955] sm:$0xf] %v954
  %957 = vmatprep.subr.bf16.mxu0 %v163
  %958 = vmatpush1.bf16.msra.mxu0 %v162
  %959 = vmatprep.subr.bf16.mxu0 %v160
  %960 = vmatpush1.bf16.msra.mxu0 %v159
  %961 = vmatprep.subr.bf16.mxu0 %v157
  %962 = vmatpush1.bf16.msra.mxu0 %v156
  %963 = vmatprep.subr.bf16.mxu0 %v154
  %964 = vmatpush1.bf16.msra.mxu0 %v153
  %965 = vmatprep.subr.bf16.mxu0 %v151
  %966 = vmatpush1.bf16.msra.mxu0 %v150
  %967 = vmatprep.subr.bf16.mxu0 %v148
  %968 = vmatpush1.bf16.msra.mxu0 %v147
  %969 = vmatprep.subr.bf16.mxu0 %v145
  %970 = vmatpush1.bf16.msra.mxu0 %v144
  %971 = vmatprep.subr.bf16.mxu0 %v142
  %972 = vmatpush1.bf16.msra.mxu0 %v141
  %973 = vmatprep.subr.bf16.mxu0 0
  %974 = vmatpush2.bf16.msra.mxu0 0
  %975 = vmatprep.subr.bf16.mxu0 0
  %976 = vmatpush2.bf16.msra.mxu0 0
  %977 = vmatprep.subr.bf16.mxu0 0
  %978 = vmatpush2.bf16.msra.mxu0 0
  %979 = vmatprep.subr.bf16.mxu0 0
  %980 = vmatpush2.bf16.msra.mxu0 0
  %981 = vmatprep.subr.bf16.mxu0 0
  %982 = vmatpush2.bf16.msra.mxu0 0
  %983 = vmatprep.subr.bf16.mxu0 0
  %984 = vmatpush2.bf16.msra.mxu0 0
  %985 = vmatprep.subr.bf16.mxu0 0
  %986 = vmatpush2.bf16.msra.mxu0 0
  %987 = vmatprep.subr.bf16.mxu0 0
  %988 = vmatpush2.bf16.msra.mxu0 0
  %989 = vmatprep.mubr.bf16.mxu0 0
  %990 = vmatmul.mubr.bf16.gmra.mxu0 %v954
  %v991 = vpop.f32.mrf.mxu0
  %v992 = vadd.f32 0.0, %v991
  %v993 = vpop.f32.mrf.mxu0
  %v994 = vadd.f32 0.0, %v993
  %v995 = vpop.f32.mrf.mxu0
  %v996 = vpop.f32.mrf.mxu0
  %997 = vdwg.mxu0
  %998 = vmatprep.subr.bf16.mxu0 0
  %999 = vmatpush1.bf16.msra.mxu0 %v164
  %1000 = vmatprep.subr.bf16.mxu0 0
  %1001 = vmatpush1.bf16.msra.mxu0 %v161
  %1002 = vmatprep.subr.bf16.mxu0 0
  %1003 = vmatpush1.bf16.msra.mxu0 %v158
  %1004 = vmatprep.subr.bf16.mxu0 0
  %1005 = vmatpush1.bf16.msra.mxu0 %v155
  %1006 = vmatprep.subr.bf16.mxu0 0
  %1007 = vmatpush1.bf16.msra.mxu0 %v152
  %1008 = vmatprep.subr.bf16.mxu0 0
  %1009 = vmatpush1.bf16.msra.mxu0 %v149
  %1010 = vmatprep.subr.bf16.mxu0 0
  %1011 = vmatpush1.bf16.msra.mxu0 %v146
  %1012 = vmatprep.subr.bf16.mxu0 0
  %1013 = vmatpush1.bf16.msra.mxu0 %v143
  %1014 = vmatprep.subr.bf16.mxu0 0
  %1015 = vmatpush2.bf16.msra.mxu0 0
  %1016 = vmatprep.subr.bf16.mxu0 0
  %1017 = vmatpush2.bf16.msra.mxu0 0
  %1018 = vmatprep.subr.bf16.mxu0 0
  %1019 = vmatpush2.bf16.msra.mxu0 0
  %1020 = vmatprep.subr.bf16.mxu0 0
  %1021 = vmatpush2.bf16.msra.mxu0 0
  %1022 = vmatprep.subr.bf16.mxu0 0
  %1023 = vmatpush2.bf16.msra.mxu0 0
  %1024 = vmatprep.subr.bf16.mxu0 0
  %1025 = vmatpush2.bf16.msra.mxu0 0
  %1026 = vmatprep.subr.bf16.mxu0 0
  %1027 = vmatpush2.bf16.msra.mxu0 0
  %1028 = vmatprep.subr.bf16.mxu0 0
  %1029 = vmatpush2.bf16.msra.mxu0 0
  %1030 = vmatprep.mubr.bf16.mxu0 0
  %1031 = vmatmul.mubr.bf16.gmra.mxu0 %v954
  %v1032 = vpop.f32.mrf.mxu0
  %v1033 = vadd.f32 0.0, %v1032
  %v1034 = vpop.f32.mrf.mxu0
  %v1035 = vpop.f32.mrf.mxu0
  %v1036 = vpop.f32.mrf.mxu0
  %1037 = vdwg.mxu0
  %s1038 = scalar_lea.vmem %s0, 168
  %v1039 = vld [vmem:[%s1038] sm:$0xff]
  %v1040 = vld [vmem:[%s1038 + $0x8] sm:$0xff]
  %v1041 = vld [vmem:[%s1038 + $0x10] sm:$0xff]
  %v1042 = vadd.f32 %v1039, %v992
  %v1043 = vxor.u32 %v1042, 2147483648
  %v1044 = vmul.f32 %v1043, 1.442695
  %v1045 = vpow.pop %v1044
  %v1046 = vadd.f32 %v1045, 1.0
  %v1047 = vrcp.pop %v1046
  %v1048 = vmul.f32 1.0, %v1047
  %v1049 = vadd.f32 %v1040, %v994
  %v1050 = vxor.u32 %v1049, 2147483648
  %v1051 = vmul.f32 %v1050, 1.442695
  %v1052 = vpow.pop %v1051
  %v1053 = vadd.f32 %v1052, 1.0
  %v1054 = vrcp.pop %v1053
  %v1055 = vmul.f32 1.0, %v1054
  %v1056 = vadd.f32 %v1033, %v57
  %v1057 = vmul.f32 %v1048, %v1056
  %v1058 = vadd.f32 %v1041, %v1057
  %v1059 = vtanh.pop %v1058
  %v1060 = vsub.f32 1.0, %v1055
  %v1061 = vmul.f32 %v1060, %v1059
  %v1062 = vmul.f32 %v1055, %v953
  %v1063 = vadd.f32 %v1061, %v1062
  %v1064 = vpack.c.bf16 %v1063, %v1063
  %s1065 = scalar_lea.vmem %s3, 28
  %1066 = vst [vmem:[%s1065] sm:$0xf] %v1064
  %1067 = vst [vmem:[#allocation2] sm:$0xff] %v1063
  // Predicated region
  $region18: #{_forward_padded.5} parent=0 // pred_check
    _
  $region19: #{_forward_padded.5} parent=0 // pred_check_branch
    %1069 = sbr.rel (0) target = $region21
  $region20: #{_forward_padded.5} parent=0 // pred_region
    _
  $region21: #{_forward_padded.5} parent=0 // pred_fallthru
    _
  // Predicated region
  $region22: #{_forward_padded.5} parent=0 // pred_check
    _
  $region23: #{_forward_padded.5} parent=0 // pred_check_branch
    %1071 = sbr.rel (0) target = $region25
  $region24: #{_forward_padded.5} parent=0 // pred_region
    _
  $region25: #{_forward_padded.5} parent=0 // pred_fallthru
    _

// kernel: _forward_padded.7
$region0: #{_forward_padded.7}
  #allocation0 [shape = 'u32[]', space=smem, size = 0x4, offset = 0x4, fixed_abs, tag = 'smem constant byte address 0x4 - core index']
  #allocation1 [shape = 'u32[144,128]{1,0:T(1,128)}', space=vmem, size = 0x12000, scoped, tag = 'internal scratch']
  #allocation2 [shape = 'f32[8,128]{1,0:T(8,128)}', space=vmem, size = 0x1000, scoped, tag = 'scratch operand']
  %s0 = inlined_call_operand.vmem [shape: f32[8,8,384], index: 0, kind: input, shape index: {}]
  %s1 = inlined_call_operand.vmem [shape: bf16[128,384], index: 1, kind: input, shape index: {}]
  %s2 = inlined_call_operand.vmem [shape: f32[1,128], index: 2, kind: input, shape index: {}]
  %s3 = inlined_call_operand.vmem [shape: f32[128,128], index: 3, kind: input, shape index: {}]
  %s4 = inlined_call_operand.vmem [shape: f32[1,128], index: 4, kind: input, shape index: {}]
  %s5 = inlined_call_operand.hbm [shape: f32[8,128], index: 5, kind: output, shape index: {}]
  %s6 = sld [smem:[#allocation0]]
  $region38: #{_forward_padded.7} parent=0
    _
  %s8 = ssub.s32 1, %s6
  %s9 = scalar_select 0, %s8, %s6
  $region1: #{_forward_padded.7} parent=0
    #allocation3 [shape = 'u8[4096]{0}', space=vmem, size = 0x1000, scoped, tag = 'output window, operand 0, single buffered']
    #allocation4 [shape = 's32[1]{0}', space=sflag, size = 0x4, scoped, tag = 'scoped memory for _forward_padded.7']
    %10 = vsyncpa [#allocation4], 0
    // Predicated region
    $region2: #{_forward_padded.7} parent=1 // pred_check
      _
    $region3: #{_forward_padded.7} parent=1 // pred_check_branch
      %12 = sbr.rel (0) target = $region5
    $region4: #{_forward_padded.7} parent=1 // pred_region
      _
    $region5: #{_forward_padded.7} parent=1 // pred_fallthru
      _
    // Predicated region
    $region6: #{_forward_padded.7} parent=1 // pred_check
      _
    $region7: #{_forward_padded.7} parent=1 // pred_check_branch
      %14 = sbr.rel (0) target = $region9
    $region8: #{_forward_padded.7} parent=1 // pred_region
      _
    $region9: #{_forward_padded.7} parent=1 // pred_fallthru
      _
    // Predicated region
    $region10: #{_forward_padded.7} parent=1 // pred_check
      _
    $region11: #{_forward_padded.7} parent=1 // pred_check_branch
      %16 = sbr.rel (0) target = $region13
    $region12: #{_forward_padded.7} parent=1 // pred_region
      _
    $region13: #{_forward_padded.7} parent=1 // pred_fallthru
      _
    // Predicated region
    $region14: #{_forward_padded.7} parent=1 // pred_check
      _
    $region15: #{_forward_padded.7} parent=1 // pred_check_branch
      %18 = sbr.rel (0) target = $region17
    $region16: #{_forward_padded.7} parent=1 // pred_region
      _
    $region17: #{_forward_padded.7} parent=1 // pred_fallthru
      _
    // Predicated region
    $region18: #{_forward_padded.7} parent=1 // pred_check
      _
    $region19: #{_forward_padded.7} parent=1 // pred_check_branch
      %20 = sbr.rel (0) target = $region21
    $region20: #{_forward_padded.7} parent=1 // pred_region
      _
    $region21: #{_forward_padded.7} parent=1 // pred_fallthru
      _
    %p22 = scmp.eq.s32.totalorder 0, 0
    // Predicated region
    $region22: #{_forward_padded.7} parent=1 // pred_check
      %p23 = pneg %p22
    $region23: #{_forward_padded.7} parent=1 // pred_check_branch
      %25 = sbr.rel (%p23) target = $region25
    $region24: #{_forward_padded.7} parent=1 // pred_region
      %26 = vst [vmem:[#allocation2] sm:$0xff] 0.0
    $region25: #{_forward_padded.7} parent=1 // pred_fallthru
      _
    %v27 = vld [vmem:[%s1] sm:$0xff]
    %v28 = vld [vmem:[%s1 + $0x8] sm:$0xf]
    %v29 = vld [vmem:[%s1 + $0xc] sm:$0xff]
    %v30 = vld [vmem:[%s1 + $0x14] sm:$0xf]
    %v31 = vld [vmem:[%s1 + $0x18] sm:$0xff]
    %v32 = vld [vmem:[%s1 + $0x20] sm:$0xf]
    %v33 = vld [vmem:[%s1 + $0x24] sm:$0xff]
    %v34 = vld [vmem:[%s1 + $0x2c] sm:$0xf]
    %v35 = vld [vmem:[%s1 + $0x30] sm:$0xff]
    %v36 = vld [vmem:[%s1 + $0x38] sm:$0xf]
    %v37 = vld [vmem:[%s1 + $0x3c] sm:$0xff]
    %v38 = vld [vmem:[%s1 + $0x44] sm:$0xf]
    %v39 = vld [vmem:[%s1 + $0x48] sm:$0xff]
    %v40 = vld [vmem:[%s1 + $0x50] sm:$0xf]
    %v41 = vld [vmem:[%s1 + $0x54] sm:$0xff]
    %v42 = vld [vmem:[%s1 + $0x5c] sm:$0xf]
    %v43 = vld [vmem:[%s1 + $0x60] sm:$0xff]
    %v44 = vld [vmem:[%s1 + $0x68] sm:$0xf]
    %v45 = vld [vmem:[%s1 + $0x6c] sm:$0xff]
    %v46 = vld [vmem:[%s1 + $0x74] sm:$0xf]
    %v47 = vld [vmem:[%s1 + $0x78] sm:$0xff]
    %v48 = vld [vmem:[%s1 + $0x80] sm:$0xf]
    %v49 = vld [vmem:[%s1 + $0x84] sm:$0xff]
    %v50 = vld [vmem:[%s1 + $0x8c] sm:$0xf]
    %v51 = vld [vmem:[%s1 + $0x90] sm:$0xff]
    %v52 = vld [vmem:[%s1 + $0x98] sm:$0xf]
    %v53 = vld [vmem:[%s1 + $0x9c] sm:$0xff]
    %v54 = vld [vmem:[%s1 + $0xa4] sm:$0xf]
    %v55 = vld [vmem:[%s1 + $0xa8] sm:$0xff]
    %v56 = vld [vmem:[%s1 + $0xb0] sm:$0xf]
    %v57 = vld [vmem:[%s1 + $0xb4] sm:$0xff]
    %v58 = vld [vmem:[%s1 + $0xbc] sm:$0xf]
    %v59 = vld [vmem:[%s2] sm:$0x1]
    %v61 = vlaneseq
    %v62 = vshrl.u32 %v61, 7
    %v63 = vsub.s32 0, %v62
    %v64 = vrot.slane %v59, %v63
    %v66 = vld [vmem:[#allocation2] sm:$0xff]
    %v67 = vpack.c.bf16 %v66, %v66
    %v100 = vunpack.c.l.b16 %v27
    %v101 = vunpack.c.h.b16 %v27
    %v102 = vunpack.c.l.b16 %v28
    %v103 = vunpack.c.l.b16 %v29
    %v104 = vunpack.c.h.b16 %v29
    %v105 = vunpack.c.l.b16 %v30
    %v106 = vunpack.c.l.b16 %v31
    %v107 = vunpack.c.h.b16 %v31
    %v108 = vunpack.c.l.b16 %v32
    %v109 = vunpack.c.l.b16 %v33
    %v110 = vunpack.c.h.b16 %v33
    %v111 = vunpack.c.l.b16 %v34
    %v112 = vunpack.c.l.b16 %v35
    %v113 = vunpack.c.h.b16 %v35
    %v114 = vunpack.c.l.b16 %v36
    %v115 = vunpack.c.l.b16 %v37
    %v116 = vunpack.c.h.b16 %v37
    %v117 = vunpack.c.l.b16 %v38
    %v118 = vunpack.c.l.b16 %v39
    %v119 = vunpack.c.h.b16 %v39
    %v120 = vunpack.c.l.b16 %v40
    %v121 = vunpack.c.l.b16 %v41
    %v122 = vunpack.c.h.b16 %v41
    %v123 = vunpack.c.l.b16 %v42
    %v124 = vunpack.c.l.b16 %v43
    %v125 = vunpack.c.h.b16 %v43
    %v126 = vunpack.c.l.b16 %v44
    %v127 = vunpack.c.l.b16 %v45
    %v128 = vunpack.c.h.b16 %v45
    %v129 = vunpack.c.l.b16 %v46
    %v130 = vunpack.c.l.b16 %v47
    %v131 = vunpack.c.h.b16 %v47
    %v132 = vunpack.c.l.b16 %v48
    %v133 = vunpack.c.l.b16 %v49
    %v134 = vunpack.c.h.b16 %v49
    %v135 = vunpack.c.l.b16 %v50
    %v136 = vunpack.c.l.b16 %v51
    %v137 = vunpack.c.h.b16 %v51
    %v138 = vunpack.c.l.b16 %v52
    %v139 = vunpack.c.l.b16 %v53
    %v140 = vunpack.c.h.b16 %v53
    %v141 = vunpack.c.l.b16 %v54
    %v142 = vunpack.c.l.b16 %v55
    %v143 = vunpack.c.h.b16 %v55
    %v144 = vunpack.c.l.b16 %v56
    %v145 = vunpack.c.l.b16 %v57
    %v146 = vunpack.c.h.b16 %v57
    %v147 = vunpack.c.l.b16 %v58
    %v148 = vpack.c.b16 %v103, %v100
    %v149 = vpack.c.b16 %v104, %v101
    %v150 = vpack.c.b16 %v105, %v102
    %v151 = vpack.c.b16 %v109, %v106
    %v152 = vpack.c.b16 %v110, %v107
    %v153 = vpack.c.b16 %v111, %v108
    %v154 = vpack.c.b16 %v115, %v112
    %v155 = vpack.c.b16 %v116, %v113
    %v156 = vpack.c.b16 %v117, %v114
    %v157 = vpack.c.b16 %v121, %v118
    %v158 = vpack.c.b16 %v122, %v119
    %v159 = vpack.c.b16 %v123, %v120
    %v160 = vpack.c.b16 %v127, %v124
    %v161 = vpack.c.b16 %v128, %v125
    %v162 = vpack.c.b16 %v129, %v126
    %v163 = vpack.c.b16 %v133, %v130
    %v164 = vpack.c.b16 %v134, %v131
    %v165 = vpack.c.b16 %v135, %v132
    %v166 = vpack.c.b16 %v139, %v136
    %v167 = vpack.c.b16 %v140, %v137
    %v168 = vpack.c.b16 %v141, %v138
    %v169 = vpack.c.b16 %v145, %v142
    %v170 = vpack.c.b16 %v146, %v143
    %v171 = vpack.c.b16 %v147, %v144
    %196 = vmatprep.subr.bf16.mxu0 %v170
    %197 = vmatpush1.bf16.msra.mxu0 %v169
    %198 = vmatprep.subr.bf16.mxu0 %v167
    %199 = vmatpush1.bf16.msra.mxu0 %v166
    %200 = vmatprep.subr.bf16.mxu0 %v164
    %201 = vmatpush1.bf16.msra.mxu0 %v163
    %202 = vmatprep.subr.bf16.mxu0 %v161
    %203 = vmatpush1.bf16.msra.mxu0 %v160
    %204 = vmatprep.subr.bf16.mxu0 %v158
    %205 = vmatpush1.bf16.msra.mxu0 %v157
    %206 = vmatprep.subr.bf16.mxu0 %v155
    %207 = vmatpush1.bf16.msra.mxu0 %v154
    %208 = vmatprep.subr.bf16.mxu0 %v152
    %209 = vmatpush1.bf16.msra.mxu0 %v151
    %210 = vmatprep.subr.bf16.mxu0 %v149
    %211 = vmatpush1.bf16.msra.mxu0 %v148
    %212 = vmatprep.subr.bf16.mxu0 0
    %213 = vmatpush2.bf16.msra.mxu0 0
    %214 = vmatprep.subr.bf16.mxu0 0
    %215 = vmatpush2.bf16.msra.mxu0 0
    %216 = vmatprep.subr.bf16.mxu0 0
    %217 = vmatpush2.bf16.msra.mxu0 0
    %218 = vmatprep.subr.bf16.mxu0 0
    %219 = vmatpush2.bf16.msra.mxu0 0
    %220 = vmatprep.subr.bf16.mxu0 0
    %221 = vmatpush2.bf16.msra.mxu0 0
    %222 = vmatprep.subr.bf16.mxu0 0
    %223 = vmatpush2.bf16.msra.mxu0 0
    %224 = vmatprep.subr.bf16.mxu0 0
    %225 = vmatpush2.bf16.msra.mxu0 0
    %226 = vmatprep.subr.bf16.mxu0 0
    %227 = vmatpush2.bf16.msra.mxu0 0
    %228 = vmatprep.mubr.bf16.mxu0 0
    %229 = vmatmul.mubr.bf16.gmra.mxu0 %v67
    %v230 = vpop.f32.mrf.mxu0
    %v231 = vadd.f32 0.0, %v230
    %v232 = vpop.f32.mrf.mxu0
    %v233 = vadd.f32 0.0, %v232
    %v234 = vpop.f32.mrf.mxu0
    %v235 = vpop.f32.mrf.mxu0
    %236 = vdwg.mxu0
    %237 = vmatprep.subr.bf16.mxu0 0
    %238 = vmatpush1.bf16.msra.mxu0 %v171
    %239 = vmatprep.subr.bf16.mxu0 0
    %240 = vmatpush1.bf16.msra.mxu0 %v168
    %241 = vmatprep.subr.bf16.mxu0 0
    %242 = vmatpush1.bf16.msra.mxu0 %v165
    %243 = vmatprep.subr.bf16.mxu0 0
    %244 = vmatpush1.bf16.msra.mxu0 %v162
    %245 = vmatprep.subr.bf16.mxu0 0
    %246 = vmatpush1.bf16.msra.mxu0 %v159
    %247 = vmatprep.subr.bf16.mxu0 0
    %248 = vmatpush1.bf16.msra.mxu0 %v156
    %249 = vmatprep.subr.bf16.mxu0 0
    %250 = vmatpush1.bf16.msra.mxu0 %v153
    %251 = vmatprep.subr.bf16.mxu0 0
    %252 = vmatpush1.bf16.msra.mxu0 %v150
    %253 = vmatprep.subr.bf16.mxu0 0
    %254 = vmatpush2.bf16.msra.mxu0 0
    %255 = vmatprep.subr.bf16.mxu0 0
    %256 = vmatpush2.bf16.msra.mxu0 0
    %257 = vmatprep.subr.bf16.mxu0 0
    %258 = vmatpush2.bf16.msra.mxu0 0
    %259 = vmatprep.subr.bf16.mxu0 0
    %260 = vmatpush2.bf16.msra.mxu0 0
    %261 = vmatprep.subr.bf16.mxu0 0
    %262 = vmatpush2.bf16.msra.mxu0 0
    %263 = vmatprep.subr.bf16.mxu0 0
    %264 = vmatpush2.bf16.msra.mxu0 0
    %265 = vmatprep.subr.bf16.mxu0 0
    %266 = vmatpush2.bf16.msra.mxu0 0
    %267 = vmatprep.subr.bf16.mxu0 0
    %268 = vmatpush2.bf16.msra.mxu0 0
    %269 = vmatprep.mubr.bf16.mxu0 0
    %270 = vmatmul.mubr.bf16.gmra.mxu0 %v67
    %v271 = vpop.f32.mrf.mxu0
    %v272 = vadd.f32 0.0, %v271
    %v273 = vpop.f32.mrf.mxu0
    %v274 = vpop.f32.mrf.mxu0
    %v275 = vpop.f32.mrf.mxu0
    %276 = vdwg.mxu0
    %v277 = vld [vmem:[%s0] sm:$0xff]
    %v278 = vld [vmem:[%s0 + $0x8] sm:$0xff]
    %v279 = vld [vmem:[%s0 + $0x10] sm:$0xff]
    %v280 = vadd.f32 %v277, %v231
    %v281 = vxor.u32 %v280, 2147483648
    %v282 = vmul.f32 %v281, 1.442695
    %v283 = vpow.pop %v282
    %v284 = vadd.f32 %v283, 1.0
    %v285 = vrcp.pop %v284
    %v286 = vmul.f32 1.0, %v285
    %v287 = vadd.f32 %v278, %v233
    %v288 = vxor.u32 %v287, 2147483648
    %v289 = vmul.f32 %v288, 1.442695
    %v290 = vpow.pop %v289
    %v291 = vadd.f32 %v290, 1.0
    %v292 = vrcp.pop %v291
    %v293 = vmul.f32 1.0, %v292
    %v294 = vadd.f32 %v272, %v64
    %v295 = vmul.f32 %v286, %v294
    %v296 = vadd.f32 %v279, %v295
    %v297 = vtanh.pop %v296
    %v298 = vsub.f32 1.0, %v293
    %v299 = vmul.f32 %v298, %v297
    %v300 = vmul.f32 %v293, %v66
    %v301 = vadd.f32 %v299, %v300
    %v302 = vpack.c.bf16 %v301, %v301
    %303 = vmatprep.subr.bf16.mxu0 %v170
    %304 = vmatpush1.bf16.msra.mxu0 %v169
    %305 = vmatprep.subr.bf16.mxu0 %v167
    %306 = vmatpush1.bf16.msra.mxu0 %v166
    %307 = vmatprep.subr.bf16.mxu0 %v164
    %308 = vmatpush1.bf16.msra.mxu0 %v163
    %309 = vmatprep.subr.bf16.mxu0 %v161
    %310 = vmatpush1.bf16.msra.mxu0 %v160
    %311 = vmatprep.subr.bf16.mxu0 %v158
    %312 = vmatpush1.bf16.msra.mxu0 %v157
    %313 = vmatprep.subr.bf16.mxu0 %v155
    %314 = vmatpush1.bf16.msra.mxu0 %v154
    %315 = vmatprep.subr.bf16.mxu0 %v152
    %316 = vmatpush1.bf16.msra.mxu0 %v151
    %317 = vmatprep.subr.bf16.mxu0 %v149
    %318 = vmatpush1.bf16.msra.mxu0 %v148
    %319 = vmatprep.subr.bf16.mxu0 0
    %320 = vmatpush2.bf16.msra.mxu0 0
    %321 = vmatprep.subr.bf16.mxu0 0
    %322 = vmatpush2.bf16.msra.mxu0 0
    %323 = vmatprep.subr.bf16.mxu0 0
    %324 = vmatpush2.bf16.msra.mxu0 0
    %325 = vmatprep.subr.bf16.mxu0 0
    %326 = vmatpush2.bf16.msra.mxu0 0
    %327 = vmatprep.subr.bf16.mxu0 0
    %328 = vmatpush2.bf16.msra.mxu0 0
    %329 = vmatprep.subr.bf16.mxu0 0
    %330 = vmatpush2.bf16.msra.mxu0 0
    %331 = vmatprep.subr.bf16.mxu0 0
    %332 = vmatpush2.bf16.msra.mxu0 0
    %333 = vmatprep.subr.bf16.mxu0 0
    %334 = vmatpush2.bf16.msra.mxu0 0
    %335 = vmatprep.mubr.bf16.mxu0 0
    %336 = vmatmul.mubr.bf16.gmra.mxu0 %v302
    %v337 = vpop.f32.mrf.mxu0
    %v338 = vadd.f32 0.0, %v337
    %v339 = vpop.f32.mrf.mxu0
    %v340 = vadd.f32 0.0, %v339
    %v341 = vpop.f32.mrf.mxu0
    %v342 = vpop.f32.mrf.mxu0
    %343 = vdwg.mxu0
    %344 = vmatprep.subr.bf16.mxu0 0
    %345 = vmatpush1.bf16.msra.mxu0 %v171
    %346 = vmatprep.subr.bf16.mxu0 0
    %347 = vmatpush1.bf16.msra.mxu0 %v168
    %348 = vmatprep.subr.bf16.mxu0 0
    %349 = vmatpush1.bf16.msra.mxu0 %v165
    %350 = vmatprep.subr.bf16.mxu0 0
    %351 = vmatpush1.bf16.msra.mxu0 %v162
    %352 = vmatprep.subr.bf16.mxu0 0
    %353 = vmatpush1.bf16.msra.mxu0 %v159
    %354 = vmatprep.subr.bf16.mxu0 0
    %355 = vmatpush1.bf16.msra.mxu0 %v156
    %356 = vmatprep.subr.bf16.mxu0 0
    %357 = vmatpush1.bf16.msra.mxu0 %v153
    %358 = vmatprep.subr.bf16.mxu0 0
    %359 = vmatpush1.bf16.msra.mxu0 %v150
    %360 = vmatprep.subr.bf16.mxu0 0
    %361 = vmatpush2.bf16.msra.mxu0 0
    %362 = vmatprep.subr.bf16.mxu0 0
    %363 = vmatpush2.bf16.msra.mxu0 0
    %364 = vmatprep.subr.bf16.mxu0 0
    %365 = vmatpush2.bf16.msra.mxu0 0
    %366 = vmatprep.subr.bf16.mxu0 0
    %367 = vmatpush2.bf16.msra.mxu0 0
    %368 = vmatprep.subr.bf16.mxu0 0
    %369 = vmatpush2.bf16.msra.mxu0 0
    %370 = vmatprep.subr.bf16.mxu0 0
    %371 = vmatpush2.bf16.msra.mxu0 0
    %372 = vmatprep.subr.bf16.mxu0 0
    %373 = vmatpush2.bf16.msra.mxu0 0
    %374 = vmatprep.subr.bf16.mxu0 0
    %375 = vmatpush2.bf16.msra.mxu0 0
    %376 = vmatprep.mubr.bf16.mxu0 0
    %377 = vmatmul.mubr.bf16.gmra.mxu0 %v302
    %v378 = vpop.f32.mrf.mxu0
    %v379 = vadd.f32 0.0, %v378
    %v380 = vpop.f32.mrf.mxu0
    %v381 = vpop.f32.mrf.mxu0
    %v382 = vpop.f32.mrf.mxu0
    %383 = vdwg.mxu0
    %s384 = scalar_lea.vmem %s0, 24
    %v385 = vld [vmem:[%s384] sm:$0xff]
    %v386 = vld [vmem:[%s384 + $0x8] sm:$0xff]
    %v387 = vld [vmem:[%s384 + $0x10] sm:$0xff]
    %v388 = vadd.f32 %v385, %v338
    %v389 = vxor.u32 %v388, 2147483648
    %v390 = vmul.f32 %v389, 1.442695
    %v391 = vpow.pop %v390
    %v392 = vadd.f32 %v391, 1.0
    %v393 = vrcp.pop %v392
    %v394 = vmul.f32 1.0, %v393
    %v395 = vadd.f32 %v386, %v340
    %v396 = vxor.u32 %v395, 2147483648
    %v397 = vmul.f32 %v396, 1.442695
    %v398 = vpow.pop %v397
    %v399 = vadd.f32 %v398, 1.0
    %v400 = vrcp.pop %v399
    %v401 = vmul.f32 1.0, %v400
    %v402 = vadd.f32 %v379, %v64
    %v403 = vmul.f32 %v394, %v402
    %v404 = vadd.f32 %v387, %v403
    %v405 = vtanh.pop %v404
    %v406 = vsub.f32 1.0, %v401
    %v407 = vmul.f32 %v406, %v405
    %v408 = vmul.f32 %v401, %v301
    %v409 = vadd.f32 %v407, %v408
    %v410 = vpack.c.bf16 %v409, %v409
    %411 = vmatprep.subr.bf16.mxu0 %v170
    %412 = vmatpush1.bf16.msra.mxu0 %v169
    %413 = vmatprep.subr.bf16.mxu0 %v167
    %414 = vmatpush1.bf16.msra.mxu0 %v166
    %415 = vmatprep.subr.bf16.mxu0 %v164
    %416 = vmatpush1.bf16.msra.mxu0 %v163
    %417 = vmatprep.subr.bf16.mxu0 %v161
    %418 = vmatpush1.bf16.msra.mxu0 %v160
    %419 = vmatprep.subr.bf16.mxu0 %v158
    %420 = vmatpush1.bf16.msra.mxu0 %v157
    %421 = vmatprep.subr.bf16.mxu0 %v155
    %422 = vmatpush1.bf16.msra.mxu0 %v154
    %423 = vmatprep.subr.bf16.mxu0 %v152
    %424 = vmatpush1.bf16.msra.mxu0 %v151
    %425 = vmatprep.subr.bf16.mxu0 %v149
    %426 = vmatpush1.bf16.msra.mxu0 %v148
    %427 = vmatprep.subr.bf16.mxu0 0
    %428 = vmatpush2.bf16.msra.mxu0 0
    %429 = vmatprep.subr.bf16.mxu0 0
    %430 = vmatpush2.bf16.msra.mxu0 0
    %431 = vmatprep.subr.bf16.mxu0 0
    %432 = vmatpush2.bf16.msra.mxu0 0
    %433 = vmatprep.subr.bf16.mxu0 0
    %434 = vmatpush2.bf16.msra.mxu0 0
    %435 = vmatprep.subr.bf16.mxu0 0
    %436 = vmatpush2.bf16.msra.mxu0 0
    %437 = vmatprep.subr.bf16.mxu0 0
    %438 = vmatpush2.bf16.msra.mxu0 0
    %439 = vmatprep.subr.bf16.mxu0 0
    %440 = vmatpush2.bf16.msra.mxu0 0
    %441 = vmatprep.subr.bf16.mxu0 0
    %442 = vmatpush2.bf16.msra.mxu0 0
    %443 = vmatprep.mubr.bf16.mxu0 0
    %444 = vmatmul.mubr.bf16.gmra.mxu0 %v410
    %v445 = vpop.f32.mrf.mxu0
    %v446 = vadd.f32 0.0, %v445
    %v447 = vpop.f32.mrf.mxu0
    %v448 = vadd.f32 0.0, %v447
    %v449 = vpop.f32.mrf.mxu0
    %v450 = vpop.f32.mrf.mxu0
    %451 = vdwg.mxu0
    %452 = vmatprep.subr.bf16.mxu0 0
    %453 = vmatpush1.bf16.msra.mxu0 %v171
    %454 = vmatprep.subr.bf16.mxu0 0
    %455 = vmatpush1.bf16.msra.mxu0 %v168
    %456 = vmatprep.subr.bf16.mxu0 0
    %457 = vmatpush1.bf16.msra.mxu0 %v165
    %458 = vmatprep.subr.bf16.mxu0 0
    %459 = vmatpush1.bf16.msra.mxu0 %v162
    %460 = vmatprep.subr.bf16.mxu0 0
    %461 = vmatpush1.bf16.msra.mxu0 %v159
    %462 = vmatprep.subr.bf16.mxu0 0
    %463 = vmatpush1.bf16.msra.mxu0 %v156
    %464 = vmatprep.subr.bf16.mxu0 0
    %465 = vmatpush1.bf16.msra.mxu0 %v153
    %466 = vmatprep.subr.bf16.mxu0 0
    %467 = vmatpush1.bf16.msra.mxu0 %v150
    %468 = vmatprep.subr.bf16.mxu0 0
    %469 = vmatpush2.bf16.msra.mxu0 0
    %470 = vmatprep.subr.bf16.mxu0 0
    %471 = vmatpush2.bf16.msra.mxu0 0
    %472 = vmatprep.subr.bf16.mxu0 0
    %473 = vmatpush2.bf16.msra.mxu0 0
    %474 = vmatprep.subr.bf16.mxu0 0
    %475 = vmatpush2.bf16.msra.mxu0 0
    %476 = vmatprep.subr.bf16.mxu0 0
    %477 = vmatpush2.bf16.msra.mxu0 0
    %478 = vmatprep.subr.bf16.mxu0 0
    %479 = vmatpush2.bf16.msra.mxu0 0
    %480 = vmatprep.subr.bf16.mxu0 0
    %481 = vmatpush2.bf16.msra.mxu0 0
    %482 = vmatprep.subr.bf16.mxu0 0
    %483 = vmatpush2.bf16.msra.mxu0 0
    %484 = vmatprep.mubr.bf16.mxu0 0
    %485 = vmatmul.mubr.bf16.gmra.mxu0 %v410
    %v486 = vpop.f32.mrf.mxu0
    %v487 = vadd.f32 0.0, %v486
    %v488 = vpop.f32.mrf.mxu0
    %v489 = vpop.f32.mrf.mxu0
    %v490 = vpop.f32.mrf.mxu0
    %491 = vdwg.mxu0
    %s492 = scalar_lea.vmem %s0, 48
    %v493 = vld [vmem:[%s492] sm:$0xff]
    %v494 = vld [vmem:[%s492 + $0x8] sm:$0xff]
    %v495 = vld [vmem:[%s492 + $0x10] sm:$0xff]
    %v496 = vadd.f32 %v493, %v446
    %v497 = vxor.u32 %v496, 2147483648
    %v498 = vmul.f32 %v497, 1.442695
    %v499 = vpow.pop %v498
    %v500 = vadd.f32 %v499, 1.0
    %v501 = vrcp.pop %v500
    %v502 = vmul.f32 1.0, %v501
    %v503 = vadd.f32 %v494, %v448
    %v504 = vxor.u32 %v503, 2147483648
    %v505 = vmul.f32 %v504, 1.442695
    %v506 = vpow.pop %v505
    %v507 = vadd.f32 %v506, 1.0
    %v508 = vrcp.pop %v507
    %v509 = vmul.f32 1.0, %v508
    %v510 = vadd.f32 %v487, %v64
    %v511 = vmul.f32 %v502, %v510
    %v512 = vadd.f32 %v495, %v511
    %v513 = vtanh.pop %v512
    %v514 = vsub.f32 1.0, %v509
    %v515 = vmul.f32 %v514, %v513
    %v516 = vmul.f32 %v509, %v409
    %v517 = vadd.f32 %v515, %v516
    %v518 = vpack.c.bf16 %v517, %v517
    %519 = vmatprep.subr.bf16.mxu0 %v170
    %520 = vmatpush1.bf16.msra.mxu0 %v169
    %521 = vmatprep.subr.bf16.mxu0 %v167
    %522 = vmatpush1.bf16.msra.mxu0 %v166
    %523 = vmatprep.subr.bf16.mxu0 %v164
    %524 = vmatpush1.bf16.msra.mxu0 %v163
    %525 = vmatprep.subr.bf16.mxu0 %v161
    %526 = vmatpush1.bf16.msra.mxu0 %v160
    %527 = vmatprep.subr.bf16.mxu0 %v158
    %528 = vmatpush1.bf16.msra.mxu0 %v157
    %529 = vmatprep.subr.bf16.mxu0 %v155
    %530 = vmatpush1.bf16.msra.mxu0 %v154
    %531 = vmatprep.subr.bf16.mxu0 %v152
    %532 = vmatpush1.bf16.msra.mxu0 %v151
    %533 = vmatprep.subr.bf16.mxu0 %v149
    %534 = vmatpush1.bf16.msra.mxu0 %v148
    %535 = vmatprep.subr.bf16.mxu0 0
    %536 = vmatpush2.bf16.msra.mxu0 0
    %537 = vmatprep.subr.bf16.mxu0 0
    %538 = vmatpush2.bf16.msra.mxu0 0
    %539 = vmatprep.subr.bf16.mxu0 0
    %540 = vmatpush2.bf16.msra.mxu0 0
    %541 = vmatprep.subr.bf16.mxu0 0
    %542 = vmatpush2.bf16.msra.mxu0 0
    %543 = vmatprep.subr.bf16.mxu0 0
    %544 = vmatpush2.bf16.msra.mxu0 0
    %545 = vmatprep.subr.bf16.mxu0 0
    %546 = vmatpush2.bf16.msra.mxu0 0
    %547 = vmatprep.subr.bf16.mxu0 0
    %548 = vmatpush2.bf16.msra.mxu0 0
    %549 = vmatprep.subr.bf16.mxu0 0
    %550 = vmatpush2.bf16.msra.mxu0 0
    %551 = vmatprep.mubr.bf16.mxu0 0
    %552 = vmatmul.mubr.bf16.gmra.mxu0 %v518
    %v553 = vpop.f32.mrf.mxu0
    %v554 = vadd.f32 0.0, %v553
    %v555 = vpop.f32.mrf.mxu0
    %v556 = vadd.f32 0.0, %v555
    %v557 = vpop.f32.mrf.mxu0
    %v558 = vpop.f32.mrf.mxu0
    %559 = vdwg.mxu0
    %560 = vmatprep.subr.bf16.mxu0 0
    %561 = vmatpush1.bf16.msra.mxu0 %v171
    %562 = vmatprep.subr.bf16.mxu0 0
    %563 = vmatpush1.bf16.msra.mxu0 %v168
    %564 = vmatprep.subr.bf16.mxu0 0
    %565 = vmatpush1.bf16.msra.mxu0 %v165
    %566 = vmatprep.subr.bf16.mxu0 0
    %567 = vmatpush1.bf16.msra.mxu0 %v162
    %568 = vmatprep.subr.bf16.mxu0 0
    %569 = vmatpush1.bf16.msra.mxu0 %v159
    %570 = vmatprep.subr.bf16.mxu0 0
    %571 = vmatpush1.bf16.msra.mxu0 %v156
    %572 = vmatprep.subr.bf16.mxu0 0
    %573 = vmatpush1.bf16.msra.mxu0 %v153
    %574 = vmatprep.subr.bf16.mxu0 0
    %575 = vmatpush1.bf16.msra.mxu0 %v150
    %576 = vmatprep.subr.bf16.mxu0 0
    %577 = vmatpush2.bf16.msra.mxu0 0
    %578 = vmatprep.subr.bf16.mxu0 0
    %579 = vmatpush2.bf16.msra.mxu0 0
    %580 = vmatprep.subr.bf16.mxu0 0
    %581 = vmatpush2.bf16.msra.mxu0 0
    %582 = vmatprep.subr.bf16.mxu0 0
    %583 = vmatpush2.bf16.msra.mxu0 0
    %584 = vmatprep.subr.bf16.mxu0 0
    %585 = vmatpush2.bf16.msra.mxu0 0
    %586 = vmatprep.subr.bf16.mxu0 0
    %587 = vmatpush2.bf16.msra.mxu0 0
    %588 = vmatprep.subr.bf16.mxu0 0
    %589 = vmatpush2.bf16.msra.mxu0 0
    %590 = vmatprep.subr.bf16.mxu0 0
    %591 = vmatpush2.bf16.msra.mxu0 0
    %592 = vmatprep.mubr.bf16.mxu0 0
    %593 = vmatmul.mubr.bf16.gmra.mxu0 %v518
    %v594 = vpop.f32.mrf.mxu0
    %v595 = vadd.f32 0.0, %v594
    %v596 = vpop.f32.mrf.mxu0
    %v597 = vpop.f32.mrf.mxu0
    %v598 = vpop.f32.mrf.mxu0
    %599 = vdwg.mxu0
    %s600 = scalar_lea.vmem %s0, 72
    %v601 = vld [vmem:[%s600] sm:$0xff]
    %v602 = vld [vmem:[%s600 + $0x8] sm:$0xff]
    %v603 = vld [vmem:[%s600 + $0x10] sm:$0xff]
    %v604 = vadd.f32 %v601, %v554
    %v605 = vxor.u32 %v604, 2147483648
    %v606 = vmul.f32 %v605, 1.442695
    %v607 = vpow.pop %v606
    %v608 = vadd.f32 %v607, 1.0
    %v609 = vrcp.pop %v608
    %v610 = vmul.f32 1.0, %v609
    %v611 = vadd.f32 %v602, %v556
    %v612 = vxor.u32 %v611, 2147483648
    %v613 = vmul.f32 %v612, 1.442695
    %v614 = vpow.pop %v613
    %v615 = vadd.f32 %v614, 1.0
    %v616 = vrcp.pop %v615
    %v617 = vmul.f32 1.0, %v616
    %v618 = vadd.f32 %v595, %v64
    %v619 = vmul.f32 %v610, %v618
    %v620 = vadd.f32 %v603, %v619
    %v621 = vtanh.pop %v620
    %v622 = vsub.f32 1.0, %v617
    %v623 = vmul.f32 %v622, %v621
    %v624 = vmul.f32 %v617, %v517
    %v625 = vadd.f32 %v623, %v624
    %v626 = vpack.c.bf16 %v625, %v625
    %627 = vmatprep.subr.bf16.mxu0 %v170
    %628 = vmatpush1.bf16.msra.mxu0 %v169
    %629 = vmatprep.subr.bf16.mxu0 %v167
    %630 = vmatpush1.bf16.msra.mxu0 %v166
    %631 = vmatprep.subr.bf16.mxu0 %v164
    %632 = vmatpush1.bf16.msra.mxu0 %v163
    %633 = vmatprep.subr.bf16.mxu0 %v161
    %634 = vmatpush1.bf16.msra.mxu0 %v160
    %635 = vmatprep.subr.bf16.mxu0 %v158
    %636 = vmatpush1.bf16.msra.mxu0 %v157
    %637 = vmatprep.subr.bf16.mxu0 %v155
    %638 = vmatpush1.bf16.msra.mxu0 %v154
    %639 = vmatprep.subr.bf16.mxu0 %v152
    %640 = vmatpush1.bf16.msra.mxu0 %v151
    %641 = vmatprep.subr.bf16.mxu0 %v149
    %642 = vmatpush1.bf16.msra.mxu0 %v148
    %643 = vmatprep.subr.bf16.mxu0 0
    %644 = vmatpush2.bf16.msra.mxu0 0
    %645 = vmatprep.subr.bf16.mxu0 0
    %646 = vmatpush2.bf16.msra.mxu0 0
    %647 = vmatprep.subr.bf16.mxu0 0
    %648 = vmatpush2.bf16.msra.mxu0 0
    %649 = vmatprep.subr.bf16.mxu0 0
    %650 = vmatpush2.bf16.msra.mxu0 0
    %651 = vmatprep.subr.bf16.mxu0 0
    %652 = vmatpush2.bf16.msra.mxu0 0
    %653 = vmatprep.subr.bf16.mxu0 0
    %654 = vmatpush2.bf16.msra.mxu0 0
    %655 = vmatprep.subr.bf16.mxu0 0
    %656 = vmatpush2.bf16.msra.mxu0 0
    %657 = vmatprep.subr.bf16.mxu0 0
    %658 = vmatpush2.bf16.msra.mxu0 0
    %659 = vmatprep.mubr.bf16.mxu0 0
    %660 = vmatmul.mubr.bf16.gmra.mxu0 %v626
    %v661 = vpop.f32.mrf.mxu0
    %v662 = vadd.f32 0.0, %v661
    %v663 = vpop.f32.mrf.mxu0
    %v664 = vadd.f32 0.0, %v663
    %v665 = vpop.f32.mrf.mxu0
    %v666 = vpop.f32.mrf.mxu0
    %667 = vdwg.mxu0
    %668 = vmatprep.subr.bf16.mxu0 0
    %669 = vmatpush1.bf16.msra.mxu0 %v171
    %670 = vmatprep.subr.bf16.mxu0 0
    %671 = vmatpush1.bf16.msra.mxu0 %v168
    %672 = vmatprep.subr.bf16.mxu0 0
    %673 = vmatpush1.bf16.msra.mxu0 %v165
    %674 = vmatprep.subr.bf16.mxu0 0
    %675 = vmatpush1.bf16.msra.mxu0 %v162
    %676 = vmatprep.subr.bf16.mxu0 0
    %677 = vmatpush1.bf16.msra.mxu0 %v159
    %678 = vmatprep.subr.bf16.mxu0 0
    %679 = vmatpush1.bf16.msra.mxu0 %v156
    %680 = vmatprep.subr.bf16.mxu0 0
    %681 = vmatpush1.bf16.msra.mxu0 %v153
    %682 = vmatprep.subr.bf16.mxu0 0
    %683 = vmatpush1.bf16.msra.mxu0 %v150
    %684 = vmatprep.subr.bf16.mxu0 0
    %685 = vmatpush2.bf16.msra.mxu0 0
    %686 = vmatprep.subr.bf16.mxu0 0
    %687 = vmatpush2.bf16.msra.mxu0 0
    %688 = vmatprep.subr.bf16.mxu0 0
    %689 = vmatpush2.bf16.msra.mxu0 0
    %690 = vmatprep.subr.bf16.mxu0 0
    %691 = vmatpush2.bf16.msra.mxu0 0
    %692 = vmatprep.subr.bf16.mxu0 0
    %693 = vmatpush2.bf16.msra.mxu0 0
    %694 = vmatprep.subr.bf16.mxu0 0
    %695 = vmatpush2.bf16.msra.mxu0 0
    %696 = vmatprep.subr.bf16.mxu0 0
    %697 = vmatpush2.bf16.msra.mxu0 0
    %698 = vmatprep.subr.bf16.mxu0 0
    %699 = vmatpush2.bf16.msra.mxu0 0
    %700 = vmatprep.mubr.bf16.mxu0 0
    %701 = vmatmul.mubr.bf16.gmra.mxu0 %v626
    %v702 = vpop.f32.mrf.mxu0
    %v703 = vadd.f32 0.0, %v702
    %v704 = vpop.f32.mrf.mxu0
    %v705 = vpop.f32.mrf.mxu0
    %v706 = vpop.f32.mrf.mxu0
    %707 = vdwg.mxu0
    %s708 = scalar_lea.vmem %s0, 96
    %v709 = vld [vmem:[%s708] sm:$0xff]
    %v710 = vld [vmem:[%s708 + $0x8] sm:$0xff]
    %v711 = vld [vmem:[%s708 + $0x10] sm:$0xff]
    %v712 = vadd.f32 %v709, %v662
    %v713 = vxor.u32 %v712, 2147483648
    %v714 = vmul.f32 %v713, 1.442695
    %v715 = vpow.pop %v714
    %v716 = vadd.f32 %v715, 1.0
    %v717 = vrcp.pop %v716
    %v718 = vmul.f32 1.0, %v717
    %v719 = vadd.f32 %v710, %v664
    %v720 = vxor.u32 %v719, 2147483648
    %v721 = vmul.f32 %v720, 1.442695
    %v722 = vpow.pop %v721
    %v723 = vadd.f32 %v722, 1.0
    %v724 = vrcp.pop %v723
    %v725 = vmul.f32 1.0, %v724
    %v726 = vadd.f32 %v703, %v64
    %v727 = vmul.f32 %v718, %v726
    %v728 = vadd.f32 %v711, %v727
    %v729 = vtanh.pop %v728
    %v730 = vsub.f32 1.0, %v725
    %v731 = vmul.f32 %v730, %v729
    %v732 = vmul.f32 %v725, %v625
    %v733 = vadd.f32 %v731, %v732
    %v734 = vpack.c.bf16 %v733, %v733
    %735 = vmatprep.subr.bf16.mxu0 %v170
    %736 = vmatpush1.bf16.msra.mxu0 %v169
    %737 = vmatprep.subr.bf16.mxu0 %v167
    %738 = vmatpush1.bf16.msra.mxu0 %v166
    %739 = vmatprep.subr.bf16.mxu0 %v164
    %740 = vmatpush1.bf16.msra.mxu0 %v163
    %741 = vmatprep.subr.bf16.mxu0 %v161
    %742 = vmatpush1.bf16.msra.mxu0 %v160
    %743 = vmatprep.subr.bf16.mxu0 %v158
    %744 = vmatpush1.bf16.msra.mxu0 %v157
    %745 = vmatprep.subr.bf16.mxu0 %v155
    %746 = vmatpush1.bf16.msra.mxu0 %v154
    %747 = vmatprep.subr.bf16.mxu0 %v152
    %748 = vmatpush1.bf16.msra.mxu0 %v151
    %749 = vmatprep.subr.bf16.mxu0 %v149
    %750 = vmatpush1.bf16.msra.mxu0 %v148
    %751 = vmatprep.subr.bf16.mxu0 0
    %752 = vmatpush2.bf16.msra.mxu0 0
    %753 = vmatprep.subr.bf16.mxu0 0
    %754 = vmatpush2.bf16.msra.mxu0 0
    %755 = vmatprep.subr.bf16.mxu0 0
    %756 = vmatpush2.bf16.msra.mxu0 0
    %757 = vmatprep.subr.bf16.mxu0 0
    %758 = vmatpush2.bf16.msra.mxu0 0
    %759 = vmatprep.subr.bf16.mxu0 0
    %760 = vmatpush2.bf16.msra.mxu0 0
    %761 = vmatprep.subr.bf16.mxu0 0
    %762 = vmatpush2.bf16.msra.mxu0 0
    %763 = vmatprep.subr.bf16.mxu0 0
    %764 = vmatpush2.bf16.msra.mxu0 0
    %765 = vmatprep.subr.bf16.mxu0 0
    %766 = vmatpush2.bf16.msra.mxu0 0
    %767 = vmatprep.mubr.bf16.mxu0 0
    %768 = vmatmul.mubr.bf16.gmra.mxu0 %v734
    %v769 = vpop.f32.mrf.mxu0
    %v770 = vadd.f32 0.0, %v769
    %v771 = vpop.f32.mrf.mxu0
    %v772 = vadd.f32 0.0, %v771
    %v773 = vpop.f32.mrf.mxu0
    %v774 = vpop.f32.mrf.mxu0
    %775 = vdwg.mxu0
    %776 = vmatprep.subr.bf16.mxu0 0
    %777 = vmatpush1.bf16.msra.mxu0 %v171
    %778 = vmatprep.subr.bf16.mxu0 0
    %779 = vmatpush1.bf16.msra.mxu0 %v168
    %780 = vmatprep.subr.bf16.mxu0 0
    %781 = vmatpush1.bf16.msra.mxu0 %v165
    %782 = vmatprep.subr.bf16.mxu0 0
    %783 = vmatpush1.bf16.msra.mxu0 %v162
    %784 = vmatprep.subr.bf16.mxu0 0
    %785 = vmatpush1.bf16.msra.mxu0 %v159
    %786 = vmatprep.subr.bf16.mxu0 0
    %787 = vmatpush1.bf16.msra.mxu0 %v156
    %788 = vmatprep.subr.bf16.mxu0 0
    %789 = vmatpush1.bf16.msra.mxu0 %v153
    %790 = vmatprep.subr.bf16.mxu0 0
    %791 = vmatpush1.bf16.msra.mxu0 %v150
    %792 = vmatprep.subr.bf16.mxu0 0
    %793 = vmatpush2.bf16.msra.mxu0 0
    %794 = vmatprep.subr.bf16.mxu0 0
    %795 = vmatpush2.bf16.msra.mxu0 0
    %796 = vmatprep.subr.bf16.mxu0 0
    %797 = vmatpush2.bf16.msra.mxu0 0
    %798 = vmatprep.subr.bf16.mxu0 0
    %799 = vmatpush2.bf16.msra.mxu0 0
    %800 = vmatprep.subr.bf16.mxu0 0
    %801 = vmatpush2.bf16.msra.mxu0 0
    %802 = vmatprep.subr.bf16.mxu0 0
    %803 = vmatpush2.bf16.msra.mxu0 0
    %804 = vmatprep.subr.bf16.mxu0 0
    %805 = vmatpush2.bf16.msra.mxu0 0
    %806 = vmatprep.subr.bf16.mxu0 0
    %807 = vmatpush2.bf16.msra.mxu0 0
    %808 = vmatprep.mubr.bf16.mxu0 0
    %809 = vmatmul.mubr.bf16.gmra.mxu0 %v734
    %v810 = vpop.f32.mrf.mxu0
    %v811 = vadd.f32 0.0, %v810
    %v812 = vpop.f32.mrf.mxu0
    %v813 = vpop.f32.mrf.mxu0
    %v814 = vpop.f32.mrf.mxu0
    %815 = vdwg.mxu0
    %s816 = scalar_lea.vmem %s0, 120
    %v817 = vld [vmem:[%s816] sm:$0xff]
    %v818 = vld [vmem:[%s816 + $0x8] sm:$0xff]
    %v819 = vld [vmem:[%s816 + $0x10] sm:$0xff]
    %v820 = vadd.f32 %v817, %v770
    %v821 = vxor.u32 %v820, 2147483648
    %v822 = vmul.f32 %v821, 1.442695
    %v823 = vpow.pop %v822
    %v824 = vadd.f32 %v823, 1.0
    %v825 = vrcp.pop %v824
    %v826 = vmul.f32 1.0, %v825
    %v827 = vadd.f32 %v818, %v772
    %v828 = vxor.u32 %v827, 2147483648
    %v829 = vmul.f32 %v828, 1.442695
    %v830 = vpow.pop %v829
    %v831 = vadd.f32 %v830, 1.0
    %v832 = vrcp.pop %v831
    %v833 = vmul.f32 1.0, %v832
    %v834 = vadd.f32 %v811, %v64
    %v835 = vmul.f32 %v826, %v834
    %v836 = vadd.f32 %v819, %v835
    %v837 = vtanh.pop %v836
    %v838 = vsub.f32 1.0, %v833
    %v839 = vmul.f32 %v838, %v837
    %v840 = vmul.f32 %v833, %v733
    %v841 = vadd.f32 %v839, %v840
    %v842 = vpack.c.bf16 %v841, %v841
    %843 = vmatprep.subr.bf16.mxu0 %v170
    %844 = vmatpush1.bf16.msra.mxu0 %v169
    %845 = vmatprep.subr.bf16.mxu0 %v167
    %846 = vmatpush1.bf16.msra.mxu0 %v166
    %847 = vmatprep.subr.bf16.mxu0 %v164
    %848 = vmatpush1.bf16.msra.mxu0 %v163
    %849 = vmatprep.subr.bf16.mxu0 %v161
    %850 = vmatpush1.bf16.msra.mxu0 %v160
    %851 = vmatprep.subr.bf16.mxu0 %v158
    %852 = vmatpush1.bf16.msra.mxu0 %v157
    %853 = vmatprep.subr.bf16.mxu0 %v155
    %854 = vmatpush1.bf16.msra.mxu0 %v154
    %855 = vmatprep.subr.bf16.mxu0 %v152
    %856 = vmatpush1.bf16.msra.mxu0 %v151
    %857 = vmatprep.subr.bf16.mxu0 %v149
    %858 = vmatpush1.bf16.msra.mxu0 %v148
    %859 = vmatprep.subr.bf16.mxu0 0
    %860 = vmatpush2.bf16.msra.mxu0 0
    %861 = vmatprep.subr.bf16.mxu0 0
    %862 = vmatpush2.bf16.msra.mxu0 0
    %863 = vmatprep.subr.bf16.mxu0 0
    %864 = vmatpush2.bf16.msra.mxu0 0
    %865 = vmatprep.subr.bf16.mxu0 0
    %866 = vmatpush2.bf16.msra.mxu0 0
    %867 = vmatprep.subr.bf16.mxu0 0
    %868 = vmatpush2.bf16.msra.mxu0 0
    %869 = vmatprep.subr.bf16.mxu0 0
    %870 = vmatpush2.bf16.msra.mxu0 0
    %871 = vmatprep.subr.bf16.mxu0 0
    %872 = vmatpush2.bf16.msra.mxu0 0
    %873 = vmatprep.subr.bf16.mxu0 0
    %874 = vmatpush2.bf16.msra.mxu0 0
    %875 = vmatprep.mubr.bf16.mxu0 0
    %876 = vmatmul.mubr.bf16.gmra.mxu0 %v842
    %v877 = vpop.f32.mrf.mxu0
    %v878 = vadd.f32 0.0, %v877
    %v879 = vpop.f32.mrf.mxu0
    %v880 = vadd.f32 0.0, %v879
    %v881 = vpop.f32.mrf.mxu0
    %v882 = vpop.f32.mrf.mxu0
    %883 = vdwg.mxu0
    %884 = vmatprep.subr.bf16.mxu0 0
    %885 = vmatpush1.bf16.msra.mxu0 %v171
    %886 = vmatprep.subr.bf16.mxu0 0
    %887 = vmatpush1.bf16.msra.mxu0 %v168
    %888 = vmatprep.subr.bf16.mxu0 0
    %889 = vmatpush1.bf16.msra.mxu0 %v165
    %890 = vmatprep.subr.bf16.mxu0 0
    %891 = vmatpush1.bf16.msra.mxu0 %v162
    %892 = vmatprep.subr.bf16.mxu0 0
    %893 = vmatpush1.bf16.msra.mxu0 %v159
    %894 = vmatprep.subr.bf16.mxu0 0
    %895 = vmatpush1.bf16.msra.mxu0 %v156
    %896 = vmatprep.subr.bf16.mxu0 0
    %897 = vmatpush1.bf16.msra.mxu0 %v153
    %898 = vmatprep.subr.bf16.mxu0 0
    %899 = vmatpush1.bf16.msra.mxu0 %v150
    %900 = vmatprep.subr.bf16.mxu0 0
    %901 = vmatpush2.bf16.msra.mxu0 0
    %902 = vmatprep.subr.bf16.mxu0 0
    %903 = vmatpush2.bf16.msra.mxu0 0
    %904 = vmatprep.subr.bf16.mxu0 0
    %905 = vmatpush2.bf16.msra.mxu0 0
    %906 = vmatprep.subr.bf16.mxu0 0
    %907 = vmatpush2.bf16.msra.mxu0 0
    %908 = vmatprep.subr.bf16.mxu0 0
    %909 = vmatpush2.bf16.msra.mxu0 0
    %910 = vmatprep.subr.bf16.mxu0 0
    %911 = vmatpush2.bf16.msra.mxu0 0
    %912 = vmatprep.subr.bf16.mxu0 0
    %913 = vmatpush2.bf16.msra.mxu0 0
    %914 = vmatprep.subr.bf16.mxu0 0
    %915 = vmatpush2.bf16.msra.mxu0 0
    %916 = vmatprep.mubr.bf16.mxu0 0
    %917 = vmatmul.mubr.bf16.gmra.mxu0 %v842
    %v918 = vpop.f32.mrf.mxu0
    %v919 = vadd.f32 0.0, %v918
    %v920 = vpop.f32.mrf.mxu0
    %v921 = vpop.f32.mrf.mxu0
    %v922 = vpop.f32.mrf.mxu0
    %923 = vdwg.mxu0
    %s924 = scalar_lea.vmem %s0, 144
    %v925 = vld [vmem:[%s924] sm:$0xff]
    %v926 = vld [vmem:[%s924 + $0x8] sm:$0xff]
    %v927 = vld [vmem:[%s924 + $0x10] sm:$0xff]
    %v928 = vadd.f32 %v925, %v878
    %v929 = vxor.u32 %v928, 2147483648
    %v930 = vmul.f32 %v929, 1.442695
    %v931 = vpow.pop %v930
    %v932 = vadd.f32 %v931, 1.0
    %v933 = vrcp.pop %v932
    %v934 = vmul.f32 1.0, %v933
    %v935 = vadd.f32 %v926, %v880
    %v936 = vxor.u32 %v935, 2147483648
    %v937 = vmul.f32 %v936, 1.442695
    %v938 = vpow.pop %v937
    %v939 = vadd.f32 %v938, 1.0
    %v940 = vrcp.pop %v939
    %v941 = vmul.f32 1.0, %v940
    %v942 = vadd.f32 %v919, %v64
    %v943 = vmul.f32 %v934, %v942
    %v944 = vadd.f32 %v927, %v943
    %v945 = vtanh.pop %v944
    %v946 = vsub.f32 1.0, %v941
    %v947 = vmul.f32 %v946, %v945
    %v948 = vmul.f32 %v941, %v841
    %v949 = vadd.f32 %v947, %v948
    %v950 = vpack.c.bf16 %v949, %v949
    %951 = vmatprep.subr.bf16.mxu0 %v170
    %952 = vmatpush1.bf16.msra.mxu0 %v169
    %953 = vmatprep.subr.bf16.mxu0 %v167
    %954 = vmatpush1.bf16.msra.mxu0 %v166
    %955 = vmatprep.subr.bf16.mxu0 %v164
    %956 = vmatpush1.bf16.msra.mxu0 %v163
    %957 = vmatprep.subr.bf16.mxu0 %v161
    %958 = vmatpush1.bf16.msra.mxu0 %v160
    %959 = vmatprep.subr.bf16.mxu0 %v158
    %960 = vmatpush1.bf16.msra.mxu0 %v157
    %961 = vmatprep.subr.bf16.mxu0 %v155
    %962 = vmatpush1.bf16.msra.mxu0 %v154
    %963 = vmatprep.subr.bf16.mxu0 %v152
    %964 = vmatpush1.bf16.msra.mxu0 %v151
    %965 = vmatprep.subr.bf16.mxu0 %v149
    %966 = vmatpush1.bf16.msra.mxu0 %v148
    %967 = vmatprep.subr.bf16.mxu0 0
    %968 = vmatpush2.bf16.msra.mxu0 0
    %969 = vmatprep.subr.bf16.mxu0 0
    %970 = vmatpush2.bf16.msra.mxu0 0
    %971 = vmatprep.subr.bf16.mxu0 0
    %972 = vmatpush2.bf16.msra.mxu0 0
    %973 = vmatprep.subr.bf16.mxu0 0
    %974 = vmatpush2.bf16.msra.mxu0 0
    %975 = vmatprep.subr.bf16.mxu0 0
    %976 = vmatpush2.bf16.msra.mxu0 0
    %977 = vmatprep.subr.bf16.mxu0 0
    %978 = vmatpush2.bf16.msra.mxu0 0
    %979 = vmatprep.subr.bf16.mxu0 0
    %980 = vmatpush2.bf16.msra.mxu0 0
    %981 = vmatprep.subr.bf16.mxu0 0
    %982 = vmatpush2.bf16.msra.mxu0 0
    %983 = vmatprep.mubr.bf16.mxu0 0
    %984 = vmatmul.mubr.bf16.gmra.mxu0 %v950
    %v985 = vpop.f32.mrf.mxu0
    %v986 = vadd.f32 0.0, %v985
    %v987 = vpop.f32.mrf.mxu0
    %v988 = vadd.f32 0.0, %v987
    %v989 = vpop.f32.mrf.mxu0
    %v990 = vpop.f32.mrf.mxu0
    %991 = vdwg.mxu0
    %992 = vmatprep.subr.bf16.mxu0 0
    %993 = vmatpush1.bf16.msra.mxu0 %v171
    %994 = vmatprep.subr.bf16.mxu0 0
    %995 = vmatpush1.bf16.msra.mxu0 %v168
    %996 = vmatprep.subr.bf16.mxu0 0
    %997 = vmatpush1.bf16.msra.mxu0 %v165
    %998 = vmatprep.subr.bf16.mxu0 0
    %999 = vmatpush1.bf16.msra.mxu0 %v162
    %1000 = vmatprep.subr.bf16.mxu0 0
    %1001 = vmatpush1.bf16.msra.mxu0 %v159
    %1002 = vmatprep.subr.bf16.mxu0 0
    %1003 = vmatpush1.bf16.msra.mxu0 %v156
    %1004 = vmatprep.subr.bf16.mxu0 0
    %1005 = vmatpush1.bf16.msra.mxu0 %v153
    %1006 = vmatprep.subr.bf16.mxu0 0
    %1007 = vmatpush1.bf16.msra.mxu0 %v150
    %1008 = vmatprep.subr.bf16.mxu0 0
    %1009 = vmatpush2.bf16.msra.mxu0 0
    %1010 = vmatprep.subr.bf16.mxu0 0
    %1011 = vmatpush2.bf16.msra.mxu0 0
    %1012 = vmatprep.subr.bf16.mxu0 0
    %1013 = vmatpush2.bf16.msra.mxu0 0
    %1014 = vmatprep.subr.bf16.mxu0 0
    %1015 = vmatpush2.bf16.msra.mxu0 0
    %1016 = vmatprep.subr.bf16.mxu0 0
    %1017 = vmatpush2.bf16.msra.mxu0 0
    %1018 = vmatprep.subr.bf16.mxu0 0
    %1019 = vmatpush2.bf16.msra.mxu0 0
    %1020 = vmatprep.subr.bf16.mxu0 0
    %1021 = vmatpush2.bf16.msra.mxu0 0
    %1022 = vmatprep.subr.bf16.mxu0 0
    %1023 = vmatpush2.bf16.msra.mxu0 0
    %1024 = vmatprep.mubr.bf16.mxu0 0
    %1025 = vmatmul.mubr.bf16.gmra.mxu0 %v950
    %v1026 = vpop.f32.mrf.mxu0
    %v1027 = vadd.f32 0.0, %v1026
    %v1028 = vpop.f32.mrf.mxu0
    %v1029 = vpop.f32.mrf.mxu0
    %v1030 = vpop.f32.mrf.mxu0
    %1031 = vdwg.mxu0
    %s1032 = scalar_lea.vmem %s0, 168
    %v1033 = vld [vmem:[%s1032] sm:$0xff]
    %v1034 = vld [vmem:[%s1032 + $0x8] sm:$0xff]
    %v1035 = vld [vmem:[%s1032 + $0x10] sm:$0xff]
    %v1036 = vadd.f32 %v1033, %v986
    %v1037 = vxor.u32 %v1036, 2147483648
    %v1038 = vmul.f32 %v1037, 1.442695
    %v1039 = vpow.pop %v1038
    %v1040 = vadd.f32 %v1039, 1.0
    %v1041 = vrcp.pop %v1040
    %v1042 = vmul.f32 1.0, %v1041
    %v1043 = vadd.f32 %v1034, %v988
    %v1044 = vxor.u32 %v1043, 2147483648
    %v1045 = vmul.f32 %v1044, 1.442695
    %v1046 = vpow.pop %v1045
    %v1047 = vadd.f32 %v1046, 1.0
    %v1048 = vrcp.pop %v1047
    %v1049 = vmul.f32 1.0, %v1048
    %v1050 = vadd.f32 %v1027, %v64
    %v1051 = vmul.f32 %v1042, %v1050
    %v1052 = vadd.f32 %v1035, %v1051
    %v1053 = vtanh.pop %v1052
    %v1054 = vsub.f32 1.0, %v1049
    %v1055 = vmul.f32 %v1054, %v1053
    %v1056 = vmul.f32 %v1049, %v949
    %v1057 = vadd.f32 %v1055, %v1056
    %1058 = vst [vmem:[#allocation2] sm:$0xff] %v1057
    // Predicated region
    $region26: #{_forward_padded.7} parent=1 // pred_check
      %p1059 = pneg %p22
    $region27: #{_forward_padded.7} parent=1 // pred_check_branch
      %1061 = sbr.rel (%p1059) target = $region29
    $region28: #{_forward_padded.7} parent=1 // pred_region
      %v1062 = vld [vmem:[#allocation2] sm:$0xff]
      %v1063 = vld [vmem:[%s3] sm:$0xff]
      %v1064 = vld [vmem:[%s3 + $0x8] sm:$0xff]
      %v1065 = vld [vmem:[%s3 + $0x10] sm:$0xff]
      %v1066 = vld [vmem:[%s3 + $0x18] sm:$0xff]
      %v1067 = vld [vmem:[%s3 + $0x20] sm:$0xff]
      %v1068 = vld [vmem:[%s3 + $0x28] sm:$0xff]
      %v1069 = vld [vmem:[%s3 + $0x30] sm:$0xff]
      %v1070 = vld [vmem:[%s3 + $0x38] sm:$0xff]
      %v1071 = vld [vmem:[%s3 + $0x40] sm:$0xff]
      %v1072 = vld [vmem:[%s3 + $0x48] sm:$0xff]
      %v1073 = vld [vmem:[%s3 + $0x50] sm:$0xff]
      %v1074 = vld [vmem:[%s3 + $0x58] sm:$0xff]
      %v1075 = vld [vmem:[%s3 + $0x60] sm:$0xff]
      %v1076 = vld [vmem:[%s3 + $0x68] sm:$0xff]
      %v1077 = vld [vmem:[%s3 + $0x70] sm:$0xff]
      %v1078 = vld [vmem:[%s3 + $0x78] sm:$0xff]
      %v1079 = vld [vmem:[%s4] sm:$0x1]
      %v1081 = vlaneseq
      %v1082 = vshrl.u32 %v1081, 7
      %v1083 = vsub.s32 0, %v1082
      %v1084 = vrot.slane %v1079, %v1083
      %1086 = vmatprep.subr.mxu0 0.0
      %1087 = vmatpush1.msra.mxu0 %v1078
      %1088 = vmatprep.subr.mxu0 0.0
      %1089 = vmatpush1.msra.mxu0 %v1077
      %1090 = vmatprep.subr.mxu0 0.0
      %1091 = vmatpush1.msra.mxu0 %v1076
      %1092 = vmatprep.subr.mxu0 0.0
      %1093 = vmatpush1.msra.mxu0 %v1075
      %1094 = vmatprep.subr.mxu0 0.0
      %1095 = vmatpush1.msra.mxu0 %v1074
      %1096 = vmatprep.subr.mxu0 0.0
      %1097 = vmatpush1.msra.mxu0 %v1073
      %1098 = vmatprep.subr.mxu0 0.0
      %1099 = vmatpush1.msra.mxu0 %v1072
      %1100 = vmatprep.subr.mxu0 0.0
      %1101 = vmatpush1.msra.mxu0 %v1071
      %1102 = vmatprep.subr.mxu0 0.0
      %1103 = vmatpush1.msra.mxu0 %v1070
      %1104 = vmatprep.subr.mxu0 0.0
      %1105 = vmatpush1.msra.mxu0 %v1069
      %1106 = vmatprep.subr.mxu0 0.0
      %1107 = vmatpush1.msra.mxu0 %v1068
      %1108 = vmatprep.subr.mxu0 0.0
      %1109 = vmatpush1.msra.mxu0 %v1067
      %1110 = vmatprep.subr.mxu0 0.0
      %1111 = vmatpush1.msra.mxu0 %v1066
      %1112 = vmatprep.subr.mxu0 0.0
      %1113 = vmatpush1.msra.mxu0 %v1065
      %1114 = vmatprep.subr.mxu0 0.0
      %1115 = vmatpush1.msra.mxu0 %v1064
      %1116 = vmatprep.subr.mxu0 0.0
      %1117 = vmatpush1.msra.mxu0 %v1063
      %1118 = vmatprep.subr.mxu0 0.0
      %1119 = vmatpush2.msra.mxu0 0.0
      %1120 = vmatprep.subr.mxu0 0.0
      %1121 = vmatpush2.msra.mxu0 0.0
      %1122 = vmatprep.subr.mxu0 0.0
      %1123 = vmatpush2.msra.mxu0 0.0
      %1124 = vmatprep.subr.mxu0 0.0
      %1125 = vmatpush2.msra.mxu0 0.0
      %1126 = vmatprep.subr.mxu0 0.0
      %1127 = vmatpush2.msra.mxu0 0.0
      %1128 = vmatprep.subr.mxu0 0.0
      %1129 = vmatpush2.msra.mxu0 0.0
      %1130 = vmatprep.subr.mxu0 0.0
      %1131 = vmatpush2.msra.mxu0 0.0
      %1132 = vmatprep.subr.mxu0 0.0
      %1133 = vmatpush2.msra.mxu0 0.0
      %1134 = vmatprep.subr.mxu0 0.0
      %1135 = vmatpush2.msra.mxu0 0.0
      %1136 = vmatprep.subr.mxu0 0.0
      %1137 = vmatpush2.msra.mxu0 0.0
      %1138 = vmatprep.subr.mxu0 0.0
      %1139 = vmatpush2.msra.mxu0 0.0
      %1140 = vmatprep.subr.mxu0 0.0
      %1141 = vmatpush2.msra.mxu0 0.0
      %1142 = vmatprep.subr.mxu0 0.0
      %1143 = vmatpush2.msra.mxu0 0.0
      %1144 = vmatprep.subr.mxu0 0.0
      %1145 = vmatpush2.msra.mxu0 0.0
      %1146 = vmatprep.subr.mxu0 0.0
      %1147 = vmatpush2.msra.mxu0 0.0
      %1148 = vmatprep.subr.mxu0 0.0
      %1149 = vmatpush2.msra.mxu0 0.0
      %1150 = vmatprep.mubr.f32.mxu0 0.0
      %1151 = vmatmul.mubr.f32.gmra.mxu0 %v1062
      %v1152 = vpop.f32.mrf.mxu0
      %v1153 = vadd.f32 %v1084, %v1152
      %v1154 = vpop.f32.mrf.mxu0
      %1155 = vdwg.mxu0
      %1156 = vst [vmem:[#allocation3] sm:$0xff] %v1153
    $region29: #{_forward_padded.7} parent=1 // pred_fallthru
      _
    // Predicated region
    $region30: #{_forward_padded.7} parent=1 // pred_check
      _
    $region31: #{_forward_padded.7} parent=1 // pred_check_branch
      %1158 = sbr.rel (0) target = $region33
    $region32: #{_forward_padded.7} parent=1 // pred_region
      %s1160 = ssub.s32 128, 128
      %1161 = vsyncadd [#allocation4], %s1160
      %s1163 = sshll.u32 [#allocation3], 4
      %s1164 = int_to_ptr.vmem [resolvable:$true] %s1163
      %1166 = dma.vmem_to_hbm [thread:$0]  %s1164, 128, %s5, [#allocation4]
    $region33: #{_forward_padded.7} parent=1 // pred_fallthru
      _
    // Predicated region
    $region34: #{_forward_padded.7} parent=1 // pred_check
      _
    $region35: #{_forward_padded.7} parent=1 // pred_check_branch
      %1168 = sbr.rel (0) target = $region37
    $region36: #{_forward_padded.7} parent=1 // pred_region
      %1169 = dma.done [#allocation4], 128
    $region37: #{_forward_padded.7} parent=1 // pred_fallthru
      _
    %1170 = vsyncpa [#allocation4], 1

</llo_original>
